<compile_context>
chip_gen: v6e
topology: v6e:2x2x1
jax: 0.10.0
libtpu: 0.0.40
codegen_flags: <defaults>
</compile_context>

<pallas_src>
import jax
import jax.numpy as jnp
from jax.experimental import pallas as pl
from jax.experimental.pallas import tpu as pltpu

B = 2                         # batch
H_IN, W_IN = 100, 4           # forced by dense1 in_features = 1380
C1, K1H, K1W = 50, 5, 4       # conv1
T1 = H_IN - K1H + 1           # 96
TP = T1 // 2                  # 48  (MaxPool1d(2))
C2, K2 = 30, 3                # conv2
T2 = TP - K2 + 1              # 46
F_FLAT = C2 * T2              # 1380
D1, D2 = 500, 200
BN_EPS = 1e-5
N_POOL = B * TP               # 96 valid pooled rows (flat over batch)
N_PAD = N_POOL + (K2 - 1)     # 98 padded pooled rows (conv2 taps slice flat)


def _blk(shape):
    n = len(shape)
    return pl.BlockSpec(shape, lambda i, _n=n: (0,) * _n)


# ---------------------------- single fused kernel ------------------------------------------
def fused_kernel(x_ref, w1_ref, gamma_ref, beta_ref, s_even_ref, w2_ref,
                 d1w_hbm, d1b_ref, d2w_hbm, d2b_ref, ow_ref, ob_ref,
                 out_ref,
                 d1w_vmem, d2w_vmem, dma_sem):
    nb = x_ref.shape[0]

    # Start the big dense-weight DMAs immediately so they overlap with all of the
    # conv1/BN/pool/conv2 compute below (d1w alone is ~1.38 MB).
    cp_d1 = pltpu.make_async_copy(d1w_hbm, d1w_vmem, dma_sem.at[0])
    cp_d2 = pltpu.make_async_copy(d2w_hbm, d2w_vmem, dma_sem.at[1])
    cp_d1.start()
    cp_d2.start()

    x = x_ref[...]                                                   # (B,100,4) f32

    # conv1(5x4, no bias): 5 per-tap accumulating matmuls (B*96,4)@(4,50) -> (192,50) f32.
    h = None
    for kh in range(K1H):
        tap = x[:, kh:kh + T1, :].reshape(nb * T1, K1W).astype(jnp.bfloat16)
        c = jnp.dot(tap, w1_ref[kh], preferred_element_type=jnp.float32)
        h = c if h is None else h + c
    h = jnp.maximum(h, 0.0)                                          # ReLU

    # BatchNorm2d(track_running_stats=False): batch statistics (biased variance),
    # one-pass stats + folded scale/shift (single VPU pass over h).
    mean = jnp.mean(h, axis=0, keepdims=True)                        # (1,50)
    var = jnp.maximum(jnp.mean(h * h, axis=0, keepdims=True) - mean * mean, 0.0)
    scale = gamma_ref[...] * jax.lax.rsqrt(var + BN_EPS)
    shift = beta_ref[...] - mean * scale
    h = h * scale + shift                                            # (192,50) f32

    # MaxPool1d(2): pairwise max of consecutive rows on the VPU, then ONE selection
    # matmul (precomputed S_even picks even rows and pads to 98 rows).  The wraparound
    # row only feeds rows that are never selected.
    h_next = jnp.concatenate([h[1:, :], h[:1, :]], axis=0)           # shift-by-1 rows
    m = jnp.maximum(h, h_next).astype(jnp.bfloat16)                  # (192,50) bf16
    p = jnp.dot(s_even_ref[...], m, preferred_element_type=jnp.float32)   # (98,50) f32

    # conv2(3, no bias): 3 per-tap accumulating matmuls (96,50)@(50,30).  Row b*48+t is
    # valid for t<46; t in {46,47} is harmless padding dropped at the flatten below.
    h2 = None
    for k in range(K2):
        tap = p[k:k + N_POOL, :].astype(jnp.bfloat16)                # (96,50)
        c = jnp.dot(tap, w2_ref[k], preferred_element_type=jnp.float32)
        h2 = c if h2 is None else h2 + c
    h2 = jnp.maximum(h2, 0.0)                                        # (96,30) f32

    # Flatten in time-major (t*30+c) order via lane concatenation (~11 KB relayout);
    # dense1 rows were pre-permuted to this order in prepare_params, so no transpose
    # of the weight is needed here.
    f_rows = []
    for b in range(nb):
        base = b * TP
        f_rows.append(jnp.concatenate(
            [h2[base + t:base + t + 1, :] for t in range(T2)], axis=-1))   # (1,1380)
    f = jnp.concatenate(f_rows, axis=0).astype(jnp.bfloat16)               # (B,1380)

    # dense1 -> (dropout = identity in eval) -> dense2 -> dense_output.
    # TODO(synk): Dropout(p=0.3) is the identity in eval mode; training-mode masking is not implemented.
    cp_d1.wait()
    z = jnp.dot(f, d1w_vmem[...], preferred_element_type=jnp.float32) + d1b_ref[...]
    cp_d2.wait()
    z = jnp.dot(z.astype(jnp.bfloat16), d2w_vmem[...],
                preferred_element_type=jnp.float32) + d2b_ref[...]
    out_ref[...] = jnp.dot(z.astype(jnp.bfloat16), ow_ref[...],
                           preferred_element_type=jnp.float32) + ob_ref[...]


# ------------- one-time (outside jit) weight repack: layouts + bf16 ------------------------
def prepare_params(params):
    # conv1 (50,1,5,4) -> per-tap slabs (5,4,50): W1[kh][kw, co] = conv1_w[co,0,kh,kw].
    w1 = jnp.transpose(params["conv1_w"][:, 0], (1, 2, 0)).astype(jnp.bfloat16)
    # conv2 (30,50,3) -> per-tap slabs (3,50,30): W2[k][ci, co] = conv2_w[co,ci,k].
    w2 = jnp.transpose(params["conv2_w"], (2, 1, 0)).astype(jnp.bfloat16)
    # dense1: torch Flatten is channel-major (c*46+t); the kernel flattens time-major
    # (t*30+c), so permute the weight rows once here (outside jit).
    d1w = (params["d1_w"].T.reshape(C2, T2, D1)
           .transpose(1, 0, 2).reshape(F_FLAT, D1).astype(jnp.bfloat16))
    # MaxPool even-row selector, padded to 98 rows (rows 96,97 are all-zero).
    jj = jnp.arange(N_PAD)[:, None]
    rr = jnp.arange(B * T1)[None, :]
    s_even = (rr == 2 * jj).astype(jnp.bfloat16)                      # (98,192)
    return {
        "w1": w1,
        "gamma": params["bn_gamma"].reshape(1, C1).astype(jnp.float32),
        "beta": params["bn_beta"].reshape(1, C1).astype(jnp.float32),
        "s_even": s_even,
        "w2": w2,
        "d1w": d1w, "d1b": params["d1_b"].reshape(1, D1).astype(jnp.float32),
        "d2w": params["d2_w"].T.astype(jnp.bfloat16),
        "d2b": params["d2_b"].reshape(1, D2).astype(jnp.float32),
        "ow": params["out_w"].T.astype(jnp.bfloat16),
        "ob": params["out_b"].reshape(1, 1).astype(jnp.float32),
    }


# ------------- forward (single pallas_call) ------------------------------------------------
@jax.jit
def cnn_model_forward(x, pp):
    b = x.shape[0]
    x3 = x.reshape(b, H_IN, W_IN)                      # C_in = 1 squeezed; metadata only
    return pl.pallas_call(
        fused_kernel,
        out_shape=jax.ShapeDtypeStruct((b, 1), jnp.float32),
        grid=(1,),
        in_specs=[
            _blk(x3.shape),                            # x
            _blk(pp["w1"].shape),                      # conv1 taps
            _blk(pp["gamma"].shape),                   # BN gamma
            _blk(pp["beta"].shape),                    # BN beta
            _blk(pp["s_even"].shape),                  # precomputed pooling selector
            _blk(pp["w2"].shape),                      # conv2 taps
            pl.BlockSpec(memory_space=pl.ANY),         # dense1 W: stays in HBM, manual DMA
            _blk(pp["d1b"].shape),
            pl.BlockSpec(memory_space=pl.ANY),         # dense2 W: stays in HBM, manual DMA
            _blk(pp["d2b"].shape),
            _blk(pp["ow"].shape),
            _blk(pp["ob"].shape),
        ],
        out_specs=_blk((b, 1)),
        scratch_shapes=[
            pltpu.VMEM((F_FLAT, D1), jnp.bfloat16),    # dense1 W landing buffer
            pltpu.VMEM((D1, D2), jnp.bfloat16),        # dense2 W landing buffer
            pltpu.SemaphoreType.DMA((2,)),
        ],
        compiler_params=pltpu.CompilerParams(dimension_semantics=("arbitrary",)),
    )(x3, pp["w1"], pp["gamma"], pp["beta"], pp["s_even"], pp["w2"],
      pp["d1w"], pp["d1b"], pp["d2w"], pp["d2b"], pp["ow"], pp["ob"])


# ------------- pure-JAX f32 reference (correctness check) ----------------------------------
def reference_forward(x, params):
    h = jax.lax.conv_general_dilated(
        x, params["conv1_w"], (1, 1), "VALID",
        dimension_numbers=("NCHW", "OIHW", "NCHW"))              # (B,50,96,1)
    h = jnp.maximum(h, 0.0)
    mean = jnp.mean(h, axis=(0, 2, 3), keepdims=True)
    var = jnp.var(h, axis=(0, 2, 3), keepdims=True)
    h = (h - mean) / jnp.sqrt(var + BN_EPS)
    h = h * params["bn_gamma"].reshape(1, C1, 1, 1) + params["bn_beta"].reshape(1, C1, 1, 1)
    h = h.reshape(h.shape[0], h.shape[1], h.shape[2])            # (B,50,96)
    h = jnp.max(h.reshape(h.shape[0], C1, TP, 2), axis=-1)       # MaxPool1d(2)
    h2d = h[:, :, :, None]
    w2d = params["conv2_w"][:, :, :, None]
    h = jax.lax.conv_general_dilated(
        h2d, w2d, (1, 1), "VALID",
        dimension_numbers=("NCHW", "OIHW", "NCHW"))[:, :, :, 0]  # (B,30,46)
    h = jnp.maximum(h, 0.0)
    f = h.reshape(h.shape[0], -1)                                # (B,1380), channel-major
    h = f @ params["d1_w"].T + params["d1_b"]
    h = h @ params["d2_w"].T + params["d2_b"]
    return h @ params["out_w"].T + params["out_b"]


if __name__ == "__main__":
    ks = jax.random.split(jax.random.PRNGKey(0), 11)
    params = {
        "conv1_w": 0.10 * jax.random.normal(ks[0], (C1, 1, K1H, K1W), jnp.float32),
        "bn_gamma": 1.0 + 0.10 * jax.random.normal(ks[1], (C1,), jnp.float32),
        "bn_beta": 0.10 * jax.random.normal(ks[2], (C1,), jnp.float32),
        "conv2_w": 0.05 * jax.random.normal(ks[3], (C2, C1, K2), jnp.float32),
        "d1_w": 0.02 * jax.random.normal(ks[4], (D1, F_FLAT), jnp.float32),
        "d1_b": 0.01 * jax.random.normal(ks[5], (D1,), jnp.float32),
        "d2_w": 0.05 * jax.random.normal(ks[6], (D2, D1), jnp.float32),
        "d2_b": 0.01 * jax.random.normal(ks[7], (D2,), jnp.float32),
        "out_w": 0.05 * jax.random.normal(ks[8], (1, D2), jnp.float32),
        "out_b": 0.01 * jax.random.normal(ks[9], (1,), jnp.float32),
    }
    x = jax.random.normal(ks[10], (B, 1, H_IN, W_IN), jnp.float32)

    pp = prepare_params(params)      # one-time repack outside jit (no per-step transposes)
    out = jax.block_until_ready(cnn_model_forward(x, pp))
    ref = jax.block_until_ready(reference_forward(x, params))
    assert out.shape == (B, 1), out.shape
    # bf16 MXU operands vs. a pure-f32 reference -> allow ~1% tolerance.
    if not jnp.allclose(out, ref, rtol=1e-2, atol=1e-2):
        raise RuntimeError(f"Pallas/reference mismatch:\n{out}\nvs\n{ref}")
    print("KERNEL_OK")
</pallas_src>

<mosaic_0001>
module attributes {stable_mosaic.version = 11 : i64} {
  func.func @fused_kernel(%arg0: i32, %arg1: memref<2x100x4xf32, #tpu.memory_space<vmem>>, %arg2: memref<5x4x50xbf16, #tpu.memory_space<vmem>>, %arg3: memref<1x50xf32, #tpu.memory_space<vmem>>, %arg4: memref<1x50xf32, #tpu.memory_space<vmem>>, %arg5: memref<98x192xbf16, #tpu.memory_space<vmem>>, %arg6: memref<3x50x30xbf16, #tpu.memory_space<vmem>>, %arg7: memref<1380x500xbf16, #tpu.memory_space<any>>, %arg8: memref<1x500xf32, #tpu.memory_space<vmem>>, %arg9: memref<500x200xbf16, #tpu.memory_space<any>>, %arg10: memref<1x200xf32, #tpu.memory_space<vmem>>, %arg11: memref<200x1xbf16, #tpu.memory_space<vmem>>, %arg12: memref<1x1xf32, #tpu.memory_space<vmem>>, %arg13: memref<2x1xf32, #tpu.memory_space<vmem>>, %arg14: memref<1380x500xbf16, #tpu.memory_space<vmem>>, %arg15: memref<500x200xbf16, #tpu.memory_space<vmem>>, %arg16: memref<2x!tpu.dma_semaphore, #tpu.memory_space<semaphore_mem>>) attributes {dimension_semantics = [#tpu.dimension_semantics<arbitrary>], iteration_bounds = array<i64: 1>, scalar_prefetch = 0 : i64, scratch_operands = 3 : i64, tpu.core_type = #tpu.core_type<tc>, window_params = [{pipeline_mode = #tpu.pipeline_mode<synchronous>, transform_indices = @transform_0, window_bounds = array<i64: 2, 100, 4>}, {pipeline_mode = #tpu.pipeline_mode<synchronous>, transform_indices = @transform_1, window_bounds = array<i64: 5, 4, 50>}, {pipeline_mode = #tpu.pipeline_mode<synchronous>, transform_indices = @transform_2, window_bounds = array<i64: 1, 50>}, {pipeline_mode = #tpu.pipeline_mode<synchronous>, transform_indices = @transform_3, window_bounds = array<i64: 1, 50>}, {pipeline_mode = #tpu.pipeline_mode<synchronous>, transform_indices = @transform_4, window_bounds = array<i64: 98, 192>}, {pipeline_mode = #tpu.pipeline_mode<synchronous>, transform_indices = @transform_5, window_bounds = array<i64: 3, 50, 30>}, {}, {pipeline_mode = #tpu.pipeline_mode<synchronous>, transform_indices = @transform_7, window_bounds = array<i64: 1, 500>}, {}, {pipeline_mode = #tpu.pipeline_mode<synchronous>, transform_indices = @transform_9, window_bounds = array<i64: 1, 200>}, {pipeline_mode = #tpu.pipeline_mode<synchronous>, transform_indices = @transform_10, window_bounds = array<i64: 200, 1>}, {pipeline_mode = #tpu.pipeline_mode<synchronous>, transform_indices = @transform_11, window_bounds = array<i64: 1, 1>}, {pipeline_mode = #tpu.pipeline_mode<synchronous>, transform_indices = @transform_12, window_bounds = array<i64: 2, 1>}]} {
    %c0_i32 = arith.constant 0 : i32
    %0 = tpu.memref_slice %arg16[%c0_i32] : memref<2x!tpu.dma_semaphore, #tpu.memory_space<semaphore_mem>> -> memref<1x!tpu.dma_semaphore, #tpu.memory_space<semaphore_mem>>
    %1 = tpu.memref_squeeze %0 : memref<1x!tpu.dma_semaphore, #tpu.memory_space<semaphore_mem>> -> memref<!tpu.dma_semaphore, #tpu.memory_space<semaphore_mem>>
    tpu.enqueue_dma source(%arg7 : memref<1380x500xbf16, #tpu.memory_space<any>>) target(%arg14 : memref<1380x500xbf16, #tpu.memory_space<vmem>>) target_semaphore(%1 : memref<!tpu.dma_semaphore, #tpu.memory_space<semaphore_mem>>)
    %c1_i32 = arith.constant 1 : i32
    %2 = tpu.memref_slice %arg16[%c1_i32] : memref<2x!tpu.dma_semaphore, #tpu.memory_space<semaphore_mem>> -> memref<1x!tpu.dma_semaphore, #tpu.memory_space<semaphore_mem>>
    %3 = tpu.memref_squeeze %2 : memref<1x!tpu.dma_semaphore, #tpu.memory_space<semaphore_mem>> -> memref<!tpu.dma_semaphore, #tpu.memory_space<semaphore_mem>>
    tpu.enqueue_dma source(%arg9 : memref<500x200xbf16, #tpu.memory_space<any>>) target(%arg15 : memref<500x200xbf16, #tpu.memory_space<vmem>>) target_semaphore(%3 : memref<!tpu.dma_semaphore, #tpu.memory_space<semaphore_mem>>)
    %c0 = arith.constant 0 : index
    %c0_0 = arith.constant 0 : index
    %c0_1 = arith.constant 0 : index
    %4 = vector.load %arg1[%c0, %c0_0, %c0_1] : memref<2x100x4xf32, #tpu.memory_space<vmem>>, vector<2x100x4xf32>
    %5 = vector.extract_strided_slice %4 {offsets = [0, 0, 0], sizes = [2, 96, 4], strides = [1, 1, 1]} : vector<2x100x4xf32> to vector<2x96x4xf32>
    %6 = vector.shape_cast %5 : vector<2x96x4xf32> to vector<192x4xf32>
    %7 = arith.truncf %6 : vector<192x4xf32> to vector<192x4xbf16>
    %c0_2 = arith.constant 0 : index
    %c0_3 = arith.constant 0 : index
    %c0_4 = arith.constant 0 : index
    %8 = vector.load %arg2[%c0_2, %c0_3, %c0_4] : memref<5x4x50xbf16, #tpu.memory_space<vmem>>, vector<1x4x50xbf16>
    %9 = vector.shape_cast %8 : vector<1x4x50xbf16> to vector<4x50xbf16>
    %cst = arith.constant dense<0.000000e+00> : vector<192x50xf32>
    %10 = tpu.matmul %7, %9, %cst {dimension_numbers = #tpu.dot_dimension_numbers<[1], [0], [0], [1], [0, 0, 1, 1], [], []>} : vector<192x4xbf16>, vector<4x50xbf16>, vector<192x50xf32> -> vector<192x50xf32>
    %11 = vector.extract_strided_slice %4 {offsets = [0, 1, 0], sizes = [2, 96, 4], strides = [1, 1, 1]} : vector<2x100x4xf32> to vector<2x96x4xf32>
    %12 = vector.shape_cast %11 : vector<2x96x4xf32> to vector<192x4xf32>
    %13 = arith.truncf %12 : vector<192x4xf32> to vector<192x4xbf16>
    %c1 = arith.constant 1 : index
    %c0_5 = arith.constant 0 : index
    %c0_6 = arith.constant 0 : index
    %14 = vector.load %arg2[%c1, %c0_5, %c0_6] : memref<5x4x50xbf16, #tpu.memory_space<vmem>>, vector<1x4x50xbf16>
    %15 = vector.shape_cast %14 : vector<1x4x50xbf16> to vector<4x50xbf16>
    %cst_7 = arith.constant dense<0.000000e+00> : vector<192x50xf32>
    %16 = tpu.matmul %13, %15, %cst_7 {dimension_numbers = #tpu.dot_dimension_numbers<[1], [0], [0], [1], [0, 0, 1, 1], [], []>} : vector<192x4xbf16>, vector<4x50xbf16>, vector<192x50xf32> -> vector<192x50xf32>
    %17 = arith.addf %10, %16 : vector<192x50xf32>
    %18 = vector.extract_strided_slice %4 {offsets = [0, 2, 0], sizes = [2, 96, 4], strides = [1, 1, 1]} : vector<2x100x4xf32> to vector<2x96x4xf32>
    %19 = vector.shape_cast %18 : vector<2x96x4xf32> to vector<192x4xf32>
    %20 = arith.truncf %19 : vector<192x4xf32> to vector<192x4xbf16>
    %c2 = arith.constant 2 : index
    %c0_8 = arith.constant 0 : index
    %c0_9 = arith.constant 0 : index
    %21 = vector.load %arg2[%c2, %c0_8, %c0_9] : memref<5x4x50xbf16, #tpu.memory_space<vmem>>, vector<1x4x50xbf16>
    %22 = vector.shape_cast %21 : vector<1x4x50xbf16> to vector<4x50xbf16>
    %cst_10 = arith.constant dense<0.000000e+00> : vector<192x50xf32>
    %23 = tpu.matmul %20, %22, %cst_10 {dimension_numbers = #tpu.dot_dimension_numbers<[1], [0], [0], [1], [0, 0, 1, 1], [], []>} : vector<192x4xbf16>, vector<4x50xbf16>, vector<192x50xf32> -> vector<192x50xf32>
    %24 = arith.addf %17, %23 : vector<192x50xf32>
    %25 = vector.extract_strided_slice %4 {offsets = [0, 3, 0], sizes = [2, 96, 4], strides = [1, 1, 1]} : vector<2x100x4xf32> to vector<2x96x4xf32>
    %26 = vector.shape_cast %25 : vector<2x96x4xf32> to vector<192x4xf32>
    %27 = arith.truncf %26 : vector<192x4xf32> to vector<192x4xbf16>
    %c3 = arith.constant 3 : index
    %c0_11 = arith.constant 0 : index
    %c0_12 = arith.constant 0 : index
    %28 = vector.load %arg2[%c3, %c0_11, %c0_12] : memref<5x4x50xbf16, #tpu.memory_space<vmem>>, vector<1x4x50xbf16>
    %29 = vector.shape_cast %28 : vector<1x4x50xbf16> to vector<4x50xbf16>
    %cst_13 = arith.constant dense<0.000000e+00> : vector<192x50xf32>
    %30 = tpu.matmul %27, %29, %cst_13 {dimension_numbers = #tpu.dot_dimension_numbers<[1], [0], [0], [1], [0, 0, 1, 1], [], []>} : vector<192x4xbf16>, vector<4x50xbf16>, vector<192x50xf32> -> vector<192x50xf32>
    %31 = arith.addf %24, %30 : vector<192x50xf32>
    %32 = vector.extract_strided_slice %4 {offsets = [0, 4, 0], sizes = [2, 96, 4], strides = [1, 1, 1]} : vector<2x100x4xf32> to vector<2x96x4xf32>
    %33 = vector.shape_cast %32 : vector<2x96x4xf32> to vector<192x4xf32>
    %34 = arith.truncf %33 : vector<192x4xf32> to vector<192x4xbf16>
    %c4 = arith.constant 4 : index
    %c0_14 = arith.constant 0 : index
    %c0_15 = arith.constant 0 : index
    %35 = vector.load %arg2[%c4, %c0_14, %c0_15] : memref<5x4x50xbf16, #tpu.memory_space<vmem>>, vector<1x4x50xbf16>
    %36 = vector.shape_cast %35 : vector<1x4x50xbf16> to vector<4x50xbf16>
    %cst_16 = arith.constant dense<0.000000e+00> : vector<192x50xf32>
    %37 = tpu.matmul %34, %36, %cst_16 {dimension_numbers = #tpu.dot_dimension_numbers<[1], [0], [0], [1], [0, 0, 1, 1], [], []>} : vector<192x4xbf16>, vector<4x50xbf16>, vector<192x50xf32> -> vector<192x50xf32>
    %38 = arith.addf %31, %37 : vector<192x50xf32>
    %cst_17 = arith.constant 0.000000e+00 : f32
    %39 = vector.broadcast %cst_17 : f32 to vector<192x50xf32>
    %40 = arith.maximumf %38, %39 : vector<192x50xf32>
    %cst_18 = arith.constant dense<0.000000e+00> : vector<50xf32>
    %41 = vector.multi_reduction <add>, %40, %cst_18 [0] : vector<192x50xf32> to vector<50xf32>
    %42 = vector.shape_cast %41 : vector<50xf32> to vector<1x50xf32>
    %cst_19 = arith.constant 1.920000e+02 : f32
    %43 = vector.broadcast %cst_19 : f32 to vector<1x50xf32>
    %44 = arith.divf %42, %43 : vector<1x50xf32>
    %45 = arith.mulf %40, %40 : vector<192x50xf32>
    %cst_20 = arith.constant dense<0.000000e+00> : vector<50xf32>
    %46 = vector.multi_reduction <add>, %45, %cst_20 [0] : vector<192x50xf32> to vector<50xf32>
    %47 = vector.shape_cast %46 : vector<50xf32> to vector<1x50xf32>
    %cst_21 = arith.constant 1.920000e+02 : f32
    %48 = vector.broadcast %cst_21 : f32 to vector<1x50xf32>
    %49 = arith.divf %47, %48 : vector<1x50xf32>
    %50 = arith.mulf %44, %44 : vector<1x50xf32>
    %51 = arith.subf %49, %50 : vector<1x50xf32>
    %cst_22 = arith.constant 0.000000e+00 : f32
    %52 = vector.broadcast %cst_22 : f32 to vector<1x50xf32>
    %53 = arith.maximumf %51, %52 : vector<1x50xf32>
    %c0_23 = arith.constant 0 : index
    %c0_24 = arith.constant 0 : index
    %54 = vector.load %arg3[%c0_23, %c0_24] : memref<1x50xf32, #tpu.memory_space<vmem>>, vector<1x50xf32>
    %cst_25 = arith.constant 9.99999974E-6 : f32
    %55 = vector.broadcast %cst_25 : f32 to vector<1x50xf32>
    %56 = arith.addf %53, %55 : vector<1x50xf32>
    %57 = math.rsqrt %56 : vector<1x50xf32>
    %58 = arith.mulf %54, %57 : vector<1x50xf32>
    %c0_26 = arith.constant 0 : index
    %c0_27 = arith.constant 0 : index
    %59 = vector.load %arg4[%c0_26, %c0_27] : memref<1x50xf32, #tpu.memory_space<vmem>>, vector<1x50xf32>
    %60 = arith.mulf %44, %58 : vector<1x50xf32>
    %61 = arith.subf %59, %60 : vector<1x50xf32>
    %62 = vector.broadcast %58 : vector<1x50xf32> to vector<192x50xf32>
    %63 = arith.mulf %40, %62 : vector<192x50xf32>
    %64 = vector.broadcast %61 : vector<1x50xf32> to vector<192x50xf32>
    %65 = arith.addf %63, %64 : vector<192x50xf32>
    %66 = vector.extract_strided_slice %65 {offsets = [1, 0], sizes = [191, 50], strides = [1, 1]} : vector<192x50xf32> to vector<191x50xf32>
    %67 = vector.extract_strided_slice %65 {offsets = [0, 0], sizes = [1, 50], strides = [1, 1]} : vector<192x50xf32> to vector<1x50xf32>
    %68 = tpu.concatenate %66, %67 in 0 : vector<191x50xf32>, vector<1x50xf32> -> vector<192x50xf32>
    %69 = arith.maximumf %65, %68 : vector<192x50xf32>
    %70 = arith.truncf %69 : vector<192x50xf32> to vector<192x50xbf16>
    %c0_28 = arith.constant 0 : index
    %c0_29 = arith.constant 0 : index
    %71 = vector.load %arg5[%c0_28, %c0_29] : memref<98x192xbf16, #tpu.memory_space<vmem>>, vector<98x192xbf16>
    %cst_30 = arith.constant dense<0.000000e+00> : vector<98x50xf32>
    %72 = tpu.matmul %71, %70, %cst_30 {dimension_numbers = #tpu.dot_dimension_numbers<[1], [0], [0], [1], [0, 0, 1, 1], [], []>} : vector<98x192xbf16>, vector<192x50xbf16>, vector<98x50xf32> -> vector<98x50xf32>
    %73 = vector.extract_strided_slice %72 {offsets = [0, 0], sizes = [96, 50], strides = [1, 1]} : vector<98x50xf32> to vector<96x50xf32>
    %74 = arith.truncf %73 : vector<96x50xf32> to vector<96x50xbf16>
    %c0_31 = arith.constant 0 : index
    %c0_32 = arith.constant 0 : index
    %c0_33 = arith.constant 0 : index
    %75 = vector.load %arg6[%c0_31, %c0_32, %c0_33] : memref<3x50x30xbf16, #tpu.memory_space<vmem>>, vector<1x50x30xbf16>
    %76 = vector.shape_cast %75 : vector<1x50x30xbf16> to vector<50x30xbf16>
    %cst_34 = arith.constant dense<0.000000e+00> : vector<96x30xf32>
    %77 = tpu.matmul %74, %76, %cst_34 {dimension_numbers = #tpu.dot_dimension_numbers<[1], [0], [0], [1], [0, 0, 1, 1], [], []>} : vector<96x50xbf16>, vector<50x30xbf16>, vector<96x30xf32> -> vector<96x30xf32>
    %78 = vector.extract_strided_slice %72 {offsets = [1, 0], sizes = [96, 50], strides = [1, 1]} : vector<98x50xf32> to vector<96x50xf32>
    %79 = arith.truncf %78 : vector<96x50xf32> to vector<96x50xbf16>
    %c1_35 = arith.constant 1 : index
    %c0_36 = arith.constant 0 : index
    %c0_37 = arith.constant 0 : index
    %80 = vector.load %arg6[%c1_35, %c0_36, %c0_37] : memref<3x50x30xbf16, #tpu.memory_space<vmem>>, vector<1x50x30xbf16>
    %81 = vector.shape_cast %80 : vector<1x50x30xbf16> to vector<50x30xbf16>
    %cst_38 = arith.constant dense<0.000000e+00> : vector<96x30xf32>
    %82 = tpu.matmul %79, %81, %cst_38 {dimension_numbers = #tpu.dot_dimension_numbers<[1], [0], [0], [1], [0, 0, 1, 1], [], []>} : vector<96x50xbf16>, vector<50x30xbf16>, vector<96x30xf32> -> vector<96x30xf32>
    %83 = arith.addf %77, %82 : vector<96x30xf32>
    %84 = vector.extract_strided_slice %72 {offsets = [2, 0], sizes = [96, 50], strides = [1, 1]} : vector<98x50xf32> to vector<96x50xf32>
    %85 = arith.truncf %84 : vector<96x50xf32> to vector<96x50xbf16>
    %c2_39 = arith.constant 2 : index
    %c0_40 = arith.constant 0 : index
    %c0_41 = arith.constant 0 : index
    %86 = vector.load %arg6[%c2_39, %c0_40, %c0_41] : memref<3x50x30xbf16, #tpu.memory_space<vmem>>, vector<1x50x30xbf16>
    %87 = vector.shape_cast %86 : vector<1x50x30xbf16> to vector<50x30xbf16>
    %cst_42 = arith.constant dense<0.000000e+00> : vector<96x30xf32>
    %88 = tpu.matmul %85, %87, %cst_42 {dimension_numbers = #tpu.dot_dimension_numbers<[1], [0], [0], [1], [0, 0, 1, 1], [], []>} : vector<96x50xbf16>, vector<50x30xbf16>, vector<96x30xf32> -> vector<96x30xf32>
    %89 = arith.addf %83, %88 : vector<96x30xf32>
    %cst_43 = arith.constant 0.000000e+00 : f32
    %90 = vector.broadcast %cst_43 : f32 to vector<96x30xf32>
    %91 = arith.maximumf %89, %90 : vector<96x30xf32>
    %92 = vector.extract_strided_slice %91 {offsets = [0, 0], sizes = [1, 30], strides = [1, 1]} : vector<96x30xf32> to vector<1x30xf32>
    %93 = vector.extract_strided_slice %91 {offsets = [1, 0], sizes = [1, 30], strides = [1, 1]} : vector<96x30xf32> to vector<1x30xf32>
    %94 = vector.extract_strided_slice %91 {offsets = [2, 0], sizes = [1, 30], strides = [1, 1]} : vector<96x30xf32> to vector<1x30xf32>
    %95 = vector.extract_strided_slice %91 {offsets = [3, 0], sizes = [1, 30], strides = [1, 1]} : vector<96x30xf32> to vector<1x30xf32>
    %96 = vector.extract_strided_slice %91 {offsets = [4, 0], sizes = [1, 30], strides = [1, 1]} : vector<96x30xf32> to vector<1x30xf32>
    %97 = vector.extract_strided_slice %91 {offsets = [5, 0], sizes = [1, 30], strides = [1, 1]} : vector<96x30xf32> to vector<1x30xf32>
    %98 = vector.extract_strided_slice %91 {offsets = [6, 0], sizes = [1, 30], strides = [1, 1]} : vector<96x30xf32> to vector<1x30xf32>
    %99 = vector.extract_strided_slice %91 {offsets = [7, 0], sizes = [1, 30], strides = [1, 1]} : vector<96x30xf32> to vector<1x30xf32>
    %100 = vector.extract_strided_slice %91 {offsets = [8, 0], sizes = [1, 30], strides = [1, 1]} : vector<96x30xf32> to vector<1x30xf32>
    %101 = vector.extract_strided_slice %91 {offsets = [9, 0], sizes = [1, 30], strides = [1, 1]} : vector<96x30xf32> to vector<1x30xf32>
    %102 = vector.extract_strided_slice %91 {offsets = [10, 0], sizes = [1, 30], strides = [1, 1]} : vector<96x30xf32> to vector<1x30xf32>
    %103 = vector.extract_strided_slice %91 {offsets = [11, 0], sizes = [1, 30], strides = [1, 1]} : vector<96x30xf32> to vector<1x30xf32>
    %104 = vector.extract_strided_slice %91 {offsets = [12, 0], sizes = [1, 30], strides = [1, 1]} : vector<96x30xf32> to vector<1x30xf32>
    %105 = vector.extract_strided_slice %91 {offsets = [13, 0], sizes = [1, 30], strides = [1, 1]} : vector<96x30xf32> to vector<1x30xf32>
    %106 = vector.extract_strided_slice %91 {offsets = [14, 0], sizes = [1, 30], strides = [1, 1]} : vector<96x30xf32> to vector<1x30xf32>
    %107 = vector.extract_strided_slice %91 {offsets = [15, 0], sizes = [1, 30], strides = [1, 1]} : vector<96x30xf32> to vector<1x30xf32>
    %108 = vector.extract_strided_slice %91 {offsets = [16, 0], sizes = [1, 30], strides = [1, 1]} : vector<96x30xf32> to vector<1x30xf32>
    %109 = vector.extract_strided_slice %91 {offsets = [17, 0], sizes = [1, 30], strides = [1, 1]} : vector<96x30xf32> to vector<1x30xf32>
    %110 = vector.extract_strided_slice %91 {offsets = [18, 0], sizes = [1, 30], strides = [1, 1]} : vector<96x30xf32> to vector<1x30xf32>
    %111 = vector.extract_strided_slice %91 {offsets = [19, 0], sizes = [1, 30], strides = [1, 1]} : vector<96x30xf32> to vector<1x30xf32>
    %112 = vector.extract_strided_slice %91 {offsets = [20, 0], sizes = [1, 30], strides = [1, 1]} : vector<96x30xf32> to vector<1x30xf32>
    %113 = vector.extract_strided_slice %91 {offsets = [21, 0], sizes = [1, 30], strides = [1, 1]} : vector<96x30xf32> to vector<1x30xf32>
    %114 = vector.extract_strided_slice %91 {offsets = [22, 0], sizes = [1, 30], strides = [1, 1]} : vector<96x30xf32> to vector<1x30xf32>
    %115 = vector.extract_strided_slice %91 {offsets = [23, 0], sizes = [1, 30], strides = [1, 1]} : vector<96x30xf32> to vector<1x30xf32>
    %116 = vector.extract_strided_slice %91 {offsets = [24, 0], sizes = [1, 30], strides = [1, 1]} : vector<96x30xf32> to vector<1x30xf32>
    %117 = vector.extract_strided_slice %91 {offsets = [25, 0], sizes = [1, 30], strides = [1, 1]} : vector<96x30xf32> to vector<1x30xf32>
    %118 = vector.extract_strided_slice %91 {offsets = [26, 0], sizes = [1, 30], strides = [1, 1]} : vector<96x30xf32> to vector<1x30xf32>
    %119 = vector.extract_strided_slice %91 {offsets = [27, 0], sizes = [1, 30], strides = [1, 1]} : vector<96x30xf32> to vector<1x30xf32>
    %120 = vector.extract_strided_slice %91 {offsets = [28, 0], sizes = [1, 30], strides = [1, 1]} : vector<96x30xf32> to vector<1x30xf32>
    %121 = vector.extract_strided_slice %91 {offsets = [29, 0], sizes = [1, 30], strides = [1, 1]} : vector<96x30xf32> to vector<1x30xf32>
    %122 = vector.extract_strided_slice %91 {offsets = [30, 0], sizes = [1, 30], strides = [1, 1]} : vector<96x30xf32> to vector<1x30xf32>
    %123 = vector.extract_strided_slice %91 {offsets = [31, 0], sizes = [1, 30], strides = [1, 1]} : vector<96x30xf32> to vector<1x30xf32>
    %124 = vector.extract_strided_slice %91 {offsets = [32, 0], sizes = [1, 30], strides = [1, 1]} : vector<96x30xf32> to vector<1x30xf32>
    %125 = vector.extract_strided_slice %91 {offsets = [33, 0], sizes = [1, 30], strides = [1, 1]} : vector<96x30xf32> to vector<1x30xf32>
    %126 = vector.extract_strided_slice %91 {offsets = [34, 0], sizes = [1, 30], strides = [1, 1]} : vector<96x30xf32> to vector<1x30xf32>
    %127 = vector.extract_strided_slice %91 {offsets = [35, 0], sizes = [1, 30], strides = [1, 1]} : vector<96x30xf32> to vector<1x30xf32>
    %128 = vector.extract_strided_slice %91 {offsets = [36, 0], sizes = [1, 30], strides = [1, 1]} : vector<96x30xf32> to vector<1x30xf32>
    %129 = vector.extract_strided_slice %91 {offsets = [37, 0], sizes = [1, 30], strides = [1, 1]} : vector<96x30xf32> to vector<1x30xf32>
    %130 = vector.extract_strided_slice %91 {offsets = [38, 0], sizes = [1, 30], strides = [1, 1]} : vector<96x30xf32> to vector<1x30xf32>
    %131 = vector.extract_strided_slice %91 {offsets = [39, 0], sizes = [1, 30], strides = [1, 1]} : vector<96x30xf32> to vector<1x30xf32>
    %132 = vector.extract_strided_slice %91 {offsets = [40, 0], sizes = [1, 30], strides = [1, 1]} : vector<96x30xf32> to vector<1x30xf32>
    %133 = vector.extract_strided_slice %91 {offsets = [41, 0], sizes = [1, 30], strides = [1, 1]} : vector<96x30xf32> to vector<1x30xf32>
    %134 = vector.extract_strided_slice %91 {offsets = [42, 0], sizes = [1, 30], strides = [1, 1]} : vector<96x30xf32> to vector<1x30xf32>
    %135 = vector.extract_strided_slice %91 {offsets = [43, 0], sizes = [1, 30], strides = [1, 1]} : vector<96x30xf32> to vector<1x30xf32>
    %136 = vector.extract_strided_slice %91 {offsets = [44, 0], sizes = [1, 30], strides = [1, 1]} : vector<96x30xf32> to vector<1x30xf32>
    %137 = vector.extract_strided_slice %91 {offsets = [45, 0], sizes = [1, 30], strides = [1, 1]} : vector<96x30xf32> to vector<1x30xf32>
    %138 = tpu.concatenate %92, %93, %94, %95, %96, %97, %98, %99, %100, %101, %102, %103, %104, %105, %106, %107 in 1 : vector<1x30xf32>, vector<1x30xf32>, vector<1x30xf32>, vector<1x30xf32>, vector<1x30xf32>, vector<1x30xf32>, vector<1x30xf32>, vector<1x30xf32>, vector<1x30xf32>, vector<1x30xf32>, vector<1x30xf32>, vector<1x30xf32>, vector<1x30xf32>, vector<1x30xf32>, vector<1x30xf32>, vector<1x30xf32> -> vector<1x480xf32>
    %139 = tpu.concatenate %108, %109, %110, %111, %112, %113, %114, %115, %116, %117, %118, %119, %120, %121, %122, %123 in 1 : vector<1x30xf32>, vector<1x30xf32>, vector<1x30xf32>, vector<1x30xf32>, vector<1x30xf32>, vector<1x30xf32>, vector<1x30xf32>, vector<1x30xf32>, vector<1x30xf32>, vector<1x30xf32>, vector<1x30xf32>, vector<1x30xf32>, vector<1x30xf32>, vector<1x30xf32>, vector<1x30xf32>, vector<1x30xf32> -> vector<1x480xf32>
    %140 = tpu.concatenate %124, %125, %126, %127, %128, %129, %130, %131, %132, %133, %134, %135, %136, %137 in 1 : vector<1x30xf32>, vector<1x30xf32>, vector<1x30xf32>, vector<1x30xf32>, vector<1x30xf32>, vector<1x30xf32>, vector<1x30xf32>, vector<1x30xf32>, vector<1x30xf32>, vector<1x30xf32>, vector<1x30xf32>, vector<1x30xf32>, vector<1x30xf32>, vector<1x30xf32> -> vector<1x420xf32>
    %141 = tpu.concatenate %138, %139, %140 in 1 : vector<1x480xf32>, vector<1x480xf32>, vector<1x420xf32> -> vector<1x1380xf32>
    %142 = vector.extract_strided_slice %91 {offsets = [48, 0], sizes = [1, 30], strides = [1, 1]} : vector<96x30xf32> to vector<1x30xf32>
    %143 = vector.extract_strided_slice %91 {offsets = [49, 0], sizes = [1, 30], strides = [1, 1]} : vector<96x30xf32> to vector<1x30xf32>
    %144 = vector.extract_strided_slice %91 {offsets = [50, 0], sizes = [1, 30], strides = [1, 1]} : vector<96x30xf32> to vector<1x30xf32>
    %145 = vector.extract_strided_slice %91 {offsets = [51, 0], sizes = [1, 30], strides = [1, 1]} : vector<96x30xf32> to vector<1x30xf32>
    %146 = vector.extract_strided_slice %91 {offsets = [52, 0], sizes = [1, 30], strides = [1, 1]} : vector<96x30xf32> to vector<1x30xf32>
    %147 = vector.extract_strided_slice %91 {offsets = [53, 0], sizes = [1, 30], strides = [1, 1]} : vector<96x30xf32> to vector<1x30xf32>
    %148 = vector.extract_strided_slice %91 {offsets = [54, 0], sizes = [1, 30], strides = [1, 1]} : vector<96x30xf32> to vector<1x30xf32>
    %149 = vector.extract_strided_slice %91 {offsets = [55, 0], sizes = [1, 30], strides = [1, 1]} : vector<96x30xf32> to vector<1x30xf32>
    %150 = vector.extract_strided_slice %91 {offsets = [56, 0], sizes = [1, 30], strides = [1, 1]} : vector<96x30xf32> to vector<1x30xf32>
    %151 = vector.extract_strided_slice %91 {offsets = [57, 0], sizes = [1, 30], strides = [1, 1]} : vector<96x30xf32> to vector<1x30xf32>
    %152 = vector.extract_strided_slice %91 {offsets = [58, 0], sizes = [1, 30], strides = [1, 1]} : vector<96x30xf32> to vector<1x30xf32>
    %153 = vector.extract_strided_slice %91 {offsets = [59, 0], sizes = [1, 30], strides = [1, 1]} : vector<96x30xf32> to vector<1x30xf32>
    %154 = vector.extract_strided_slice %91 {offsets = [60, 0], sizes = [1, 30], strides = [1, 1]} : vector<96x30xf32> to vector<1x30xf32>
    %155 = vector.extract_strided_slice %91 {offsets = [61, 0], sizes = [1, 30], strides = [1, 1]} : vector<96x30xf32> to vector<1x30xf32>
    %156 = vector.extract_strided_slice %91 {offsets = [62, 0], sizes = [1, 30], strides = [1, 1]} : vector<96x30xf32> to vector<1x30xf32>
    %157 = vector.extract_strided_slice %91 {offsets = [63, 0], sizes = [1, 30], strides = [1, 1]} : vector<96x30xf32> to vector<1x30xf32>
    %158 = vector.extract_strided_slice %91 {offsets = [64, 0], sizes = [1, 30], strides = [1, 1]} : vector<96x30xf32> to vector<1x30xf32>
    %159 = vector.extract_strided_slice %91 {offsets = [65, 0], sizes = [1, 30], strides = [1, 1]} : vector<96x30xf32> to vector<1x30xf32>
    %160 = vector.extract_strided_slice %91 {offsets = [66, 0], sizes = [1, 30], strides = [1, 1]} : vector<96x30xf32> to vector<1x30xf32>
    %161 = vector.extract_strided_slice %91 {offsets = [67, 0], sizes = [1, 30], strides = [1, 1]} : vector<96x30xf32> to vector<1x30xf32>
    %162 = vector.extract_strided_slice %91 {offsets = [68, 0], sizes = [1, 30], strides = [1, 1]} : vector<96x30xf32> to vector<1x30xf32>
    %163 = vector.extract_strided_slice %91 {offsets = [69, 0], sizes = [1, 30], strides = [1, 1]} : vector<96x30xf32> to vector<1x30xf32>
    %164 = vector.extract_strided_slice %91 {offsets = [70, 0], sizes = [1, 30], strides = [1, 1]} : vector<96x30xf32> to vector<1x30xf32>
    %165 = vector.extract_strided_slice %91 {offsets = [71, 0], sizes = [1, 30], strides = [1, 1]} : vector<96x30xf32> to vector<1x30xf32>
    %166 = vector.extract_strided_slice %91 {offsets = [72, 0], sizes = [1, 30], strides = [1, 1]} : vector<96x30xf32> to vector<1x30xf32>
    %167 = vector.extract_strided_slice %91 {offsets = [73, 0], sizes = [1, 30], strides = [1, 1]} : vector<96x30xf32> to vector<1x30xf32>
    %168 = vector.extract_strided_slice %91 {offsets = [74, 0], sizes = [1, 30], strides = [1, 1]} : vector<96x30xf32> to vector<1x30xf32>
    %169 = vector.extract_strided_slice %91 {offsets = [75, 0], sizes = [1, 30], strides = [1, 1]} : vector<96x30xf32> to vector<1x30xf32>
    %170 = vector.extract_strided_slice %91 {offsets = [76, 0], sizes = [1, 30], strides = [1, 1]} : vector<96x30xf32> to vector<1x30xf32>
    %171 = vector.extract_strided_slice %91 {offsets = [77, 0], sizes = [1, 30], strides = [1, 1]} : vector<96x30xf32> to vector<1x30xf32>
    %172 = vector.extract_strided_slice %91 {offsets = [78, 0], sizes = [1, 30], strides = [1, 1]} : vector<96x30xf32> to vector<1x30xf32>
    %173 = vector.extract_strided_slice %91 {offsets = [79, 0], sizes = [1, 30], strides = [1, 1]} : vector<96x30xf32> to vector<1x30xf32>
    %174 = vector.extract_strided_slice %91 {offsets = [80, 0], sizes = [1, 30], strides = [1, 1]} : vector<96x30xf32> to vector<1x30xf32>
    %175 = vector.extract_strided_slice %91 {offsets = [81, 0], sizes = [1, 30], strides = [1, 1]} : vector<96x30xf32> to vector<1x30xf32>
    %176 = vector.extract_strided_slice %91 {offsets = [82, 0], sizes = [1, 30], strides = [1, 1]} : vector<96x30xf32> to vector<1x30xf32>
    %177 = vector.extract_strided_slice %91 {offsets = [83, 0], sizes = [1, 30], strides = [1, 1]} : vector<96x30xf32> to vector<1x30xf32>
    %178 = vector.extract_strided_slice %91 {offsets = [84, 0], sizes = [1, 30], strides = [1, 1]} : vector<96x30xf32> to vector<1x30xf32>
    %179 = vector.extract_strided_slice %91 {offsets = [85, 0], sizes = [1, 30], strides = [1, 1]} : vector<96x30xf32> to vector<1x30xf32>
    %180 = vector.extract_strided_slice %91 {offsets = [86, 0], sizes = [1, 30], strides = [1, 1]} : vector<96x30xf32> to vector<1x30xf32>
    %181 = vector.extract_strided_slice %91 {offsets = [87, 0], sizes = [1, 30], strides = [1, 1]} : vector<96x30xf32> to vector<1x30xf32>
    %182 = vector.extract_strided_slice %91 {offsets = [88, 0], sizes = [1, 30], strides = [1, 1]} : vector<96x30xf32> to vector<1x30xf32>
    %183 = vector.extract_strided_slice %91 {offsets = [89, 0], sizes = [1, 30], strides = [1, 1]} : vector<96x30xf32> to vector<1x30xf32>
    %184 = vector.extract_strided_slice %91 {offsets = [90, 0], sizes = [1, 30], strides = [1, 1]} : vector<96x30xf32> to vector<1x30xf32>
    %185 = vector.extract_strided_slice %91 {offsets = [91, 0], sizes = [1, 30], strides = [1, 1]} : vector<96x30xf32> to vector<1x30xf32>
    %186 = vector.extract_strided_slice %91 {offsets = [92, 0], sizes = [1, 30], strides = [1, 1]} : vector<96x30xf32> to vector<1x30xf32>
    %187 = vector.extract_strided_slice %91 {offsets = [93, 0], sizes = [1, 30], strides = [1, 1]} : vector<96x30xf32> to vector<1x30xf32>
    %188 = tpu.concatenate %142, %143, %144, %145, %146, %147, %148, %149, %150, %151, %152, %153, %154, %155, %156, %157 in 1 : vector<1x30xf32>, vector<1x30xf32>, vector<1x30xf32>, vector<1x30xf32>, vector<1x30xf32>, vector<1x30xf32>, vector<1x30xf32>, vector<1x30xf32>, vector<1x30xf32>, vector<1x30xf32>, vector<1x30xf32>, vector<1x30xf32>, vector<1x30xf32>, vector<1x30xf32>, vector<1x30xf32>, vector<1x30xf32> -> vector<1x480xf32>
    %189 = tpu.concatenate %158, %159, %160, %161, %162, %163, %164, %165, %166, %167, %168, %169, %170, %171, %172, %173 in 1 : vector<1x30xf32>, vector<1x30xf32>, vector<1x30xf32>, vector<1x30xf32>, vector<1x30xf32>, vector<1x30xf32>, vector<1x30xf32>, vector<1x30xf32>, vector<1x30xf32>, vector<1x30xf32>, vector<1x30xf32>, vector<1x30xf32>, vector<1x30xf32>, vector<1x30xf32>, vector<1x30xf32>, vector<1x30xf32> -> vector<1x480xf32>
    %190 = tpu.concatenate %174, %175, %176, %177, %178, %179, %180, %181, %182, %183, %184, %185, %186, %187 in 1 : vector<1x30xf32>, vector<1x30xf32>, vector<1x30xf32>, vector<1x30xf32>, vector<1x30xf32>, vector<1x30xf32>, vector<1x30xf32>, vector<1x30xf32>, vector<1x30xf32>, vector<1x30xf32>, vector<1x30xf32>, vector<1x30xf32>, vector<1x30xf32>, vector<1x30xf32> -> vector<1x420xf32>
    %191 = tpu.concatenate %188, %189, %190 in 1 : vector<1x480xf32>, vector<1x480xf32>, vector<1x420xf32> -> vector<1x1380xf32>
    %192 = tpu.concatenate %141, %191 in 0 : vector<1x1380xf32>, vector<1x1380xf32> -> vector<2x1380xf32>
    %193 = arith.truncf %192 : vector<2x1380xf32> to vector<2x1380xbf16>
    %c0_i32_44 = arith.constant 0 : i32
    %194 = tpu.memref_slice %arg16[%c0_i32_44] : memref<2x!tpu.dma_semaphore, #tpu.memory_space<semaphore_mem>> -> memref<1x!tpu.dma_semaphore, #tpu.memory_space<semaphore_mem>>
    %195 = tpu.memref_squeeze %194 : memref<1x!tpu.dma_semaphore, #tpu.memory_space<semaphore_mem>> -> memref<!tpu.dma_semaphore, #tpu.memory_space<semaphore_mem>>
    tpu.wait_dma2 semaphore(%195 : memref<!tpu.dma_semaphore, #tpu.memory_space<semaphore_mem>>) src(%arg7 : memref<1380x500xbf16, #tpu.memory_space<any>>) dst(%arg14 : memref<1380x500xbf16, #tpu.memory_space<vmem>>)
    %c0_45 = arith.constant 0 : index
    %c0_46 = arith.constant 0 : index
    %196 = vector.load %arg14[%c0_45, %c0_46] : memref<1380x500xbf16, #tpu.memory_space<vmem>>, vector<1380x500xbf16>
    %cst_47 = arith.constant dense<0.000000e+00> : vector<2x500xf32>
    %197 = tpu.matmul %193, %196, %cst_47 {dimension_numbers = #tpu.dot_dimension_numbers<[1], [0], [0], [1], [0, 0, 1, 1], [], []>} : vector<2x1380xbf16>, vector<1380x500xbf16>, vector<2x500xf32> -> vector<2x500xf32>
    %c0_48 = arith.constant 0 : index
    %c0_49 = arith.constant 0 : index
    %198 = vector.load %arg8[%c0_48, %c0_49] : memref<1x500xf32, #tpu.memory_space<vmem>>, vector<1x500xf32>
    %199 = vector.broadcast %198 : vector<1x500xf32> to vector<2x500xf32>
    %200 = arith.addf %197, %199 : vector<2x500xf32>
    %c1_i32_50 = arith.constant 1 : i32
    %201 = tpu.memref_slice %arg16[%c1_i32_50] : memref<2x!tpu.dma_semaphore, #tpu.memory_space<semaphore_mem>> -> memref<1x!tpu.dma_semaphore, #tpu.memory_space<semaphore_mem>>
    %202 = tpu.memref_squeeze %201 : memref<1x!tpu.dma_semaphore, #tpu.memory_space<semaphore_mem>> -> memref<!tpu.dma_semaphore, #tpu.memory_space<semaphore_mem>>
    tpu.wait_dma2 semaphore(%202 : memref<!tpu.dma_semaphore, #tpu.memory_space<semaphore_mem>>) src(%arg9 : memref<500x200xbf16, #tpu.memory_space<any>>) dst(%arg15 : memref<500x200xbf16, #tpu.memory_space<vmem>>)
    %203 = arith.truncf %200 : vector<2x500xf32> to vector<2x500xbf16>
    %c0_51 = arith.constant 0 : index
    %c0_52 = arith.constant 0 : index
    %204 = vector.load %arg15[%c0_51, %c0_52] : memref<500x200xbf16, #tpu.memory_space<vmem>>, vector<500x200xbf16>
    %cst_53 = arith.constant dense<0.000000e+00> : vector<2x200xf32>
    %205 = tpu.matmul %203, %204, %cst_53 {dimension_numbers = #tpu.dot_dimension_numbers<[1], [0], [0], [1], [0, 0, 1, 1], [], []>} : vector<2x500xbf16>, vector<500x200xbf16>, vector<2x200xf32> -> vector<2x200xf32>
    %c0_54 = arith.constant 0 : index
    %c0_55 = arith.constant 0 : index
    %206 = vector.load %arg10[%c0_54, %c0_55] : memref<1x200xf32, #tpu.memory_space<vmem>>, vector<1x200xf32>
    %207 = vector.broadcast %206 : vector<1x200xf32> to vector<2x200xf32>
    %208 = arith.addf %205, %207 : vector<2x200xf32>
    %209 = arith.truncf %208 : vector<2x200xf32> to vector<2x200xbf16>
    %c0_56 = arith.constant 0 : index
    %c0_57 = arith.constant 0 : index
    %210 = vector.load %arg11[%c0_56, %c0_57] : memref<200x1xbf16, #tpu.memory_space<vmem>>, vector<200x1xbf16>
    %cst_58 = arith.constant dense<0.000000e+00> : vector<2x1xf32>
    %211 = tpu.matmul %209, %210, %cst_58 {dimension_numbers = #tpu.dot_dimension_numbers<[1], [0], [0], [1], [0, 0, 1, 1], [], []>} : vector<2x200xbf16>, vector<200x1xbf16>, vector<2x1xf32> -> vector<2x1xf32>
    %c0_59 = arith.constant 0 : index
    %c0_60 = arith.constant 0 : index
    %212 = vector.load %arg12[%c0_59, %c0_60] : memref<1x1xf32, #tpu.memory_space<vmem>>, vector<1x1xf32>
    %213 = vector.broadcast %212 : vector<1x1xf32> to vector<2x1xf32>
    %214 = arith.addf %211, %213 : vector<2x1xf32>
    %c0_61 = arith.constant 0 : index
    %c0_62 = arith.constant 0 : index
    %215 = vector.load %arg13[%c0_61, %c0_62] : memref<2x1xf32, #tpu.memory_space<vmem>>, vector<2x1xf32>
    tpu.vector_store %arg13[%c0_61, %c0_62], %214 {strides = array<i32>} : memref<2x1xf32, #tpu.memory_space<vmem>>, vector<2x1xf32>,
    return
  }
  func.func @transform_0(%arg0: i32) -> (i32, i32, i32) {
    %c0_i32 = arith.constant 0 : i32
    %c0_i32_0 = arith.constant 0 : i32
    %c0_i32_1 = arith.constant 0 : i32
    %c0_i32_2 = arith.constant 0 : i32
    return %c0_i32, %c0_i32_0, %c0_i32_1 : i32, i32, i32
  }
  func.func @transform_1(%arg0: i32) -> (i32, i32, i32) {
    %c0_i32 = arith.constant 0 : i32
    %c0_i32_0 = arith.constant 0 : i32
    %c0_i32_1 = arith.constant 0 : i32
    %c0_i32_2 = arith.constant 0 : i32
    return %c0_i32, %c0_i32_0, %c0_i32_1 : i32, i32, i32
  }
  func.func @transform_2(%arg0: i32) -> (i32, i32) {
    %c0_i32 = arith.constant 0 : i32
    %c0_i32_0 = arith.constant 0 : i32
    %c0_i32_1 = arith.constant 0 : i32
    return %c0_i32, %c0_i32_0 : i32, i32
  }
  func.func @transform_3(%arg0: i32) -> (i32, i32) {
    %c0_i32 = arith.constant 0 : i32
    %c0_i32_0 = arith.constant 0 : i32
    %c0_i32_1 = arith.constant 0 : i32
    return %c0_i32, %c0_i32_0 : i32, i32
  }
  func.func @transform_4(%arg0: i32) -> (i32, i32) {
    %c0_i32 = arith.constant 0 : i32
    %c0_i32_0 = arith.constant 0 : i32
    %c0_i32_1 = arith.constant 0 : i32
    return %c0_i32, %c0_i32_0 : i32, i32
  }
  func.func @transform_5(%arg0: i32) -> (i32, i32, i32) {
    %c0_i32 = arith.constant 0 : i32
    %c0_i32_0 = arith.constant 0 : i32
    %c0_i32_1 = arith.constant 0 : i32
    %c0_i32_2 = arith.constant 0 : i32
    return %c0_i32, %c0_i32_0, %c0_i32_1 : i32, i32, i32
  }
  func.func @transform_7(%arg0: i32) -> (i32, i32) {
    %c0_i32 = arith.constant 0 : i32
    %c0_i32_0 = arith.constant 0 : i32
    %c0_i32_1 = arith.constant 0 : i32
    return %c0_i32, %c0_i32_0 : i32, i32
  }
  func.func @transform_9(%arg0: i32) -> (i32, i32) {
    %c0_i32 = arith.constant 0 : i32
    %c0_i32_0 = arith.constant 0 : i32
    %c0_i32_1 = arith.constant 0 : i32
    return %c0_i32, %c0_i32_0 : i32, i32
  }
  func.func @transform_10(%arg0: i32) -> (i32, i32) {
    %c0_i32 = arith.constant 0 : i32
    %c0_i32_0 = arith.constant 0 : i32
    %c0_i32_1 = arith.constant 0 : i32
    return %c0_i32, %c0_i32_0 : i32, i32
  }
  func.func @transform_11(%arg0: i32) -> (i32, i32) {
    %c0_i32 = arith.constant 0 : i32
    %c0_i32_0 = arith.constant 0 : i32
    %c0_i32_1 = arith.constant 0 : i32
    return %c0_i32, %c0_i32_0 : i32, i32
  }
  func.func @transform_12(%arg0: i32) -> (i32, i32) {
    %c0_i32 = arith.constant 0 : i32
    %c0_i32_0 = arith.constant 0 : i32
    %c0_i32_1 = arith.constant 0 : i32
    return %c0_i32, %c0_i32_0 : i32, i32
  }
}

</mosaic_0001>

<llo_original>
// kernel: cnn_model_forward.1
$region0: #{cnn_model_forward.1}
  #allocation0 [shape = 'u32[]', space=smem, size = 0x4, offset = 0x4, fixed_abs, tag = 'smem constant byte address 0x4 - core index']
  #allocation1 [shape = 'u32[144,128]{1,0:T(1,128)}', space=vmem, size = 0x12000, scoped, tag = 'internal scratch']
  #allocation2 [shape = 'bf16[1380,500]{1,0:T(8,128)(2,1)}', space=vmem, size = 0x15a000, scoped, tag = 'scratch operand']
  #allocation3 [shape = 'bf16[500,200]{1,0:T(8,128)(2,1)}', space=vmem, size = 0x3f000, scoped, tag = 'scratch operand']
  #allocation4 [shape = 's32[2]{0}', space=sflag, size = 0x8, scoped, tag = 'scratch operand']
  #allocation5 [shape = 'f32[1,1]{1,0:T(1,128)S(1)}', space=vmem, size = 0x200, scoped, tag = 'scoped memory for cnn_model_forward.1']
  #allocation14 [shape = 's32[]', space=sflag, size = 0x4, offset = 0, fixed_abs, tag = 'sflag constant byte address 0x0 - dummy sync flag']
  #allocation15 [shape = 's32[]', space=sflag, size = 0x4, offset = 0, fixed_abs, tag = 'sflag constant byte address 0x0 - dummy sync flag']
  #allocation16 [shape = 'u32[]', space=smem, size = 0x4, offset = 0x44, fixed_abs, tag = 'smem constant byte address 0x44 - assertion arg 0']
  #allocation17 [shape = 'u32[]', space=smem, size = 0x4, offset = 0x48, fixed_abs, tag = 'smem constant byte address 0x48 - assertion arg 1']
  #allocation18 [shape = 's32[]', space=sflag, size = 0x4, offset = 0, fixed_abs, tag = 'sflag constant byte address 0x0 - dummy sync flag']
  %s0 = inlined_call_operand.vmem [shape: f32[2,100,4], index: 0, kind: input, shape index: {}]
  %s1 = inlined_call_operand.hbm [shape: bf16[5,4,50], index: 1, kind: input, shape index: {}]
  %s2 = inlined_call_operand.hbm [shape: f32[1,50], index: 2, kind: input, shape index: {}]
  %s3 = inlined_call_operand.hbm [shape: f32[1,50], index: 3, kind: input, shape index: {}]
  %s4 = inlined_call_operand.vmem [shape: bf16[98,192], index: 4, kind: input, shape index: {}]
  %s5 = inlined_call_operand.vmem [shape: bf16[3,50,30], index: 5, kind: input, shape index: {}]
  %s6 = inlined_call_operand.hbm [shape: bf16[1380,500], index: 6, kind: input, shape index: {}]
  %s7 = inlined_call_operand.hbm [shape: f32[1,500], index: 7, kind: input, shape index: {}]
  %s8 = inlined_call_operand.vmem [shape: bf16[500,200], index: 8, kind: input, shape index: {}]
  %s9 = inlined_call_operand.hbm [shape: f32[1,200], index: 9, kind: input, shape index: {}]
  %s10 = inlined_call_operand.vmem [shape: bf16[200,1], index: 10, kind: input, shape index: {}]
  %s11 = inlined_call_operand.<no memory space> [shape: f32[1,1], index: 11, kind: input, shape index: {}]
  %s12 = inlined_call_operand.vmem [shape: f32[2,1], index: 12, kind: output, shape index: {}]
  %s13 = sld [smem:[#allocation0]]
  $region108: #{cnn_model_forward.1} parent=0
    _
  %s15 = ssub.s32 1, %s13
  %s16 = scalar_select 0, %s15, %s13
  %v17 = vstv %s11
  %18 = vst [vmem:[#allocation5] sm:$0x1] %v17
  $region1: #{cnn_model_forward.1} parent=0
    #allocation6 [shape = 'u8[5120]{0}', space=vmem, size = 0x1400, scoped, tag = 'input window, operand 1, single buffered']
    #allocation7 [shape = 's32[1]{0}', space=sflag, size = 0x4, scoped, tag = 'scoped memory for cnn_model_forward.1']
    #allocation8 [shape = 'u8[512]{0}', space=vmem, size = 0x400, scoped, tag = 'input window, operand 2, single buffered']
    #allocation9 [shape = 's32[1]{0}', space=sflag, size = 0x4, scoped, tag = 'scoped memory for cnn_model_forward.1']
    #allocation10 [shape = 'u8[512]{0}', space=vmem, size = 0x400, scoped, tag = 'input window, operand 3, single buffered']
    #allocation11 [shape = 'u8[2048]{0}', space=vmem, size = 0x800, scoped, tag = 'input window, operand 7, single buffered']
    #allocation12 [shape = 's32[1]{0}', space=sflag, size = 0x4, scoped, tag = 'scoped memory for cnn_model_forward.1']
    #allocation13 [shape = 'u8[1024]{0}', space=vmem, size = 0x400, scoped, tag = 'input window, operand 9, single buffered']
    %19 = vsyncpa [#allocation7], 0
    %20 = vsyncpa [#allocation9], 0
    %21 = vsyncpa [#allocation12], 0
    // Predicated region
    $region2: #{cnn_model_forward.1} parent=1 // pred_check
      _
    $region3: #{cnn_model_forward.1} parent=1 // pred_check_branch
      %23 = sbr.rel (0) target = $region5
    $region4: #{cnn_model_forward.1} parent=1 // pred_region
      _
    $region5: #{cnn_model_forward.1} parent=1 // pred_fallthru
      _
    // Predicated region
    $region6: #{cnn_model_forward.1} parent=1 // pred_check
      _
    $region7: #{cnn_model_forward.1} parent=1 // pred_check_branch
      %25 = sbr.rel (0) target = $region9
    $region8: #{cnn_model_forward.1} parent=1 // pred_region
      %s27 = ssub.s32 160, 160
      %28 = vsyncadd [#allocation7], %s27
      %s29 = sshll.u32 [#allocation6], 4
      %s30 = int_to_ptr.vmem [resolvable:$true] %s29
      %35 = dma.hbm_to_vmem [thread:$0]  %s1, 160, %s30, [#allocation7], 32, 32, 2
    $region9: #{cnn_model_forward.1} parent=1 // pred_fallthru
      _
    // Predicated region
    $region10: #{cnn_model_forward.1} parent=1 // pred_check
      _
    $region11: #{cnn_model_forward.1} parent=1 // pred_check_branch
      %37 = sbr.rel (0) target = $region13
    $region12: #{cnn_model_forward.1} parent=1 // pred_region
      %s39 = ssub.s32 16, 16
      %40 = vsyncadd [#allocation9], %s39
      %s42 = sshll.u32 [#allocation8], 4
      %s43 = int_to_ptr.vmem [resolvable:$true] %s42
      %45 = dma.hbm_to_vmem [thread:$0]  %s2, 16, %s43, [#allocation9]
    $region13: #{cnn_model_forward.1} parent=1 // pred_fallthru
      _
    // Predicated region
    $region14: #{cnn_model_forward.1} parent=1 // pred_check
      _
    $region15: #{cnn_model_forward.1} parent=1 // pred_check_branch
      %47 = sbr.rel (0) target = $region17
    $region16: #{cnn_model_forward.1} parent=1 // pred_region
      %s49 = ssub.s32 16, 16
      %50 = vsyncadd [#allocation9], %s49
      %s52 = sshll.u32 [#allocation10], 4
      %s53 = int_to_ptr.vmem [resolvable:$true] %s52
      %55 = dma.hbm_to_vmem [thread:$0]  %s3, 16, %s53, [#allocation9]
    $region17: #{cnn_model_forward.1} parent=1 // pred_fallthru
      _
    // Predicated region
    $region18: #{cnn_model_forward.1} parent=1 // pred_check
      _
    $region19: #{cnn_model_forward.1} parent=1 // pred_check_branch
      %57 = sbr.rel (0) target = $region21
    $region20: #{cnn_model_forward.1} parent=1 // pred_region
      _
    $region21: #{cnn_model_forward.1} parent=1 // pred_fallthru
      _
    // Predicated region
    $region22: #{cnn_model_forward.1} parent=1 // pred_check
      _
    $region23: #{cnn_model_forward.1} parent=1 // pred_check_branch
      %59 = sbr.rel (0) target = $region25
    $region24: #{cnn_model_forward.1} parent=1 // pred_region
      _
    $region25: #{cnn_model_forward.1} parent=1 // pred_fallthru
      _
    // Predicated region
    $region26: #{cnn_model_forward.1} parent=1 // pred_check
      _
    $region27: #{cnn_model_forward.1} parent=1 // pred_check_branch
      %61 = sbr.rel (0) target = $region29
    $region28: #{cnn_model_forward.1} parent=1 // pred_region
      %s63 = ssub.s32 64, 64
      %64 = vsyncadd [#allocation12], %s63
      %s66 = sshll.u32 [#allocation11], 4
      %s67 = int_to_ptr.vmem [resolvable:$true] %s66
      %69 = dma.hbm_to_vmem [thread:$0]  %s7, 64, %s67, [#allocation12]
    $region29: #{cnn_model_forward.1} parent=1 // pred_fallthru
      _
    // Predicated region
    $region30: #{cnn_model_forward.1} parent=1 // pred_check
      _
    $region31: #{cnn_model_forward.1} parent=1 // pred_check_branch
      %71 = sbr.rel (0) target = $region33
    $region32: #{cnn_model_forward.1} parent=1 // pred_region
      %s73 = ssub.s32 32, 32
      %74 = vsyncadd [#allocation12], %s73
      %s76 = sshll.u32 [#allocation13], 4
      %s77 = int_to_ptr.vmem [resolvable:$true] %s76
      %79 = dma.hbm_to_vmem [thread:$0]  %s9, 32, %s77, [#allocation12]
    $region33: #{cnn_model_forward.1} parent=1 // pred_fallthru
      _
    // Predicated region
    $region34: #{cnn_model_forward.1} parent=1 // pred_check
      _
    $region35: #{cnn_model_forward.1} parent=1 // pred_check_branch
      %81 = sbr.rel (0) target = $region37
    $region36: #{cnn_model_forward.1} parent=1 // pred_region
      _
    $region37: #{cnn_model_forward.1} parent=1 // pred_fallthru
      _
    // Predicated region
    $region38: #{cnn_model_forward.1} parent=1 // pred_check
      _
    $region39: #{cnn_model_forward.1} parent=1 // pred_check_branch
      %83 = sbr.rel (0) target = $region41
    $region40: #{cnn_model_forward.1} parent=1 // pred_region
      _
    $region41: #{cnn_model_forward.1} parent=1 // pred_fallthru
      _
    // Predicated region
    $region42: #{cnn_model_forward.1} parent=1 // pred_check
      _
    $region43: #{cnn_model_forward.1} parent=1 // pred_check_branch
      %85 = sbr.rel (0) target = $region45
    $region44: #{cnn_model_forward.1} parent=1 // pred_region
      %86 = dma.done [#allocation7], 160
    $region45: #{cnn_model_forward.1} parent=1 // pred_fallthru
      _
    // Predicated region
    $region46: #{cnn_model_forward.1} parent=1 // pred_check
      _
    $region47: #{cnn_model_forward.1} parent=1 // pred_check_branch
      %88 = sbr.rel (0) target = $region49
    $region48: #{cnn_model_forward.1} parent=1 // pred_region
      %89 = dma.done [#allocation9], 16
    $region49: #{cnn_model_forward.1} parent=1 // pred_fallthru
      _
    // Predicated region
    $region50: #{cnn_model_forward.1} parent=1 // pred_check
      _
    $region51: #{cnn_model_forward.1} parent=1 // pred_check_branch
      %91 = sbr.rel (0) target = $region53
    $region52: #{cnn_model_forward.1} parent=1 // pred_region
      %92 = dma.done [#allocation9], 16
    $region53: #{cnn_model_forward.1} parent=1 // pred_fallthru
      _
    // Predicated region
    $region54: #{cnn_model_forward.1} parent=1 // pred_check
      _
    $region55: #{cnn_model_forward.1} parent=1 // pred_check_branch
      %94 = sbr.rel (0) target = $region57
    $region56: #{cnn_model_forward.1} parent=1 // pred_region
      %95 = dma.done [#allocation12], 64
    $region57: #{cnn_model_forward.1} parent=1 // pred_fallthru
      _
    // Predicated region
    $region58: #{cnn_model_forward.1} parent=1 // pred_check
      _
    $region59: #{cnn_model_forward.1} parent=1 // pred_check_branch
      %97 = sbr.rel (0) target = $region61
    $region60: #{cnn_model_forward.1} parent=1 // pred_region
      %98 = dma.done [#allocation12], 32
    $region61: #{cnn_model_forward.1} parent=1 // pred_fallthru
      _
    // Predicated region
    $region62: #{cnn_model_forward.1} parent=1 // pred_check
      _
    $region63: #{cnn_model_forward.1} parent=1 // pred_check_branch
      %101 = sbr.rel target = $region65
    $region64: #{cnn_model_forward.1} parent=1 // pred_region
      %102 = sst [smem:[#allocation16]] [#allocation15]
      %103 = sst [smem:[#allocation17]] [#allocation14]
    $region65: #{cnn_model_forward.1} parent=1 // pred_fallthru
      _
    %105 = shalt.err (0)
    %s107 = sshll.u32 [#allocation2], 4
    %s108 = int_to_ptr.vmem [resolvable:$true] %s107
    %110 = dma.hbm_to_vmem [thread:$0]  %s6, 44288, %s108, [#allocation4]
    %s111 = scalar_lea.sflag [#allocation4], 1
    %p113 = scmp.lt.u32.totalorder 504, 8
    %p114 = pneg %p113
    // Predicated region
    $region66: #{cnn_model_forward.1} parent=1 // pred_check
      _
    $region67: #{cnn_model_forward.1} parent=1 // pred_check_branch
      %116 = sbr.rel (%p113) target = $region69
    $region68: #{cnn_model_forward.1} parent=1 // pred_region
      %s132 = sand.u32 504, 7
      %p133 = scmp.eq.s32.totalorder %s132, 0
      // Predicated region
      $region81: #{cnn_model_forward.1} parent=68 // pred_check
        %p134 = pneg %p133
      $region82: #{cnn_model_forward.1} parent=68 // pred_check_branch
        %136 = sbr.rel (%p134) target = $region84
      $region83: #{cnn_model_forward.1} parent=68 // pred_region
        loop: start=0, step=1, limit=1
        $region85: #{cnn_model_forward.1} parent=83 // loop_pre_header
          _
        $region86: #{cnn_model_forward.1} parent=83 // loop_header
          %s138 = sphi 0, %s142
          %p139 = scmp.ge.s32.totalorder %s138, 1
          %s143 = sphi %s8, %s8
          %s144 = sphi [#allocation3], [#allocation3]
        $region87: #{cnn_model_forward.1} parent=83 // loop_header_branch
          %141 = sbr.rel (%p139) target = $region91
        $region88: #{cnn_model_forward.1} parent=83 // loop_body
          %v145 = vld [vmem:[%s143] sm:$0xff]
          %146 = vst [vmem:[%s144] sm:$0xff] %v145
          %v147 = vld [vmem:[%s143 + $0x8] sm:$0xff]
          %148 = vst [vmem:[%s144 + $0x8] sm:$0xff] %v147
          %v149 = vld [vmem:[%s143 + $0x10] sm:$0xff]
          %150 = vst [vmem:[%s144 + $0x10] sm:$0xff] %v149
          %v151 = vld [vmem:[%s143 + $0x18] sm:$0xff]
          %152 = vst [vmem:[%s144 + $0x18] sm:$0xff] %v151
          %v153 = vld [vmem:[%s143 + $0x20] sm:$0xff]
          %154 = vst [vmem:[%s144 + $0x20] sm:$0xff] %v153
          %v155 = vld [vmem:[%s143 + $0x28] sm:$0xff]
          %156 = vst [vmem:[%s144 + $0x28] sm:$0xff] %v155
          %v157 = vld [vmem:[%s143 + $0x30] sm:$0xff]
          %158 = vst [vmem:[%s144 + $0x30] sm:$0xff] %v157
          %v159 = vld [vmem:[%s143 + $0x38] sm:$0xff]
          %160 = vst [vmem:[%s144 + $0x38] sm:$0xff] %v159
          %v161 = vld [vmem:[%s143 + $0x40] sm:$0xff]
          %162 = vst [vmem:[%s144 + $0x40] sm:$0xff] %v161
          %v163 = vld [vmem:[%s143 + $0x48] sm:$0xff]
          %164 = vst [vmem:[%s144 + $0x48] sm:$0xff] %v163
          %v165 = vld [vmem:[%s143 + $0x50] sm:$0xff]
          %166 = vst [vmem:[%s144 + $0x50] sm:$0xff] %v165
          %v167 = vld [vmem:[%s143 + $0x58] sm:$0xff]
          %168 = vst [vmem:[%s144 + $0x58] sm:$0xff] %v167
          %v169 = vld [vmem:[%s143 + $0x60] sm:$0xff]
          %170 = vst [vmem:[%s144 + $0x60] sm:$0xff] %v169
          %v171 = vld [vmem:[%s143 + $0x68] sm:$0xff]
          %172 = vst [vmem:[%s144 + $0x68] sm:$0xff] %v171
          %v173 = vld [vmem:[%s143 + $0x70] sm:$0xff]
          %174 = vst [vmem:[%s144 + $0x70] sm:$0xff] %v173
          %v175 = vld [vmem:[%s143 + $0x78] sm:$0xff]
          %176 = vst [vmem:[%s144 + $0x78] sm:$0xff] %v175
          %v177 = vld [vmem:[%s143 + $0x80] sm:$0xff]
          %178 = vst [vmem:[%s144 + $0x80] sm:$0xff] %v177
          %v179 = vld [vmem:[%s143 + $0x88] sm:$0xff]
          %180 = vst [vmem:[%s144 + $0x88] sm:$0xff] %v179
          %v181 = vld [vmem:[%s143 + $0x90] sm:$0xff]
          %182 = vst [vmem:[%s144 + $0x90] sm:$0xff] %v181
          %v183 = vld [vmem:[%s143 + $0x98] sm:$0xff]
          %184 = vst [vmem:[%s144 + $0x98] sm:$0xff] %v183
          %v185 = vld [vmem:[%s143 + $0xa0] sm:$0xff]
          %186 = vst [vmem:[%s144 + $0xa0] sm:$0xff] %v185
          %v187 = vld [vmem:[%s143 + $0xa8] sm:$0xff]
          %188 = vst [vmem:[%s144 + $0xa8] sm:$0xff] %v187
          %v189 = vld [vmem:[%s143 + $0xb0] sm:$0xff]
          %190 = vst [vmem:[%s144 + $0xb0] sm:$0xff] %v189
          %v191 = vld [vmem:[%s143 + $0xb8] sm:$0xff]
          %192 = vst [vmem:[%s144 + $0xb8] sm:$0xff] %v191
          %v193 = vld [vmem:[%s143 + $0xc0] sm:$0xff]
          %194 = vst [vmem:[%s144 + $0xc0] sm:$0xff] %v193
          %v195 = vld [vmem:[%s143 + $0xc8] sm:$0xff]
          %196 = vst [vmem:[%s144 + $0xc8] sm:$0xff] %v195
          %v197 = vld [vmem:[%s143 + $0xd0] sm:$0xff]
          %198 = vst [vmem:[%s144 + $0xd0] sm:$0xff] %v197
          %v199 = vld [vmem:[%s143 + $0xd8] sm:$0xff]
          %200 = vst [vmem:[%s144 + $0xd8] sm:$0xff] %v199
          %v201 = vld [vmem:[%s143 + $0xe0] sm:$0xff]
          %202 = vst [vmem:[%s144 + $0xe0] sm:$0xff] %v201
          %v203 = vld [vmem:[%s143 + $0xe8] sm:$0xff]
          %204 = vst [vmem:[%s144 + $0xe8] sm:$0xff] %v203
          %v205 = vld [vmem:[%s143 + $0xf0] sm:$0xff]
          %206 = vst [vmem:[%s144 + $0xf0] sm:$0xff] %v205
          %v207 = vld [vmem:[%s143 + $0xf8] sm:$0xff]
          %208 = vst [vmem:[%s144 + $0xf8] sm:$0xff] %v207
          %v209 = vld [vmem:[%s143 + $0x100] sm:$0xff]
          %210 = vst [vmem:[%s144 + $0x100] sm:$0xff] %v209
          %v211 = vld [vmem:[%s143 + $0x108] sm:$0xff]
          %212 = vst [vmem:[%s144 + $0x108] sm:$0xff] %v211
          %v213 = vld [vmem:[%s143 + $0x110] sm:$0xff]
          %214 = vst [vmem:[%s144 + $0x110] sm:$0xff] %v213
          %v215 = vld [vmem:[%s143 + $0x118] sm:$0xff]
          %216 = vst [vmem:[%s144 + $0x118] sm:$0xff] %v215
          %v217 = vld [vmem:[%s143 + $0x120] sm:$0xff]
          %218 = vst [vmem:[%s144 + $0x120] sm:$0xff] %v217
          %v219 = vld [vmem:[%s143 + $0x128] sm:$0xff]
          %220 = vst [vmem:[%s144 + $0x128] sm:$0xff] %v219
          %v221 = vld [vmem:[%s143 + $0x130] sm:$0xff]
          %222 = vst [vmem:[%s144 + $0x130] sm:$0xff] %v221
          %v223 = vld [vmem:[%s143 + $0x138] sm:$0xff]
          %224 = vst [vmem:[%s144 + $0x138] sm:$0xff] %v223
          %v225 = vld [vmem:[%s143 + $0x140] sm:$0xff]
          %226 = vst [vmem:[%s144 + $0x140] sm:$0xff] %v225
          %v227 = vld [vmem:[%s143 + $0x148] sm:$0xff]
          %228 = vst [vmem:[%s144 + $0x148] sm:$0xff] %v227
          %v229 = vld [vmem:[%s143 + $0x150] sm:$0xff]
          %230 = vst [vmem:[%s144 + $0x150] sm:$0xff] %v229
          %v231 = vld [vmem:[%s143 + $0x158] sm:$0xff]
          %232 = vst [vmem:[%s144 + $0x158] sm:$0xff] %v231
          %v233 = vld [vmem:[%s143 + $0x160] sm:$0xff]
          %234 = vst [vmem:[%s144 + $0x160] sm:$0xff] %v233
          %v235 = vld [vmem:[%s143 + $0x168] sm:$0xff]
          %236 = vst [vmem:[%s144 + $0x168] sm:$0xff] %v235
          %v237 = vld [vmem:[%s143 + $0x170] sm:$0xff]
          %238 = vst [vmem:[%s144 + $0x170] sm:$0xff] %v237
          %v239 = vld [vmem:[%s143 + $0x178] sm:$0xff]
          %240 = vst [vmem:[%s144 + $0x178] sm:$0xff] %v239
          %v241 = vld [vmem:[%s143 + $0x180] sm:$0xff]
          %242 = vst [vmem:[%s144 + $0x180] sm:$0xff] %v241
          %v243 = vld [vmem:[%s143 + $0x188] sm:$0xff]
          %244 = vst [vmem:[%s144 + $0x188] sm:$0xff] %v243
          %v245 = vld [vmem:[%s143 + $0x190] sm:$0xff]
          %246 = vst [vmem:[%s144 + $0x190] sm:$0xff] %v245
          %v247 = vld [vmem:[%s143 + $0x198] sm:$0xff]
          %248 = vst [vmem:[%s144 + $0x198] sm:$0xff] %v247
          %v249 = vld [vmem:[%s143 + $0x1a0] sm:$0xff]
          %250 = vst [vmem:[%s144 + $0x1a0] sm:$0xff] %v249
          %v251 = vld [vmem:[%s143 + $0x1a8] sm:$0xff]
          %252 = vst [vmem:[%s144 + $0x1a8] sm:$0xff] %v251
          %v253 = vld [vmem:[%s143 + $0x1b0] sm:$0xff]
          %254 = vst [vmem:[%s144 + $0x1b0] sm:$0xff] %v253
          %v255 = vld [vmem:[%s143 + $0x1b8] sm:$0xff]
          %256 = vst [vmem:[%s144 + $0x1b8] sm:$0xff] %v255
          %v257 = vld [vmem:[%s143 + $0x1c0] sm:$0xff]
          %258 = vst [vmem:[%s144 + $0x1c0] sm:$0xff] %v257
          %v259 = vld [vmem:[%s143 + $0x1c8] sm:$0xff]
          %260 = vst [vmem:[%s144 + $0x1c8] sm:$0xff] %v259
          %v261 = vld [vmem:[%s143 + $0x1d0] sm:$0xff]
          %262 = vst [vmem:[%s144 + $0x1d0] sm:$0xff] %v261
          %v263 = vld [vmem:[%s143 + $0x1d8] sm:$0xff]
          %264 = vst [vmem:[%s144 + $0x1d8] sm:$0xff] %v263
          %v265 = vld [vmem:[%s143 + $0x1e0] sm:$0xff]
          %266 = vst [vmem:[%s144 + $0x1e0] sm:$0xff] %v265
          %v267 = vld [vmem:[%s143 + $0x1e8] sm:$0xff]
          %268 = vst [vmem:[%s144 + $0x1e8] sm:$0xff] %v267
          %v269 = vld [vmem:[%s143 + $0x1f0] sm:$0xff]
          %270 = vst [vmem:[%s144 + $0x1f0] sm:$0xff] %v269
        $region89: #{cnn_model_forward.1} parent=83 // loop_footer
          %s142 = sadd.s32 1, %s138
        $region90: #{cnn_model_forward.1} parent=83 // loop_footer_branch
          %137 = sbr.rel target = $region86
        $region91: #{cnn_model_forward.1} parent=83 // loop_exit
          _
      $region84: #{cnn_model_forward.1} parent=68 // pred_fallthru
        _
      %p271 = pneg %p133
      // Predicated region
      $region92: #{cnn_model_forward.1} parent=68 // pred_check
        _
      $region93: #{cnn_model_forward.1} parent=68 // pred_check_branch
        %273 = sbr.rel (%p133) target = $region95
      $region94: #{cnn_model_forward.1} parent=68 // pred_region
        %s274 = sand.u32 504, 7
      $region95: #{cnn_model_forward.1} parent=68 // pred_fallthru
        _
    $region69: #{cnn_model_forward.1} parent=1 // pred_fallthru
      _
    // Predicated region
    $region70: #{cnn_model_forward.1} parent=1 // pred_check
      %p117 = pneg %p113
    $region71: #{cnn_model_forward.1} parent=1 // pred_check_branch
      %119 = sbr.rel (%p117) target = $region73
    $region72: #{cnn_model_forward.1} parent=1 // pred_region
      %s120 = sshll.u32 1, 504
      %s121 = ssub.s32 %s120, 1
      loop: start=0, step=1, limit=1
      $region74: #{cnn_model_forward.1} parent=72 // loop_pre_header
        _
      $region75: #{cnn_model_forward.1} parent=72 // loop_header
        %s123 = sphi 0, %s127
        %p124 = scmp.ge.s32.totalorder %s123, 1
        %s128 = sphi %s8, %s8
        %s129 = sphi [#allocation3], [#allocation3]
      $region76: #{cnn_model_forward.1} parent=72 // loop_header_branch
        %126 = sbr.rel (%p124) target = $region80
      $region77: #{cnn_model_forward.1} parent=72 // loop_body
        %v130 = vld [vmem:[%s128] sm:%s121]
        %131 = vst [vmem:[%s129] sm:%s121] %v130
      $region78: #{cnn_model_forward.1} parent=72 // loop_footer
        %s127 = sadd.s32 1, %s123
      $region79: #{cnn_model_forward.1} parent=72 // loop_footer_branch
        %122 = sbr.rel target = $region75
      $region80: #{cnn_model_forward.1} parent=72 // loop_exit
        _
    $region73: #{cnn_model_forward.1} parent=1 // pred_fallthru
      _
    // Predicated region
    $region96: #{cnn_model_forward.1} parent=1 // pred_check
      _
    $region97: #{cnn_model_forward.1} parent=1 // pred_check_branch
      %277 = sbr.rel (0) target = $region99
    $region98: #{cnn_model_forward.1} parent=1 // pred_region
      %278 = vsyncadd %s111, 8064
    $region99: #{cnn_model_forward.1} parent=1 // pred_fallthru
      _
    %v279 = vld [vmem:[%s0] sm:$0xff]
    %v280 = vld [vmem:[%s0 + $0x8] sm:$0xff]
    %v281 = vld [vmem:[%s0 + $0x10] sm:$0xff]
    %v282 = vld [vmem:[%s0 + $0x18] sm:$0xff]
    %v283 = vld [vmem:[%s0 + $0x20] sm:$0xff]
    %v284 = vld [vmem:[%s0 + $0x28] sm:$0xff]
    %v285 = vld [vmem:[%s0 + $0x30] sm:$0xff]
    %v286 = vld [vmem:[%s0 + $0x38] sm:$0xff]
    %v287 = vld [vmem:[%s0 + $0x40] sm:$0xff]
    %v288 = vld [vmem:[%s0 + $0x48] sm:$0xff]
    %v289 = vld [vmem:[%s0 + $0x50] sm:$0xff]
    %v290 = vld [vmem:[%s0 + $0x58] sm:$0xff]
    %v291 = vld [vmem:[%s0 + $0x60] sm:$0xf]
    %v292 = vld [vmem:[%s0 + $0x68] sm:$0xff]
    %v293 = vld [vmem:[%s0 + $0x70] sm:$0xff]
    %v294 = vld [vmem:[%s0 + $0x78] sm:$0xff]
    %v295 = vld [vmem:[%s0 + $0x80] sm:$0xff]
    %v296 = vld [vmem:[%s0 + $0x88] sm:$0xff]
    %v297 = vld [vmem:[%s0 + $0x90] sm:$0xff]
    %v298 = vld [vmem:[%s0 + $0x98] sm:$0xff]
    %v299 = vld [vmem:[%s0 + $0xa0] sm:$0xff]
    %v300 = vld [vmem:[%s0 + $0xa8] sm:$0xff]
    %v301 = vld [vmem:[%s0 + $0xb0] sm:$0xff]
    %v302 = vld [vmem:[%s0 + $0xb8] sm:$0xff]
    %v303 = vld [vmem:[%s0 + $0xc0] sm:$0xff]
    %v304 = vld [vmem:[%s0 + $0xc8] sm:$0xf]
    %v305 = vpack.c.bf16 %v280, %v279
    %v306 = vpack.c.bf16 %v282, %v281
    %v307 = vpack.c.bf16 %v284, %v283
    %v308 = vpack.c.bf16 %v286, %v285
    %v309 = vpack.c.bf16 %v288, %v287
    %v310 = vpack.c.bf16 %v290, %v289
    %v311 = vpack.c.bf16 %v293, %v292
    %v312 = vpack.c.bf16 %v295, %v294
    %v313 = vpack.c.bf16 %v297, %v296
    %v314 = vpack.c.bf16 %v299, %v298
    %v315 = vpack.c.bf16 %v301, %v300
    %v316 = vpack.c.bf16 %v303, %v302
    %v317 = vld [vmem:[#allocation6] sm:$0x3]
    %vm344 = vcmask 1046528
    %v345 = vrot.slane %v279, 1
    %v346 = vrot.slane %v280, 1
    %v347 = vsel %vm344, %v345, %v346
    %v348 = vrot.slane %v281, 1
    %v349 = vsel %vm344, %v346, %v348
    %v350 = vrot.slane %v282, 1
    %v351 = vsel %vm344, %v348, %v350
    %v352 = vrot.slane %v283, 1
    %v353 = vsel %vm344, %v350, %v352
    %v354 = vrot.slane %v284, 1
    %v355 = vsel %vm344, %v352, %v354
    %v356 = vrot.slane %v285, 1
    %v357 = vsel %vm344, %v354, %v356
    %v358 = vrot.slane %v286, 1
    %v359 = vsel %vm344, %v356, %v358
    %v360 = vrot.slane %v287, 1
    %v361 = vsel %vm344, %v358, %v360
    %v362 = vrot.slane %v288, 1
    %v363 = vsel %vm344, %v360, %v362
    %v364 = vrot.slane %v289, 1
    %v365 = vsel %vm344, %v362, %v364
    %v366 = vrot.slane %v290, 1
    %v367 = vsel %vm344, %v364, %v366
    %v368 = vrot.slane %v291, 1
    %v369 = vsel %vm344, %v366, %v368
    %v370 = vrot.slane %v292, 1
    %v371 = vrot.slane %v293, 1
    %v372 = vsel %vm344, %v370, %v371
    %v373 = vrot.slane %v294, 1
    %v374 = vsel %vm344, %v371, %v373
    %v375 = vrot.slane %v295, 1
    %v376 = vsel %vm344, %v373, %v375
    %v377 = vrot.slane %v296, 1
    %v378 = vsel %vm344, %v375, %v377
    %v379 = vrot.slane %v297, 1
    %v380 = vsel %vm344, %v377, %v379
    %v381 = vrot.slane %v298, 1
    %v382 = vsel %vm344, %v379, %v381
    %v383 = vrot.slane %v299, 1
    %v384 = vsel %vm344, %v381, %v383
    %v385 = vrot.slane %v300, 1
    %v386 = vsel %vm344, %v383, %v385
    %v387 = vrot.slane %v301, 1
    %v388 = vsel %vm344, %v385, %v387
    %v389 = vrot.slane %v302, 1
    %v390 = vsel %vm344, %v387, %v389
    %v391 = vrot.slane %v303, 1
    %v392 = vsel %vm344, %v389, %v391
    %v393 = vrot.slane %v304, 1
    %v394 = vsel %vm344, %v391, %v393
    %v419 = vpack.c.bf16 %v349, %v347
    %v420 = vpack.c.bf16 %v353, %v351
    %v421 = vpack.c.bf16 %v357, %v355
    %v422 = vpack.c.bf16 %v361, %v359
    %v423 = vpack.c.bf16 %v365, %v363
    %v424 = vpack.c.bf16 %v369, %v367
    %v425 = vpack.c.bf16 %v374, %v372
    %v426 = vpack.c.bf16 %v378, %v376
    %v427 = vpack.c.bf16 %v382, %v380
    %v428 = vpack.c.bf16 %v386, %v384
    %v429 = vpack.c.bf16 %v390, %v388
    %v430 = vpack.c.bf16 %v394, %v392
    %s431 = scalar_lea.vmem [#allocation6], 2
    %v432 = vld [vmem:[%s431] sm:$0x3]
    %vm433 = vcmask 31744
    %v435 = vsel %vm433, %v419, 0
    %v438 = vsel %vm433, %v420, 0
    %v441 = vsel %vm433, %v421, 0
    %v444 = vsel %vm433, %v422, 0
    %v447 = vsel %vm433, %v423, 0
    %v450 = vsel %vm433, %v424, 0
    %v453 = vsel %vm433, %v425, 0
    %v456 = vsel %vm433, %v426, 0
    %v459 = vsel %vm433, %v427, 0
    %v462 = vsel %vm433, %v428, 0
    %v465 = vsel %vm433, %v429, 0
    %v468 = vsel %vm433, %v430, 0
    %vm470 = vcmask 1041408
    %v472 = vsel %vm470, %v432, 0
    %474 = vmatprep.subr.bf16.mxu0 0
    %475 = vmatpush1.bf16.msra.mxu0 0
    %476 = vmatprep.subr.bf16.mxu0 0
    %477 = vmatpush1.bf16.msra.mxu0 0
    %478 = vmatprep.subr.bf16.mxu0 0
    %479 = vmatpush1.bf16.msra.mxu0 0
    %480 = vmatprep.subr.bf16.mxu0 0
    %481 = vmatpush1.bf16.msra.mxu0 0
    %482 = vmatprep.subr.bf16.mxu0 0
    %483 = vmatpush1.bf16.msra.mxu0 0
    %484 = vmatprep.subr.bf16.mxu0 0
    %485 = vmatpush1.bf16.msra.mxu0 0
    %486 = vmatprep.subr.bf16.mxu0 0
    %487 = vmatpush1.bf16.msra.mxu0 0
    %488 = vmatprep.subr.bf16.mxu0 0
    %489 = vmatpush1.bf16.msra.mxu0 %v472
    %490 = vmatprep.subr.bf16.mxu0 0
    %491 = vmatpush2.bf16.msra.mxu0 0
    %492 = vmatprep.subr.bf16.mxu0 0
    %493 = vmatpush2.bf16.msra.mxu0 0
    %494 = vmatprep.subr.bf16.mxu0 0
    %495 = vmatpush2.bf16.msra.mxu0 0
    %496 = vmatprep.subr.bf16.mxu0 0
    %497 = vmatpush2.bf16.msra.mxu0 0
    %498 = vmatprep.subr.bf16.mxu0 0
    %499 = vmatpush2.bf16.msra.mxu0 0
    %500 = vmatprep.subr.bf16.mxu0 0
    %501 = vmatpush2.bf16.msra.mxu0 0
    %502 = vmatprep.subr.bf16.mxu0 0
    %503 = vmatpush2.bf16.msra.mxu0 0
    %504 = vmatprep.subr.bf16.mxu0 0
    %505 = vmatpush2.bf16.msra.mxu0 0
    %506 = vmatprep.mubr.bf16.mxu0 0
    %507 = vmatmul.mubr.bf16.gmra.mxu0 %v435
    %v508 = vpop.f32.mrf.mxu0
    %v509 = vadd.f32 0.0, %v508
    %v510 = vpop.f32.mrf.mxu0
    %v511 = vpop.f32.mrf.mxu0
    %v512 = vadd.f32 0.0, %v511
    %v513 = vpop.f32.mrf.mxu0
    %514 = vmatprep.mubr.bf16.mxu0 0
    %515 = vmatmul.mubr.bf16.gmra.mxu0 %v438
    %v516 = vpop.f32.mrf.mxu0
    %v517 = vadd.f32 0.0, %v516
    %v518 = vpop.f32.mrf.mxu0
    %v519 = vpop.f32.mrf.mxu0
    %v520 = vadd.f32 0.0, %v519
    %v521 = vpop.f32.mrf.mxu0
    %522 = vmatprep.mubr.bf16.mxu0 0
    %523 = vmatmul.mubr.bf16.gmra.mxu0 %v441
    %v524 = vpop.f32.mrf.mxu0
    %v525 = vadd.f32 0.0, %v524
    %v526 = vpop.f32.mrf.mxu0
    %v527 = vpop.f32.mrf.mxu0
    %v528 = vadd.f32 0.0, %v527
    %v529 = vpop.f32.mrf.mxu0
    %530 = vmatprep.mubr.bf16.mxu0 0
    %531 = vmatmul.mubr.bf16.gmra.mxu0 %v444
    %v532 = vpop.f32.mrf.mxu0
    %v533 = vadd.f32 0.0, %v532
    %v534 = vpop.f32.mrf.mxu0
    %v535 = vpop.f32.mrf.mxu0
    %v536 = vadd.f32 0.0, %v535
    %v537 = vpop.f32.mrf.mxu0
    %538 = vmatprep.mubr.bf16.mxu0 0
    %539 = vmatmul.mubr.bf16.gmra.mxu0 %v447
    %v540 = vpop.f32.mrf.mxu0
    %v541 = vadd.f32 0.0, %v540
    %v542 = vpop.f32.mrf.mxu0
    %v543 = vpop.f32.mrf.mxu0
    %v544 = vadd.f32 0.0, %v543
    %v545 = vpop.f32.mrf.mxu0
    %546 = vmatprep.mubr.bf16.mxu0 0
    %547 = vmatmul.mubr.bf16.gmra.mxu0 %v450
    %v548 = vpop.f32.mrf.mxu0
    %v549 = vadd.f32 0.0, %v548
    %v550 = vpop.f32.mrf.mxu0
    %v551 = vpop.f32.mrf.mxu0
    %v552 = vadd.f32 0.0, %v551
    %v553 = vpop.f32.mrf.mxu0
    %554 = vmatprep.mubr.bf16.mxu0 0
    %555 = vmatmul.mubr.bf16.gmra.mxu0 %v453
    %v556 = vpop.f32.mrf.mxu0
    %v557 = vadd.f32 0.0, %v556
    %v558 = vpop.f32.mrf.mxu0
    %v559 = vpop.f32.mrf.mxu0
    %v560 = vadd.f32 0.0, %v559
    %v561 = vpop.f32.mrf.mxu0
    %562 = vmatprep.mubr.bf16.mxu0 0
    %563 = vmatmul.mubr.bf16.gmra.mxu0 %v456
    %v564 = vpop.f32.mrf.mxu0
    %v565 = vadd.f32 0.0, %v564
    %v566 = vpop.f32.mrf.mxu0
    %v567 = vpop.f32.mrf.mxu0
    %v568 = vadd.f32 0.0, %v567
    %v569 = vpop.f32.mrf.mxu0
    %570 = vmatprep.mubr.bf16.mxu0 0
    %571 = vmatmul.mubr.bf16.gmra.mxu0 %v459
    %v572 = vpop.f32.mrf.mxu0
    %v573 = vadd.f32 0.0, %v572
    %v574 = vpop.f32.mrf.mxu0
    %v575 = vpop.f32.mrf.mxu0
    %v576 = vadd.f32 0.0, %v575
    %v577 = vpop.f32.mrf.mxu0
    %578 = vmatprep.mubr.bf16.mxu0 0
    %579 = vmatmul.mubr.bf16.gmra.mxu0 %v462
    %v580 = vpop.f32.mrf.mxu0
    %v581 = vadd.f32 0.0, %v580
    %v582 = vpop.f32.mrf.mxu0
    %v583 = vpop.f32.mrf.mxu0
    %v584 = vadd.f32 0.0, %v583
    %v585 = vpop.f32.mrf.mxu0
    %586 = vmatprep.mubr.bf16.mxu0 0
    %587 = vmatmul.mubr.bf16.gmra.mxu0 %v465
    %v588 = vpop.f32.mrf.mxu0
    %v589 = vadd.f32 0.0, %v588
    %v590 = vpop.f32.mrf.mxu0
    %v591 = vpop.f32.mrf.mxu0
    %v592 = vadd.f32 0.0, %v591
    %v593 = vpop.f32.mrf.mxu0
    %594 = vmatprep.mubr.bf16.mxu0 0
    %595 = vmatmul.mubr.bf16.gmra.mxu0 %v468
    %v596 = vpop.f32.mrf.mxu0
    %v597 = vadd.f32 0.0, %v596
    %v598 = vpop.f32.mrf.mxu0
    %v599 = vpop.f32.mrf.mxu0
    %v600 = vadd.f32 0.0, %v599
    %v601 = vpop.f32.mrf.mxu0
    %602 = vdwg.mxu0
    %v604 = vsel %vm433, %v305, 0
    %v607 = vsel %vm433, %v306, 0
    %v610 = vsel %vm433, %v307, 0
    %v613 = vsel %vm433, %v308, 0
    %v616 = vsel %vm433, %v309, 0
    %v619 = vsel %vm433, %v310, 0
    %v622 = vsel %vm433, %v311, 0
    %v625 = vsel %vm433, %v312, 0
    %v628 = vsel %vm433, %v313, 0
    %v631 = vsel %vm433, %v314, 0
    %v634 = vsel %vm433, %v315, 0
    %v637 = vsel %vm433, %v316, 0
    %v640 = vsel %vm470, %v317, 0
    %642 = vmatprep.subr.bf16.mxu0 0
    %643 = vmatpush1.bf16.msra.mxu0 0
    %644 = vmatprep.subr.bf16.mxu0 0
    %645 = vmatpush1.bf16.msra.mxu0 0
    %646 = vmatprep.subr.bf16.mxu0 0
    %647 = vmatpush1.bf16.msra.mxu0 0
    %648 = vmatprep.subr.bf16.mxu0 0
    %649 = vmatpush1.bf16.msra.mxu0 0
    %650 = vmatprep.subr.bf16.mxu0 0
    %651 = vmatpush1.bf16.msra.mxu0 0
    %652 = vmatprep.subr.bf16.mxu0 0
    %653 = vmatpush1.bf16.msra.mxu0 0
    %654 = vmatprep.subr.bf16.mxu0 0
    %655 = vmatpush1.bf16.msra.mxu0 0
    %656 = vmatprep.subr.bf16.mxu0 0
    %657 = vmatpush1.bf16.msra.mxu0 %v640
    %658 = vmatprep.subr.bf16.mxu0 0
    %659 = vmatpush2.bf16.msra.mxu0 0
    %660 = vmatprep.subr.bf16.mxu0 0
    %661 = vmatpush2.bf16.msra.mxu0 0
    %662 = vmatprep.subr.bf16.mxu0 0
    %663 = vmatpush2.bf16.msra.mxu0 0
    %664 = vmatprep.subr.bf16.mxu0 0
    %665 = vmatpush2.bf16.msra.mxu0 0
    %666 = vmatprep.subr.bf16.mxu0 0
    %667 = vmatpush2.bf16.msra.mxu0 0
    %668 = vmatprep.subr.bf16.mxu0 0
    %669 = vmatpush2.bf16.msra.mxu0 0
    %670 = vmatprep.subr.bf16.mxu0 0
    %671 = vmatpush2.bf16.msra.mxu0 0
    %672 = vmatprep.subr.bf16.mxu0 0
    %673 = vmatpush2.bf16.msra.mxu0 0
    %674 = vmatprep.mubr.bf16.mxu0 0
    %675 = vmatmul.mubr.bf16.gmra.mxu0 %v604
    %v676 = vpop.f32.mrf.mxu0
    %v677 = vadd.f32 %v509, %v676
    %v678 = vpop.f32.mrf.mxu0
    %v679 = vpop.f32.mrf.mxu0
    %v680 = vadd.f32 %v512, %v679
    %v681 = vpop.f32.mrf.mxu0
    %682 = vmatprep.mubr.bf16.mxu0 0
    %683 = vmatmul.mubr.bf16.gmra.mxu0 %v607
    %v684 = vpop.f32.mrf.mxu0
    %v685 = vadd.f32 %v517, %v684
    %v686 = vpop.f32.mrf.mxu0
    %v687 = vpop.f32.mrf.mxu0
    %v688 = vadd.f32 %v520, %v687
    %v689 = vpop.f32.mrf.mxu0
    %690 = vmatprep.mubr.bf16.mxu0 0
    %691 = vmatmul.mubr.bf16.gmra.mxu0 %v610
    %v692 = vpop.f32.mrf.mxu0
    %v693 = vadd.f32 %v525, %v692
    %v694 = vpop.f32.mrf.mxu0
    %v695 = vpop.f32.mrf.mxu0
    %v696 = vadd.f32 %v528, %v695
    %v697 = vpop.f32.mrf.mxu0
    %698 = vmatprep.mubr.bf16.mxu0 0
    %699 = vmatmul.mubr.bf16.gmra.mxu0 %v613
    %v700 = vpop.f32.mrf.mxu0
    %v701 = vadd.f32 %v533, %v700
    %v702 = vpop.f32.mrf.mxu0
    %v703 = vpop.f32.mrf.mxu0
    %v704 = vadd.f32 %v536, %v703
    %v705 = vpop.f32.mrf.mxu0
    %706 = vmatprep.mubr.bf16.mxu0 0
    %707 = vmatmul.mubr.bf16.gmra.mxu0 %v616
    %v708 = vpop.f32.mrf.mxu0
    %v709 = vadd.f32 %v541, %v708
    %v710 = vpop.f32.mrf.mxu0
    %v711 = vpop.f32.mrf.mxu0
    %v712 = vadd.f32 %v544, %v711
    %v713 = vpop.f32.mrf.mxu0
    %714 = vmatprep.mubr.bf16.mxu0 0
    %715 = vmatmul.mubr.bf16.gmra.mxu0 %v619
    %v716 = vpop.f32.mrf.mxu0
    %v717 = vadd.f32 %v549, %v716
    %v718 = vpop.f32.mrf.mxu0
    %v719 = vpop.f32.mrf.mxu0
    %v720 = vadd.f32 %v552, %v719
    %v721 = vpop.f32.mrf.mxu0
    %722 = vmatprep.mubr.bf16.mxu0 0
    %723 = vmatmul.mubr.bf16.gmra.mxu0 %v622
    %v724 = vpop.f32.mrf.mxu0
    %v725 = vadd.f32 %v557, %v724
    %v726 = vpop.f32.mrf.mxu0
    %v727 = vpop.f32.mrf.mxu0
    %v728 = vadd.f32 %v560, %v727
    %v729 = vpop.f32.mrf.mxu0
    %730 = vmatprep.mubr.bf16.mxu0 0
    %731 = vmatmul.mubr.bf16.gmra.mxu0 %v625
    %v732 = vpop.f32.mrf.mxu0
    %v733 = vadd.f32 %v565, %v732
    %v734 = vpop.f32.mrf.mxu0
    %v735 = vpop.f32.mrf.mxu0
    %v736 = vadd.f32 %v568, %v735
    %v737 = vpop.f32.mrf.mxu0
    %738 = vmatprep.mubr.bf16.mxu0 0
    %739 = vmatmul.mubr.bf16.gmra.mxu0 %v628
    %v740 = vpop.f32.mrf.mxu0
    %v741 = vadd.f32 %v573, %v740
    %v742 = vpop.f32.mrf.mxu0
    %v743 = vpop.f32.mrf.mxu0
    %v744 = vadd.f32 %v576, %v743
    %v745 = vpop.f32.mrf.mxu0
    %746 = vmatprep.mubr.bf16.mxu0 0
    %747 = vmatmul.mubr.bf16.gmra.mxu0 %v631
    %v748 = vpop.f32.mrf.mxu0
    %v749 = vadd.f32 %v581, %v748
    %v750 = vpop.f32.mrf.mxu0
    %v751 = vpop.f32.mrf.mxu0
    %v752 = vadd.f32 %v584, %v751
    %v753 = vpop.f32.mrf.mxu0
    %754 = vmatprep.mubr.bf16.mxu0 0
    %755 = vmatmul.mubr.bf16.gmra.mxu0 %v634
    %v756 = vpop.f32.mrf.mxu0
    %v757 = vadd.f32 %v589, %v756
    %v758 = vpop.f32.mrf.mxu0
    %v759 = vpop.f32.mrf.mxu0
    %v760 = vadd.f32 %v592, %v759
    %v761 = vpop.f32.mrf.mxu0
    %762 = vmatprep.mubr.bf16.mxu0 0
    %763 = vmatmul.mubr.bf16.gmra.mxu0 %v637
    %v764 = vpop.f32.mrf.mxu0
    %v765 = vadd.f32 %v597, %v764
    %v766 = vpop.f32.mrf.mxu0
    %v767 = vpop.f32.mrf.mxu0
    %v768 = vadd.f32 %v600, %v767
    %v769 = vpop.f32.mrf.mxu0
    %770 = vdwg.mxu0
    %vm771 = vcmask 1045504
    %v772 = vrot.slane %v279, 2
    %v773 = vrot.slane %v280, 2
    %v774 = vsel %vm771, %v772, %v773
    %v775 = vrot.slane %v281, 2
    %v776 = vsel %vm771, %v773, %v775
    %v777 = vrot.slane %v282, 2
    %v778 = vsel %vm771, %v775, %v777
    %v779 = vrot.slane %v283, 2
    %v780 = vsel %vm771, %v777, %v779
    %v781 = vrot.slane %v284, 2
    %v782 = vsel %vm771, %v779, %v781
    %v783 = vrot.slane %v285, 2
    %v784 = vsel %vm771, %v781, %v783
    %v785 = vrot.slane %v286, 2
    %v786 = vsel %vm771, %v783, %v785
    %v787 = vrot.slane %v287, 2
    %v788 = vsel %vm771, %v785, %v787
    %v789 = vrot.slane %v288, 2
    %v790 = vsel %vm771, %v787, %v789
    %v791 = vrot.slane %v289, 2
    %v792 = vsel %vm771, %v789, %v791
    %v793 = vrot.slane %v290, 2
    %v794 = vsel %vm771, %v791, %v793
    %v795 = vrot.slane %v291, 2
    %v796 = vsel %vm771, %v793, %v795
    %v797 = vrot.slane %v292, 2
    %v798 = vrot.slane %v293, 2
    %v799 = vsel %vm771, %v797, %v798
    %v800 = vrot.slane %v294, 2
    %v801 = vsel %vm771, %v798, %v800
    %v802 = vrot.slane %v295, 2
    %v803 = vsel %vm771, %v800, %v802
    %v804 = vrot.slane %v296, 2
    %v805 = vsel %vm771, %v802, %v804
    %v806 = vrot.slane %v297, 2
    %v807 = vsel %vm771, %v804, %v806
    %v808 = vrot.slane %v298, 2
    %v809 = vsel %vm771, %v806, %v808
    %v810 = vrot.slane %v299, 2
    %v811 = vsel %vm771, %v808, %v810
    %v812 = vrot.slane %v300, 2
    %v813 = vsel %vm771, %v810, %v812
    %v814 = vrot.slane %v301, 2
    %v815 = vsel %vm771, %v812, %v814
    %v816 = vrot.slane %v302, 2
    %v817 = vsel %vm771, %v814, %v816
    %v818 = vrot.slane %v303, 2
    %v819 = vsel %vm771, %v816, %v818
    %v820 = vrot.slane %v304, 2
    %v821 = vsel %vm771, %v818, %v820
    %v846 = vpack.c.bf16 %v776, %v774
    %v847 = vpack.c.bf16 %v780, %v778
    %v848 = vpack.c.bf16 %v784, %v782
    %v849 = vpack.c.bf16 %v788, %v786
    %v850 = vpack.c.bf16 %v792, %v790
    %v851 = vpack.c.bf16 %v796, %v794
    %v852 = vpack.c.bf16 %v801, %v799
    %v853 = vpack.c.bf16 %v805, %v803
    %v854 = vpack.c.bf16 %v809, %v807
    %v855 = vpack.c.bf16 %v813, %v811
    %v856 = vpack.c.bf16 %v817, %v815
    %v857 = vpack.c.bf16 %v821, %v819
    %s858 = scalar_lea.vmem [#allocation6], 4
    %v859 = vld [vmem:[%s858] sm:$0x3]
    %v861 = vsel %vm433, %v846, 0
    %v864 = vsel %vm433, %v847, 0
    %v867 = vsel %vm433, %v848, 0
    %v870 = vsel %vm433, %v849, 0
    %v873 = vsel %vm433, %v850, 0
    %v876 = vsel %vm433, %v851, 0
    %v879 = vsel %vm433, %v852, 0
    %v882 = vsel %vm433, %v853, 0
    %v885 = vsel %vm433, %v854, 0
    %v888 = vsel %vm433, %v855, 0
    %v891 = vsel %vm433, %v856, 0
    %v894 = vsel %vm433, %v857, 0
    %v897 = vsel %vm470, %v859, 0
    %899 = vmatprep.subr.bf16.mxu0 0
    %900 = vmatpush1.bf16.msra.mxu0 0
    %901 = vmatprep.subr.bf16.mxu0 0
    %902 = vmatpush1.bf16.msra.mxu0 0
    %903 = vmatprep.subr.bf16.mxu0 0
    %904 = vmatpush1.bf16.msra.mxu0 0
    %905 = vmatprep.subr.bf16.mxu0 0
    %906 = vmatpush1.bf16.msra.mxu0 0
    %907 = vmatprep.subr.bf16.mxu0 0
    %908 = vmatpush1.bf16.msra.mxu0 0
    %909 = vmatprep.subr.bf16.mxu0 0
    %910 = vmatpush1.bf16.msra.mxu0 0
    %911 = vmatprep.subr.bf16.mxu0 0
    %912 = vmatpush1.bf16.msra.mxu0 0
    %913 = vmatprep.subr.bf16.mxu0 0
    %914 = vmatpush1.bf16.msra.mxu0 %v897
    %915 = vmatprep.subr.bf16.mxu0 0
    %916 = vmatpush2.bf16.msra.mxu0 0
    %917 = vmatprep.subr.bf16.mxu0 0
    %918 = vmatpush2.bf16.msra.mxu0 0
    %919 = vmatprep.subr.bf16.mxu0 0
    %920 = vmatpush2.bf16.msra.mxu0 0
    %921 = vmatprep.subr.bf16.mxu0 0
    %922 = vmatpush2.bf16.msra.mxu0 0
    %923 = vmatprep.subr.bf16.mxu0 0
    %924 = vmatpush2.bf16.msra.mxu0 0
    %925 = vmatprep.subr.bf16.mxu0 0
    %926 = vmatpush2.bf16.msra.mxu0 0
    %927 = vmatprep.subr.bf16.mxu0 0
    %928 = vmatpush2.bf16.msra.mxu0 0
    %929 = vmatprep.subr.bf16.mxu0 0
    %930 = vmatpush2.bf16.msra.mxu0 0
    %931 = vmatprep.mubr.bf16.mxu0 0
    %932 = vmatmul.mubr.bf16.gmra.mxu0 %v861
    %v933 = vpop.f32.mrf.mxu0
    %v934 = vadd.f32 0.0, %v933
    %v935 = vpop.f32.mrf.mxu0
    %v936 = vpop.f32.mrf.mxu0
    %v937 = vadd.f32 0.0, %v936
    %v938 = vpop.f32.mrf.mxu0
    %939 = vmatprep.mubr.bf16.mxu0 0
    %940 = vmatmul.mubr.bf16.gmra.mxu0 %v864
    %v941 = vpop.f32.mrf.mxu0
    %v942 = vadd.f32 0.0, %v941
    %v943 = vpop.f32.mrf.mxu0
    %v944 = vpop.f32.mrf.mxu0
    %v945 = vadd.f32 0.0, %v944
    %v946 = vpop.f32.mrf.mxu0
    %947 = vmatprep.mubr.bf16.mxu0 0
    %948 = vmatmul.mubr.bf16.gmra.mxu0 %v867
    %v949 = vpop.f32.mrf.mxu0
    %v950 = vadd.f32 0.0, %v949
    %v951 = vpop.f32.mrf.mxu0
    %v952 = vpop.f32.mrf.mxu0
    %v953 = vadd.f32 0.0, %v952
    %v954 = vpop.f32.mrf.mxu0
    %955 = vmatprep.mubr.bf16.mxu0 0
    %956 = vmatmul.mubr.bf16.gmra.mxu0 %v870
    %v957 = vpop.f32.mrf.mxu0
    %v958 = vadd.f32 0.0, %v957
    %v959 = vpop.f32.mrf.mxu0
    %v960 = vpop.f32.mrf.mxu0
    %v961 = vadd.f32 0.0, %v960
    %v962 = vpop.f32.mrf.mxu0
    %963 = vmatprep.mubr.bf16.mxu0 0
    %964 = vmatmul.mubr.bf16.gmra.mxu0 %v873
    %v965 = vpop.f32.mrf.mxu0
    %v966 = vadd.f32 0.0, %v965
    %v967 = vpop.f32.mrf.mxu0
    %v968 = vpop.f32.mrf.mxu0
    %v969 = vadd.f32 0.0, %v968
    %v970 = vpop.f32.mrf.mxu0
    %971 = vmatprep.mubr.bf16.mxu0 0
    %972 = vmatmul.mubr.bf16.gmra.mxu0 %v876
    %v973 = vpop.f32.mrf.mxu0
    %v974 = vadd.f32 0.0, %v973
    %v975 = vpop.f32.mrf.mxu0
    %v976 = vpop.f32.mrf.mxu0
    %v977 = vadd.f32 0.0, %v976
    %v978 = vpop.f32.mrf.mxu0
    %979 = vmatprep.mubr.bf16.mxu0 0
    %980 = vmatmul.mubr.bf16.gmra.mxu0 %v879
    %v981 = vpop.f32.mrf.mxu0
    %v982 = vadd.f32 0.0, %v981
    %v983 = vpop.f32.mrf.mxu0
    %v984 = vpop.f32.mrf.mxu0
    %v985 = vadd.f32 0.0, %v984
    %v986 = vpop.f32.mrf.mxu0
    %987 = vmatprep.mubr.bf16.mxu0 0
    %988 = vmatmul.mubr.bf16.gmra.mxu0 %v882
    %v989 = vpop.f32.mrf.mxu0
    %v990 = vadd.f32 0.0, %v989
    %v991 = vpop.f32.mrf.mxu0
    %v992 = vpop.f32.mrf.mxu0
    %v993 = vadd.f32 0.0, %v992
    %v994 = vpop.f32.mrf.mxu0
    %995 = vmatprep.mubr.bf16.mxu0 0
    %996 = vmatmul.mubr.bf16.gmra.mxu0 %v885
    %v997 = vpop.f32.mrf.mxu0
    %v998 = vadd.f32 0.0, %v997
    %v999 = vpop.f32.mrf.mxu0
    %v1000 = vpop.f32.mrf.mxu0
    %v1001 = vadd.f32 0.0, %v1000
    %v1002 = vpop.f32.mrf.mxu0
    %1003 = vmatprep.mubr.bf16.mxu0 0
    %1004 = vmatmul.mubr.bf16.gmra.mxu0 %v888
    %v1005 = vpop.f32.mrf.mxu0
    %v1006 = vadd.f32 0.0, %v1005
    %v1007 = vpop.f32.mrf.mxu0
    %v1008 = vpop.f32.mrf.mxu0
    %v1009 = vadd.f32 0.0, %v1008
    %v1010 = vpop.f32.mrf.mxu0
    %1011 = vmatprep.mubr.bf16.mxu0 0
    %1012 = vmatmul.mubr.bf16.gmra.mxu0 %v891
    %v1013 = vpop.f32.mrf.mxu0
    %v1014 = vadd.f32 0.0, %v1013
    %v1015 = vpop.f32.mrf.mxu0
    %v1016 = vpop.f32.mrf.mxu0
    %v1017 = vadd.f32 0.0, %v1016
    %v1018 = vpop.f32.mrf.mxu0
    %1019 = vmatprep.mubr.bf16.mxu0 0
    %1020 = vmatmul.mubr.bf16.gmra.mxu0 %v894
    %v1021 = vpop.f32.mrf.mxu0
    %v1022 = vadd.f32 0.0, %v1021
    %v1023 = vpop.f32.mrf.mxu0
    %v1024 = vpop.f32.mrf.mxu0
    %v1025 = vadd.f32 0.0, %v1024
    %v1026 = vpop.f32.mrf.mxu0
    %1027 = vdwg.mxu0
    %v1028 = vadd.f32 %v677, %v934
    %v1029 = vadd.f32 %v680, %v937
    %v1030 = vadd.f32 %v685, %v942
    %v1031 = vadd.f32 %v688, %v945
    %v1032 = vadd.f32 %v693, %v950
    %v1033 = vadd.f32 %v696, %v953
    %v1034 = vadd.f32 %v701, %v958
    %v1035 = vadd.f32 %v704, %v961
    %v1036 = vadd.f32 %v709, %v966
    %v1037 = vadd.f32 %v712, %v969
    %v1038 = vadd.f32 %v717, %v974
    %v1039 = vadd.f32 %v720, %v977
    %v1040 = vadd.f32 %v725, %v982
    %v1041 = vadd.f32 %v728, %v985
    %v1042 = vadd.f32 %v733, %v990
    %v1043 = vadd.f32 %v736, %v993
    %v1044 = vadd.f32 %v741, %v998
    %v1045 = vadd.f32 %v744, %v1001
    %v1046 = vadd.f32 %v749, %v1006
    %v1047 = vadd.f32 %v752, %v1009
    %v1048 = vadd.f32 %v757, %v1014
    %v1049 = vadd.f32 %v760, %v1017
    %v1050 = vadd.f32 %v765, %v1022
    %v1051 = vadd.f32 %v768, %v1025
    %vm1052 = vcmask 1044480
    %v1053 = vrot.slane %v279, 3
    %v1054 = vrot.slane %v280, 3
    %v1055 = vsel %vm1052, %v1053, %v1054
    %v1056 = vrot.slane %v281, 3
    %v1057 = vsel %vm1052, %v1054, %v1056
    %v1058 = vrot.slane %v282, 3
    %v1059 = vsel %vm1052, %v1056, %v1058
    %v1060 = vrot.slane %v283, 3
    %v1061 = vsel %vm1052, %v1058, %v1060
    %v1062 = vrot.slane %v284, 3
    %v1063 = vsel %vm1052, %v1060, %v1062
    %v1064 = vrot.slane %v285, 3
    %v1065 = vsel %vm1052, %v1062, %v1064
    %v1066 = vrot.slane %v286, 3
    %v1067 = vsel %vm1052, %v1064, %v1066
    %v1068 = vrot.slane %v287, 3
    %v1069 = vsel %vm1052, %v1066, %v1068
    %v1070 = vrot.slane %v288, 3
    %v1071 = vsel %vm1052, %v1068, %v1070
    %v1072 = vrot.slane %v289, 3
    %v1073 = vsel %vm1052, %v1070, %v1072
    %v1074 = vrot.slane %v290, 3
    %v1075 = vsel %vm1052, %v1072, %v1074
    %v1076 = vrot.slane %v291, 3
    %v1077 = vsel %vm1052, %v1074, %v1076
    %v1078 = vrot.slane %v292, 3
    %v1079 = vrot.slane %v293, 3
    %v1080 = vsel %vm1052, %v1078, %v1079
    %v1081 = vrot.slane %v294, 3
    %v1082 = vsel %vm1052, %v1079, %v1081
    %v1083 = vrot.slane %v295, 3
    %v1084 = vsel %vm1052, %v1081, %v1083
    %v1085 = vrot.slane %v296, 3
    %v1086 = vsel %vm1052, %v1083, %v1085
    %v1087 = vrot.slane %v297, 3
    %v1088 = vsel %vm1052, %v1085, %v1087
    %v1089 = vrot.slane %v298, 3
    %v1090 = vsel %vm1052, %v1087, %v1089
    %v1091 = vrot.slane %v299, 3
    %v1092 = vsel %vm1052, %v1089, %v1091
    %v1093 = vrot.slane %v300, 3
    %v1094 = vsel %vm1052, %v1091, %v1093
    %v1095 = vrot.slane %v301, 3
    %v1096 = vsel %vm1052, %v1093, %v1095
    %v1097 = vrot.slane %v302, 3
    %v1098 = vsel %vm1052, %v1095, %v1097
    %v1099 = vrot.slane %v303, 3
    %v1100 = vsel %vm1052, %v1097, %v1099
    %v1101 = vrot.slane %v304, 3
    %v1102 = vsel %vm1052, %v1099, %v1101
    %v1127 = vpack.c.bf16 %v1057, %v1055
    %v1128 = vpack.c.bf16 %v1061, %v1059
    %v1129 = vpack.c.bf16 %v1065, %v1063
    %v1130 = vpack.c.bf16 %v1069, %v1067
    %v1131 = vpack.c.bf16 %v1073, %v1071
    %v1132 = vpack.c.bf16 %v1077, %v1075
    %v1133 = vpack.c.bf16 %v1082, %v1080
    %v1134 = vpack.c.bf16 %v1086, %v1084
    %v1135 = vpack.c.bf16 %v1090, %v1088
    %v1136 = vpack.c.bf16 %v1094, %v1092
    %v1137 = vpack.c.bf16 %v1098, %v1096
    %v1138 = vpack.c.bf16 %v1102, %v1100
    %s1139 = scalar_lea.vmem [#allocation6], 6
    %v1140 = vld [vmem:[%s1139] sm:$0x3]
    %v1142 = vsel %vm433, %v1127, 0
    %v1145 = vsel %vm433, %v1128, 0
    %v1148 = vsel %vm433, %v1129, 0
    %v1151 = vsel %vm433, %v1130, 0
    %v1154 = vsel %vm433, %v1131, 0
    %v1157 = vsel %vm433, %v1132, 0
    %v1160 = vsel %vm433, %v1133, 0
    %v1163 = vsel %vm433, %v1134, 0
    %v1166 = vsel %vm433, %v1135, 0
    %v1169 = vsel %vm433, %v1136, 0
    %v1172 = vsel %vm433, %v1137, 0
    %v1175 = vsel %vm433, %v1138, 0
    %v1178 = vsel %vm470, %v1140, 0
    %1180 = vmatprep.subr.bf16.mxu0 0
    %1181 = vmatpush1.bf16.msra.mxu0 0
    %1182 = vmatprep.subr.bf16.mxu0 0
    %1183 = vmatpush1.bf16.msra.mxu0 0
    %1184 = vmatprep.subr.bf16.mxu0 0
    %1185 = vmatpush1.bf16.msra.mxu0 0
    %1186 = vmatprep.subr.bf16.mxu0 0
    %1187 = vmatpush1.bf16.msra.mxu0 0
    %1188 = vmatprep.subr.bf16.mxu0 0
    %1189 = vmatpush1.bf16.msra.mxu0 0
    %1190 = vmatprep.subr.bf16.mxu0 0
    %1191 = vmatpush1.bf16.msra.mxu0 0
    %1192 = vmatprep.subr.bf16.mxu0 0
    %1193 = vmatpush1.bf16.msra.mxu0 0
    %1194 = vmatprep.subr.bf16.mxu0 0
    %1195 = vmatpush1.bf16.msra.mxu0 %v1178
    %1196 = vmatprep.subr.bf16.mxu0 0
    %1197 = vmatpush2.bf16.msra.mxu0 0
    %1198 = vmatprep.subr.bf16.mxu0 0
    %1199 = vmatpush2.bf16.msra.mxu0 0
    %1200 = vmatprep.subr.bf16.mxu0 0
    %1201 = vmatpush2.bf16.msra.mxu0 0
    %1202 = vmatprep.subr.bf16.mxu0 0
    %1203 = vmatpush2.bf16.msra.mxu0 0
    %1204 = vmatprep.subr.bf16.mxu0 0
    %1205 = vmatpush2.bf16.msra.mxu0 0
    %1206 = vmatprep.subr.bf16.mxu0 0
    %1207 = vmatpush2.bf16.msra.mxu0 0
    %1208 = vmatprep.subr.bf16.mxu0 0
    %1209 = vmatpush2.bf16.msra.mxu0 0
    %1210 = vmatprep.subr.bf16.mxu0 0
    %1211 = vmatpush2.bf16.msra.mxu0 0
    %1212 = vmatprep.mubr.bf16.mxu0 0
    %1213 = vmatmul.mubr.bf16.gmra.mxu0 %v1142
    %v1214 = vpop.f32.mrf.mxu0
    %v1215 = vadd.f32 0.0, %v1214
    %v1216 = vpop.f32.mrf.mxu0
    %v1217 = vpop.f32.mrf.mxu0
    %v1218 = vadd.f32 0.0, %v1217
    %v1219 = vpop.f32.mrf.mxu0
    %1220 = vmatprep.mubr.bf16.mxu0 0
    %1221 = vmatmul.mubr.bf16.gmra.mxu0 %v1145
    %v1222 = vpop.f32.mrf.mxu0
    %v1223 = vadd.f32 0.0, %v1222
    %v1224 = vpop.f32.mrf.mxu0
    %v1225 = vpop.f32.mrf.mxu0
    %v1226 = vadd.f32 0.0, %v1225
    %v1227 = vpop.f32.mrf.mxu0
    %1228 = vmatprep.mubr.bf16.mxu0 0
    %1229 = vmatmul.mubr.bf16.gmra.mxu0 %v1148
    %v1230 = vpop.f32.mrf.mxu0
    %v1231 = vadd.f32 0.0, %v1230
    %v1232 = vpop.f32.mrf.mxu0
    %v1233 = vpop.f32.mrf.mxu0
    %v1234 = vadd.f32 0.0, %v1233
    %v1235 = vpop.f32.mrf.mxu0
    %1236 = vmatprep.mubr.bf16.mxu0 0
    %1237 = vmatmul.mubr.bf16.gmra.mxu0 %v1151
    %v1238 = vpop.f32.mrf.mxu0
    %v1239 = vadd.f32 0.0, %v1238
    %v1240 = vpop.f32.mrf.mxu0
    %v1241 = vpop.f32.mrf.mxu0
    %v1242 = vadd.f32 0.0, %v1241
    %v1243 = vpop.f32.mrf.mxu0
    %1244 = vmatprep.mubr.bf16.mxu0 0
    %1245 = vmatmul.mubr.bf16.gmra.mxu0 %v1154
    %v1246 = vpop.f32.mrf.mxu0
    %v1247 = vadd.f32 0.0, %v1246
    %v1248 = vpop.f32.mrf.mxu0
    %v1249 = vpop.f32.mrf.mxu0
    %v1250 = vadd.f32 0.0, %v1249
    %v1251 = vpop.f32.mrf.mxu0
    %1252 = vmatprep.mubr.bf16.mxu0 0
    %1253 = vmatmul.mubr.bf16.gmra.mxu0 %v1157
    %v1254 = vpop.f32.mrf.mxu0
    %v1255 = vadd.f32 0.0, %v1254
    %v1256 = vpop.f32.mrf.mxu0
    %v1257 = vpop.f32.mrf.mxu0
    %v1258 = vadd.f32 0.0, %v1257
    %v1259 = vpop.f32.mrf.mxu0
    %1260 = vmatprep.mubr.bf16.mxu0 0
    %1261 = vmatmul.mubr.bf16.gmra.mxu0 %v1160
    %v1262 = vpop.f32.mrf.mxu0
    %v1263 = vadd.f32 0.0, %v1262
    %v1264 = vpop.f32.mrf.mxu0
    %v1265 = vpop.f32.mrf.mxu0
    %v1266 = vadd.f32 0.0, %v1265
    %v1267 = vpop.f32.mrf.mxu0
    %1268 = vmatprep.mubr.bf16.mxu0 0
    %1269 = vmatmul.mubr.bf16.gmra.mxu0 %v1163
    %v1270 = vpop.f32.mrf.mxu0
    %v1271 = vadd.f32 0.0, %v1270
    %v1272 = vpop.f32.mrf.mxu0
    %v1273 = vpop.f32.mrf.mxu0
    %v1274 = vadd.f32 0.0, %v1273
    %v1275 = vpop.f32.mrf.mxu0
    %1276 = vmatprep.mubr.bf16.mxu0 0
    %1277 = vmatmul.mubr.bf16.gmra.mxu0 %v1166
    %v1278 = vpop.f32.mrf.mxu0
    %v1279 = vadd.f32 0.0, %v1278
    %v1280 = vpop.f32.mrf.mxu0
    %v1281 = vpop.f32.mrf.mxu0
    %v1282 = vadd.f32 0.0, %v1281
    %v1283 = vpop.f32.mrf.mxu0
    %1284 = vmatprep.mubr.bf16.mxu0 0
    %1285 = vmatmul.mubr.bf16.gmra.mxu0 %v1169
    %v1286 = vpop.f32.mrf.mxu0
    %v1287 = vadd.f32 0.0, %v1286
    %v1288 = vpop.f32.mrf.mxu0
    %v1289 = vpop.f32.mrf.mxu0
    %v1290 = vadd.f32 0.0, %v1289
    %v1291 = vpop.f32.mrf.mxu0
    %1292 = vmatprep.mubr.bf16.mxu0 0
    %1293 = vmatmul.mubr.bf16.gmra.mxu0 %v1172
    %v1294 = vpop.f32.mrf.mxu0
    %v1295 = vadd.f32 0.0, %v1294
    %v1296 = vpop.f32.mrf.mxu0
    %v1297 = vpop.f32.mrf.mxu0
    %v1298 = vadd.f32 0.0, %v1297
    %v1299 = vpop.f32.mrf.mxu0
    %1300 = vmatprep.mubr.bf16.mxu0 0
    %1301 = vmatmul.mubr.bf16.gmra.mxu0 %v1175
    %v1302 = vpop.f32.mrf.mxu0
    %v1303 = vadd.f32 0.0, %v1302
    %v1304 = vpop.f32.mrf.mxu0
    %v1305 = vpop.f32.mrf.mxu0
    %v1306 = vadd.f32 0.0, %v1305
    %v1307 = vpop.f32.mrf.mxu0
    %1308 = vdwg.mxu0
    %v1309 = vadd.f32 %v1028, %v1215
    %v1310 = vadd.f32 %v1029, %v1218
    %v1311 = vadd.f32 %v1030, %v1223
    %v1312 = vadd.f32 %v1031, %v1226
    %v1313 = vadd.f32 %v1032, %v1231
    %v1314 = vadd.f32 %v1033, %v1234
    %v1315 = vadd.f32 %v1034, %v1239
    %v1316 = vadd.f32 %v1035, %v1242
    %v1317 = vadd.f32 %v1036, %v1247
    %v1318 = vadd.f32 %v1037, %v1250
    %v1319 = vadd.f32 %v1038, %v1255
    %v1320 = vadd.f32 %v1039, %v1258
    %v1321 = vadd.f32 %v1040, %v1263
    %v1322 = vadd.f32 %v1041, %v1266
    %v1323 = vadd.f32 %v1042, %v1271
    %v1324 = vadd.f32 %v1043, %v1274
    %v1325 = vadd.f32 %v1044, %v1279
    %v1326 = vadd.f32 %v1045, %v1282
    %v1327 = vadd.f32 %v1046, %v1287
    %v1328 = vadd.f32 %v1047, %v1290
    %v1329 = vadd.f32 %v1048, %v1295
    %v1330 = vadd.f32 %v1049, %v1298
    %v1331 = vadd.f32 %v1050, %v1303
    %v1332 = vadd.f32 %v1051, %v1306
    %vm1333 = vcmask 1043456
    %v1334 = vrot.slane %v279, 4
    %v1335 = vrot.slane %v280, 4
    %v1336 = vsel %vm1333, %v1334, %v1335
    %v1337 = vrot.slane %v281, 4
    %v1338 = vsel %vm1333, %v1335, %v1337
    %v1339 = vrot.slane %v282, 4
    %v1340 = vsel %vm1333, %v1337, %v1339
    %v1341 = vrot.slane %v283, 4
    %v1342 = vsel %vm1333, %v1339, %v1341
    %v1343 = vrot.slane %v284, 4
    %v1344 = vsel %vm1333, %v1341, %v1343
    %v1345 = vrot.slane %v285, 4
    %v1346 = vsel %vm1333, %v1343, %v1345
    %v1347 = vrot.slane %v286, 4
    %v1348 = vsel %vm1333, %v1345, %v1347
    %v1349 = vrot.slane %v287, 4
    %v1350 = vsel %vm1333, %v1347, %v1349
    %v1351 = vrot.slane %v288, 4
    %v1352 = vsel %vm1333, %v1349, %v1351
    %v1353 = vrot.slane %v289, 4
    %v1354 = vsel %vm1333, %v1351, %v1353
    %v1355 = vrot.slane %v290, 4
    %v1356 = vsel %vm1333, %v1353, %v1355
    %v1357 = vrot.slane %v291, 4
    %v1358 = vsel %vm1333, %v1355, %v1357
    %v1359 = vrot.slane %v292, 4
    %v1360 = vrot.slane %v293, 4
    %v1361 = vsel %vm1333, %v1359, %v1360
    %v1362 = vrot.slane %v294, 4
    %v1363 = vsel %vm1333, %v1360, %v1362
    %v1364 = vrot.slane %v295, 4
    %v1365 = vsel %vm1333, %v1362, %v1364
    %v1366 = vrot.slane %v296, 4
    %v1367 = vsel %vm1333, %v1364, %v1366
    %v1368 = vrot.slane %v297, 4
    %v1369 = vsel %vm1333, %v1366, %v1368
    %v1370 = vrot.slane %v298, 4
    %v1371 = vsel %vm1333, %v1368, %v1370
    %v1372 = vrot.slane %v299, 4
    %v1373 = vsel %vm1333, %v1370, %v1372
    %v1374 = vrot.slane %v300, 4
    %v1375 = vsel %vm1333, %v1372, %v1374
    %v1376 = vrot.slane %v301, 4
    %v1377 = vsel %vm1333, %v1374, %v1376
    %v1378 = vrot.slane %v302, 4
    %v1379 = vsel %vm1333, %v1376, %v1378
    %v1380 = vrot.slane %v303, 4
    %v1381 = vsel %vm1333, %v1378, %v1380
    %v1382 = vrot.slane %v304, 4
    %v1383 = vsel %vm1333, %v1380, %v1382
    %v1408 = vpack.c.bf16 %v1338, %v1336
    %v1409 = vpack.c.bf16 %v1342, %v1340
    %v1410 = vpack.c.bf16 %v1346, %v1344
    %v1411 = vpack.c.bf16 %v1350, %v1348
    %v1412 = vpack.c.bf16 %v1354, %v1352
    %v1413 = vpack.c.bf16 %v1358, %v1356
    %v1414 = vpack.c.bf16 %v1363, %v1361
    %v1415 = vpack.c.bf16 %v1367, %v1365
    %v1416 = vpack.c.bf16 %v1371, %v1369
    %v1417 = vpack.c.bf16 %v1375, %v1373
    %v1418 = vpack.c.bf16 %v1379, %v1377
    %v1419 = vpack.c.bf16 %v1383, %v1381
    %s1420 = scalar_lea.vmem [#allocation6], 8
    %v1421 = vld [vmem:[%s1420] sm:$0x3]
    %v1423 = vsel %vm433, %v1408, 0
    %v1426 = vsel %vm433, %v1409, 0
    %v1429 = vsel %vm433, %v1410, 0
    %v1432 = vsel %vm433, %v1411, 0
    %v1435 = vsel %vm433, %v1412, 0
    %v1438 = vsel %vm433, %v1413, 0
    %v1441 = vsel %vm433, %v1414, 0
    %v1444 = vsel %vm433, %v1415, 0
    %v1447 = vsel %vm433, %v1416, 0
    %v1450 = vsel %vm433, %v1417, 0
    %v1453 = vsel %vm433, %v1418, 0
    %v1456 = vsel %vm433, %v1419, 0
    %v1459 = vsel %vm470, %v1421, 0
    %1461 = vmatprep.subr.bf16.mxu0 0
    %1462 = vmatpush1.bf16.msra.mxu0 0
    %1463 = vmatprep.subr.bf16.mxu0 0
    %1464 = vmatpush1.bf16.msra.mxu0 0
    %1465 = vmatprep.subr.bf16.mxu0 0
    %1466 = vmatpush1.bf16.msra.mxu0 0
    %1467 = vmatprep.subr.bf16.mxu0 0
    %1468 = vmatpush1.bf16.msra.mxu0 0
    %1469 = vmatprep.subr.bf16.mxu0 0
    %1470 = vmatpush1.bf16.msra.mxu0 0
    %1471 = vmatprep.subr.bf16.mxu0 0
    %1472 = vmatpush1.bf16.msra.mxu0 0
    %1473 = vmatprep.subr.bf16.mxu0 0
    %1474 = vmatpush1.bf16.msra.mxu0 0
    %1475 = vmatprep.subr.bf16.mxu0 0
    %1476 = vmatpush1.bf16.msra.mxu0 %v1459
    %1477 = vmatprep.subr.bf16.mxu0 0
    %1478 = vmatpush2.bf16.msra.mxu0 0
    %1479 = vmatprep.subr.bf16.mxu0 0
    %1480 = vmatpush2.bf16.msra.mxu0 0
    %1481 = vmatprep.subr.bf16.mxu0 0
    %1482 = vmatpush2.bf16.msra.mxu0 0
    %1483 = vmatprep.subr.bf16.mxu0 0
    %1484 = vmatpush2.bf16.msra.mxu0 0
    %1485 = vmatprep.subr.bf16.mxu0 0
    %1486 = vmatpush2.bf16.msra.mxu0 0
    %1487 = vmatprep.subr.bf16.mxu0 0
    %1488 = vmatpush2.bf16.msra.mxu0 0
    %1489 = vmatprep.subr.bf16.mxu0 0
    %1490 = vmatpush2.bf16.msra.mxu0 0
    %1491 = vmatprep.subr.bf16.mxu0 0
    %1492 = vmatpush2.bf16.msra.mxu0 0
    %1493 = vmatprep.mubr.bf16.mxu0 0
    %1494 = vmatmul.mubr.bf16.gmra.mxu0 %v1423
    %v1495 = vpop.f32.mrf.mxu0
    %v1496 = vadd.f32 0.0, %v1495
    %v1497 = vpop.f32.mrf.mxu0
    %v1498 = vpop.f32.mrf.mxu0
    %v1499 = vadd.f32 0.0, %v1498
    %v1500 = vpop.f32.mrf.mxu0
    %1501 = vmatprep.mubr.bf16.mxu0 0
    %1502 = vmatmul.mubr.bf16.gmra.mxu0 %v1426
    %v1503 = vpop.f32.mrf.mxu0
    %v1504 = vadd.f32 0.0, %v1503
    %v1505 = vpop.f32.mrf.mxu0
    %v1506 = vpop.f32.mrf.mxu0
    %v1507 = vadd.f32 0.0, %v1506
    %v1508 = vpop.f32.mrf.mxu0
    %1509 = vmatprep.mubr.bf16.mxu0 0
    %1510 = vmatmul.mubr.bf16.gmra.mxu0 %v1429
    %v1511 = vpop.f32.mrf.mxu0
    %v1512 = vadd.f32 0.0, %v1511
    %v1513 = vpop.f32.mrf.mxu0
    %v1514 = vpop.f32.mrf.mxu0
    %v1515 = vadd.f32 0.0, %v1514
    %v1516 = vpop.f32.mrf.mxu0
    %1517 = vmatprep.mubr.bf16.mxu0 0
    %1518 = vmatmul.mubr.bf16.gmra.mxu0 %v1432
    %v1519 = vpop.f32.mrf.mxu0
    %v1520 = vadd.f32 0.0, %v1519
    %v1521 = vpop.f32.mrf.mxu0
    %v1522 = vpop.f32.mrf.mxu0
    %v1523 = vadd.f32 0.0, %v1522
    %v1524 = vpop.f32.mrf.mxu0
    %1525 = vmatprep.mubr.bf16.mxu0 0
    %1526 = vmatmul.mubr.bf16.gmra.mxu0 %v1435
    %v1527 = vpop.f32.mrf.mxu0
    %v1528 = vadd.f32 0.0, %v1527
    %v1529 = vpop.f32.mrf.mxu0
    %v1530 = vpop.f32.mrf.mxu0
    %v1531 = vadd.f32 0.0, %v1530
    %v1532 = vpop.f32.mrf.mxu0
    %1533 = vmatprep.mubr.bf16.mxu0 0
    %1534 = vmatmul.mubr.bf16.gmra.mxu0 %v1438
    %v1535 = vpop.f32.mrf.mxu0
    %v1536 = vadd.f32 0.0, %v1535
    %v1537 = vpop.f32.mrf.mxu0
    %v1538 = vpop.f32.mrf.mxu0
    %v1539 = vadd.f32 0.0, %v1538
    %v1540 = vpop.f32.mrf.mxu0
    %1541 = vmatprep.mubr.bf16.mxu0 0
    %1542 = vmatmul.mubr.bf16.gmra.mxu0 %v1441
    %v1543 = vpop.f32.mrf.mxu0
    %v1544 = vadd.f32 0.0, %v1543
    %v1545 = vpop.f32.mrf.mxu0
    %v1546 = vpop.f32.mrf.mxu0
    %v1547 = vadd.f32 0.0, %v1546
    %v1548 = vpop.f32.mrf.mxu0
    %1549 = vmatprep.mubr.bf16.mxu0 0
    %1550 = vmatmul.mubr.bf16.gmra.mxu0 %v1444
    %v1551 = vpop.f32.mrf.mxu0
    %v1552 = vadd.f32 0.0, %v1551
    %v1553 = vpop.f32.mrf.mxu0
    %v1554 = vpop.f32.mrf.mxu0
    %v1555 = vadd.f32 0.0, %v1554
    %v1556 = vpop.f32.mrf.mxu0
    %1557 = vmatprep.mubr.bf16.mxu0 0
    %1558 = vmatmul.mubr.bf16.gmra.mxu0 %v1447
    %v1559 = vpop.f32.mrf.mxu0
    %v1560 = vadd.f32 0.0, %v1559
    %v1561 = vpop.f32.mrf.mxu0
    %v1562 = vpop.f32.mrf.mxu0
    %v1563 = vadd.f32 0.0, %v1562
    %v1564 = vpop.f32.mrf.mxu0
    %1565 = vmatprep.mubr.bf16.mxu0 0
    %1566 = vmatmul.mubr.bf16.gmra.mxu0 %v1450
    %v1567 = vpop.f32.mrf.mxu0
    %v1568 = vadd.f32 0.0, %v1567
    %v1569 = vpop.f32.mrf.mxu0
    %v1570 = vpop.f32.mrf.mxu0
    %v1571 = vadd.f32 0.0, %v1570
    %v1572 = vpop.f32.mrf.mxu0
    %1573 = vmatprep.mubr.bf16.mxu0 0
    %1574 = vmatmul.mubr.bf16.gmra.mxu0 %v1453
    %v1575 = vpop.f32.mrf.mxu0
    %v1576 = vadd.f32 0.0, %v1575
    %v1577 = vpop.f32.mrf.mxu0
    %v1578 = vpop.f32.mrf.mxu0
    %v1579 = vadd.f32 0.0, %v1578
    %v1580 = vpop.f32.mrf.mxu0
    %1581 = vmatprep.mubr.bf16.mxu0 0
    %1582 = vmatmul.mubr.bf16.gmra.mxu0 %v1456
    %v1583 = vpop.f32.mrf.mxu0
    %v1584 = vadd.f32 0.0, %v1583
    %v1585 = vpop.f32.mrf.mxu0
    %v1586 = vpop.f32.mrf.mxu0
    %v1587 = vadd.f32 0.0, %v1586
    %v1588 = vpop.f32.mrf.mxu0
    %1589 = vdwg.mxu0
    %v1590 = vadd.f32 %v1309, %v1496
    %v1591 = vadd.f32 %v1310, %v1499
    %v1592 = vadd.f32 %v1311, %v1504
    %v1593 = vadd.f32 %v1312, %v1507
    %v1594 = vadd.f32 %v1313, %v1512
    %v1595 = vadd.f32 %v1314, %v1515
    %v1596 = vadd.f32 %v1315, %v1520
    %v1597 = vadd.f32 %v1316, %v1523
    %v1598 = vadd.f32 %v1317, %v1528
    %v1599 = vadd.f32 %v1318, %v1531
    %v1600 = vadd.f32 %v1319, %v1536
    %v1601 = vadd.f32 %v1320, %v1539
    %v1602 = vadd.f32 %v1321, %v1544
    %v1603 = vadd.f32 %v1322, %v1547
    %v1604 = vadd.f32 %v1323, %v1552
    %v1605 = vadd.f32 %v1324, %v1555
    %v1606 = vadd.f32 %v1325, %v1560
    %v1607 = vadd.f32 %v1326, %v1563
    %v1608 = vadd.f32 %v1327, %v1568
    %v1609 = vadd.f32 %v1328, %v1571
    %v1610 = vadd.f32 %v1329, %v1576
    %v1611 = vadd.f32 %v1330, %v1579
    %v1612 = vadd.f32 %v1331, %v1584
    %v1613 = vadd.f32 %v1332, %v1587
    %v1614 = vmax.f32 %v1590, 0.0
    %v1615 = vmax.f32 %v1591, 0.0
    %v1616 = vmax.f32 %v1592, 0.0
    %v1617 = vmax.f32 %v1593, 0.0
    %v1618 = vmax.f32 %v1594, 0.0
    %v1619 = vmax.f32 %v1595, 0.0
    %v1620 = vmax.f32 %v1596, 0.0
    %v1621 = vmax.f32 %v1597, 0.0
    %v1622 = vmax.f32 %v1598, 0.0
    %v1623 = vmax.f32 %v1599, 0.0
    %v1624 = vmax.f32 %v1600, 0.0
    %v1625 = vmax.f32 %v1601, 0.0
    %v1626 = vmax.f32 %v1602, 0.0
    %v1627 = vmax.f32 %v1603, 0.0
    %v1628 = vmax.f32 %v1604, 0.0
    %v1629 = vmax.f32 %v1605, 0.0
    %v1630 = vmax.f32 %v1606, 0.0
    %v1631 = vmax.f32 %v1607, 0.0
    %v1632 = vmax.f32 %v1608, 0.0
    %v1633 = vmax.f32 %v1609, 0.0
    %v1634 = vmax.f32 %v1610, 0.0
    %v1635 = vmax.f32 %v1611, 0.0
    %v1636 = vmax.f32 %v1612, 0.0
    %v1637 = vmax.f32 %v1613, 0.0
    %vm1638 = vcmask 408576
    %v1639 = vsel %vm1638, %v1614, 0.0
    %v1640 = vsel %vm1638, %v1615, 0.0
    %v1641 = vadd.f32 %v1639, %v1640
    %v1642 = vsel %vm1638, %v1616, 0.0
    %v1643 = vadd.f32 %v1641, %v1642
    %v1644 = vsel %vm1638, %v1617, 0.0
    %v1645 = vadd.f32 %v1643, %v1644
    %v1646 = vsel %vm1638, %v1618, 0.0
    %v1647 = vadd.f32 %v1645, %v1646
    %v1648 = vsel %vm1638, %v1619, 0.0
    %v1649 = vadd.f32 %v1647, %v1648
    %v1650 = vsel %vm1638, %v1620, 0.0
    %v1651 = vadd.f32 %v1649, %v1650
    %v1652 = vsel %vm1638, %v1621, 0.0
    %v1653 = vadd.f32 %v1651, %v1652
    %v1654 = vsel %vm1638, %v1622, 0.0
    %v1655 = vadd.f32 %v1653, %v1654
    %v1656 = vsel %vm1638, %v1623, 0.0
    %v1657 = vadd.f32 %v1655, %v1656
    %v1658 = vsel %vm1638, %v1624, 0.0
    %v1659 = vadd.f32 %v1657, %v1658
    %v1660 = vsel %vm1638, %v1625, 0.0
    %v1661 = vadd.f32 %v1659, %v1660
    %v1662 = vsel %vm1638, %v1626, 0.0
    %v1663 = vadd.f32 %v1661, %v1662
    %v1664 = vsel %vm1638, %v1627, 0.0
    %v1665 = vadd.f32 %v1663, %v1664
    %v1666 = vsel %vm1638, %v1628, 0.0
    %v1667 = vadd.f32 %v1665, %v1666
    %v1668 = vsel %vm1638, %v1629, 0.0
    %v1669 = vadd.f32 %v1667, %v1668
    %v1670 = vsel %vm1638, %v1630, 0.0
    %v1671 = vadd.f32 %v1669, %v1670
    %v1672 = vsel %vm1638, %v1631, 0.0
    %v1673 = vadd.f32 %v1671, %v1672
    %v1674 = vsel %vm1638, %v1632, 0.0
    %v1675 = vadd.f32 %v1673, %v1674
    %v1676 = vsel %vm1638, %v1633, 0.0
    %v1677 = vadd.f32 %v1675, %v1676
    %v1678 = vsel %vm1638, %v1634, 0.0
    %v1679 = vadd.f32 %v1677, %v1678
    %v1680 = vsel %vm1638, %v1635, 0.0
    %v1681 = vadd.f32 %v1679, %v1680
    %v1682 = vsel %vm1638, %v1636, 0.0
    %v1683 = vadd.f32 %v1681, %v1682
    %v1684 = vsel %vm1638, %v1637, 0.0
    %v1685 = vadd.f32 %v1683, %v1684
    %v1686 = vrot.slane %v1685, 4
    %v1687 = vadd.f32 %v1685, %v1686
    %v1688 = vrot.slane %v1687, 2
    %v1689 = vadd.f32 %v1687, %v1688
    %v1690 = vrot.slane %v1689, 1
    %v1691 = vadd.f32 %v1689, %v1690
    %v1692 = vrcp.pop 192.0
    %v1693 = vmul.f32 %v1691, %v1692
    %v1694 = vmul.f32 %v1614, %v1614
    %v1695 = vmul.f32 %v1615, %v1615
    %v1696 = vmul.f32 %v1616, %v1616
    %v1697 = vmul.f32 %v1617, %v1617
    %v1698 = vmul.f32 %v1618, %v1618
    %v1699 = vmul.f32 %v1619, %v1619
    %v1700 = vmul.f32 %v1620, %v1620
    %v1701 = vmul.f32 %v1621, %v1621
    %v1702 = vmul.f32 %v1622, %v1622
    %v1703 = vmul.f32 %v1623, %v1623
    %v1704 = vmul.f32 %v1624, %v1624
    %v1705 = vmul.f32 %v1625, %v1625
    %v1706 = vmul.f32 %v1626, %v1626
    %v1707 = vmul.f32 %v1627, %v1627
    %v1708 = vmul.f32 %v1628, %v1628
    %v1709 = vmul.f32 %v1629, %v1629
    %v1710 = vmul.f32 %v1630, %v1630
    %v1711 = vmul.f32 %v1631, %v1631
    %v1712 = vmul.f32 %v1632, %v1632
    %v1713 = vmul.f32 %v1633, %v1633
    %v1714 = vmul.f32 %v1634, %v1634
    %v1715 = vmul.f32 %v1635, %v1635
    %v1716 = vmul.f32 %v1636, %v1636
    %v1717 = vmul.f32 %v1637, %v1637
    %v1718 = vsel %vm1638, %v1694, 0.0
    %v1719 = vsel %vm1638, %v1695, 0.0
    %v1720 = vadd.f32 %v1718, %v1719
    %v1721 = vsel %vm1638, %v1696, 0.0
    %v1722 = vadd.f32 %v1720, %v1721
    %v1723 = vsel %vm1638, %v1697, 0.0
    %v1724 = vadd.f32 %v1722, %v1723
    %v1725 = vsel %vm1638, %v1698, 0.0
    %v1726 = vadd.f32 %v1724, %v1725
    %v1727 = vsel %vm1638, %v1699, 0.0
    %v1728 = vadd.f32 %v1726, %v1727
    %v1729 = vsel %vm1638, %v1700, 0.0
    %v1730 = vadd.f32 %v1728, %v1729
    %v1731 = vsel %vm1638, %v1701, 0.0
    %v1732 = vadd.f32 %v1730, %v1731
    %v1733 = vsel %vm1638, %v1702, 0.0
    %v1734 = vadd.f32 %v1732, %v1733
    %v1735 = vsel %vm1638, %v1703, 0.0
    %v1736 = vadd.f32 %v1734, %v1735
    %v1737 = vsel %vm1638, %v1704, 0.0
    %v1738 = vadd.f32 %v1736, %v1737
    %v1739 = vsel %vm1638, %v1705, 0.0
    %v1740 = vadd.f32 %v1738, %v1739
    %v1741 = vsel %vm1638, %v1706, 0.0
    %v1742 = vadd.f32 %v1740, %v1741
    %v1743 = vsel %vm1638, %v1707, 0.0
    %v1744 = vadd.f32 %v1742, %v1743
    %v1745 = vsel %vm1638, %v1708, 0.0
    %v1746 = vadd.f32 %v1744, %v1745
    %v1747 = vsel %vm1638, %v1709, 0.0
    %v1748 = vadd.f32 %v1746, %v1747
    %v1749 = vsel %vm1638, %v1710, 0.0
    %v1750 = vadd.f32 %v1748, %v1749
    %v1751 = vsel %vm1638, %v1711, 0.0
    %v1752 = vadd.f32 %v1750, %v1751
    %v1753 = vsel %vm1638, %v1712, 0.0
    %v1754 = vadd.f32 %v1752, %v1753
    %v1755 = vsel %vm1638, %v1713, 0.0
    %v1756 = vadd.f32 %v1754, %v1755
    %v1757 = vsel %vm1638, %v1714, 0.0
    %v1758 = vadd.f32 %v1756, %v1757
    %v1759 = vsel %vm1638, %v1715, 0.0
    %v1760 = vadd.f32 %v1758, %v1759
    %v1761 = vsel %vm1638, %v1716, 0.0
    %v1762 = vadd.f32 %v1760, %v1761
    %v1763 = vsel %vm1638, %v1717, 0.0
    %v1764 = vadd.f32 %v1762, %v1763
    %v1765 = vrot.slane %v1764, 4
    %v1766 = vadd.f32 %v1764, %v1765
    %v1767 = vrot.slane %v1766, 2
    %v1768 = vadd.f32 %v1766, %v1767
    %v1769 = vrot.slane %v1768, 1
    %v1770 = vadd.f32 %v1768, %v1769
    %v1771 = vmul.f32 %v1770, %v1692
    %v1772 = vmul.f32 %v1693, %v1693
    %v1773 = vsub.f32 %v1771, %v1772
    %v1774 = vmax.f32 %v1773, 0.0
    %v1775 = vld [vmem:[#allocation8] sm:$0x1]
    %v1776 = vadd.f32 %v1774, 1e-05
    %v1777 = vrsqrt.pop %v1776
    %v1778 = vmul.f32 %v1775, %v1777
    %v1779 = vld [vmem:[#allocation10] sm:$0x1]
    %v1780 = vmul.f32 %v1693, %v1778
    %v1781 = vsub.f32 %v1779, %v1780
    %v1783 = vlaneseq
    %v1784 = vshrl.u32 %v1783, 7
    %v1785 = vsub.s32 0, %v1784
    %v1786 = vrot.slane %v1778, %v1785
    %v1788 = vmul.f32 %v1614, %v1786
    %v1789 = vmul.f32 %v1615, %v1786
    %v1790 = vmul.f32 %v1616, %v1786
    %v1791 = vmul.f32 %v1617, %v1786
    %v1792 = vmul.f32 %v1618, %v1786
    %v1793 = vmul.f32 %v1619, %v1786
    %v1794 = vmul.f32 %v1620, %v1786
    %v1795 = vmul.f32 %v1621, %v1786
    %v1796 = vmul.f32 %v1622, %v1786
    %v1797 = vmul.f32 %v1623, %v1786
    %v1798 = vmul.f32 %v1624, %v1786
    %v1799 = vmul.f32 %v1625, %v1786
    %v1800 = vmul.f32 %v1626, %v1786
    %v1801 = vmul.f32 %v1627, %v1786
    %v1802 = vmul.f32 %v1628, %v1786
    %v1803 = vmul.f32 %v1629, %v1786
    %v1804 = vmul.f32 %v1630, %v1786
    %v1805 = vmul.f32 %v1631, %v1786
    %v1806 = vmul.f32 %v1632, %v1786
    %v1807 = vmul.f32 %v1633, %v1786
    %v1808 = vmul.f32 %v1634, %v1786
    %v1809 = vmul.f32 %v1635, %v1786
    %v1810 = vmul.f32 %v1636, %v1786
    %v1811 = vmul.f32 %v1637, %v1786
    %v1813 = vlaneseq
    %v1814 = vshrl.u32 %v1813, 7
    %v1815 = vsub.s32 0, %v1814
    %v1816 = vrot.slane %v1781, %v1815
    %v1818 = vadd.f32 %v1788, %v1816
    %v1819 = vadd.f32 %v1789, %v1816
    %v1820 = vadd.f32 %v1790, %v1816
    %v1821 = vadd.f32 %v1791, %v1816
    %v1822 = vadd.f32 %v1792, %v1816
    %v1823 = vadd.f32 %v1793, %v1816
    %v1824 = vadd.f32 %v1794, %v1816
    %v1825 = vadd.f32 %v1795, %v1816
    %v1826 = vadd.f32 %v1796, %v1816
    %v1827 = vadd.f32 %v1797, %v1816
    %v1828 = vadd.f32 %v1798, %v1816
    %v1829 = vadd.f32 %v1799, %v1816
    %v1830 = vadd.f32 %v1800, %v1816
    %v1831 = vadd.f32 %v1801, %v1816
    %v1832 = vadd.f32 %v1802, %v1816
    %v1833 = vadd.f32 %v1803, %v1816
    %v1834 = vadd.f32 %v1804, %v1816
    %v1835 = vadd.f32 %v1805, %v1816
    %v1836 = vadd.f32 %v1806, %v1816
    %v1837 = vadd.f32 %v1807, %v1816
    %v1838 = vadd.f32 %v1808, %v1816
    %v1839 = vadd.f32 %v1809, %v1816
    %v1840 = vadd.f32 %v1810, %v1816
    %v1841 = vadd.f32 %v1811, %v1816
    %v1866 = vrot.slane %v1818, 1
    %v1867 = vrot.slane %v1819, 1
    %v1868 = vsel %vm344, %v1866, %v1867
    %v1869 = vrot.slane %v1820, 1
    %v1870 = vsel %vm344, %v1867, %v1869
    %v1871 = vrot.slane %v1821, 1
    %v1872 = vsel %vm344, %v1869, %v1871
    %v1873 = vrot.slane %v1822, 1
    %v1874 = vsel %vm344, %v1871, %v1873
    %v1875 = vrot.slane %v1823, 1
    %v1876 = vsel %vm344, %v1873, %v1875
    %v1877 = vrot.slane %v1824, 1
    %v1878 = vsel %vm344, %v1875, %v1877
    %v1879 = vrot.slane %v1825, 1
    %v1880 = vsel %vm344, %v1877, %v1879
    %v1881 = vrot.slane %v1826, 1
    %v1882 = vsel %vm344, %v1879, %v1881
    %v1883 = vrot.slane %v1827, 1
    %v1884 = vsel %vm344, %v1881, %v1883
    %v1885 = vrot.slane %v1828, 1
    %v1886 = vsel %vm344, %v1883, %v1885
    %v1887 = vrot.slane %v1829, 1
    %v1888 = vsel %vm344, %v1885, %v1887
    %v1889 = vrot.slane %v1830, 1
    %v1890 = vsel %vm344, %v1887, %v1889
    %v1891 = vrot.slane %v1831, 1
    %v1892 = vsel %vm344, %v1889, %v1891
    %v1893 = vrot.slane %v1832, 1
    %v1894 = vsel %vm344, %v1891, %v1893
    %v1895 = vrot.slane %v1833, 1
    %v1896 = vsel %vm344, %v1893, %v1895
    %v1897 = vrot.slane %v1834, 1
    %v1898 = vsel %vm344, %v1895, %v1897
    %v1899 = vrot.slane %v1835, 1
    %v1900 = vsel %vm344, %v1897, %v1899
    %v1901 = vrot.slane %v1836, 1
    %v1902 = vsel %vm344, %v1899, %v1901
    %v1903 = vrot.slane %v1837, 1
    %v1904 = vsel %vm344, %v1901, %v1903
    %v1905 = vrot.slane %v1838, 1
    %v1906 = vsel %vm344, %v1903, %v1905
    %v1907 = vrot.slane %v1839, 1
    %v1908 = vsel %vm344, %v1905, %v1907
    %v1909 = vrot.slane %v1840, 1
    %v1910 = vsel %vm344, %v1907, %v1909
    %v1911 = vrot.slane %v1841, 1
    %v1912 = vsel %vm344, %v1909, %v1911
    %v1938 = vsel %vm344, %v1911, %v1866
    %v1939 = vmax.f32 %v1818, %v1868
    %v1940 = vmax.f32 %v1819, %v1870
    %v1941 = vmax.f32 %v1820, %v1872
    %v1942 = vmax.f32 %v1821, %v1874
    %v1943 = vmax.f32 %v1822, %v1876
    %v1944 = vmax.f32 %v1823, %v1878
    %v1945 = vmax.f32 %v1824, %v1880
    %v1946 = vmax.f32 %v1825, %v1882
    %v1947 = vmax.f32 %v1826, %v1884
    %v1948 = vmax.f32 %v1827, %v1886
    %v1949 = vmax.f32 %v1828, %v1888
    %v1950 = vmax.f32 %v1829, %v1890
    %v1951 = vmax.f32 %v1830, %v1892
    %v1952 = vmax.f32 %v1831, %v1894
    %v1953 = vmax.f32 %v1832, %v1896
    %v1954 = vmax.f32 %v1833, %v1898
    %v1955 = vmax.f32 %v1834, %v1900
    %v1956 = vmax.f32 %v1835, %v1902
    %v1957 = vmax.f32 %v1836, %v1904
    %v1958 = vmax.f32 %v1837, %v1906
    %v1959 = vmax.f32 %v1838, %v1908
    %v1960 = vmax.f32 %v1839, %v1910
    %v1961 = vmax.f32 %v1840, %v1912
    %v1962 = vmax.f32 %v1841, %v1938
    %v1963 = vpack.c.bf16 %v1940, %v1939
    %v1964 = vpack.c.bf16 %v1942, %v1941
    %v1965 = vpack.c.bf16 %v1944, %v1943
    %v1966 = vpack.c.bf16 %v1946, %v1945
    %v1967 = vpack.c.bf16 %v1948, %v1947
    %v1968 = vpack.c.bf16 %v1950, %v1949
    %v1969 = vpack.c.bf16 %v1952, %v1951
    %v1970 = vpack.c.bf16 %v1954, %v1953
    %v1971 = vpack.c.bf16 %v1956, %v1955
    %v1972 = vpack.c.bf16 %v1958, %v1957
    %v1973 = vpack.c.bf16 %v1960, %v1959
    %v1974 = vpack.c.bf16 %v1962, %v1961
    %v1975 = vld [vmem:[%s4] sm:$0xff]
    %v1976 = vld [vmem:[%s4 + $0x8] sm:$0xff]
    %v1977 = vld [vmem:[%s4 + $0x10] sm:$0xff]
    %v1978 = vld [vmem:[%s4 + $0x18] sm:$0xff]
    %v1979 = vld [vmem:[%s4 + $0x20] sm:$0xff]
    %v1980 = vld [vmem:[%s4 + $0x28] sm:$0xff]
    %v1981 = vld [vmem:[%s4 + $0x30] sm:$0xff]
    %v1982 = vld [vmem:[%s4 + $0x38] sm:$0xff]
    %v1983 = vld [vmem:[%s4 + $0x40] sm:$0xff]
    %v1984 = vld [vmem:[%s4 + $0x48] sm:$0xff]
    %v1985 = vld [vmem:[%s4 + $0x50] sm:$0xff]
    %v1986 = vld [vmem:[%s4 + $0x58] sm:$0xff]
    %v1987 = vld [vmem:[%s4 + $0x60] sm:$0x11]
    %v2001 = vunpack.c.l.b16 %v1975
    %v2002 = vunpack.c.h.b16 %v1975
    %v2003 = vunpack.c.l.b16 %v1976
    %v2004 = vunpack.c.h.b16 %v1976
    %v2005 = vunpack.c.l.b16 %v1977
    %v2006 = vunpack.c.h.b16 %v1977
    %v2007 = vunpack.c.l.b16 %v1978
    %v2008 = vunpack.c.h.b16 %v1978
    %v2009 = vunpack.c.l.b16 %v1979
    %v2010 = vunpack.c.h.b16 %v1979
    %v2011 = vunpack.c.l.b16 %v1980
    %v2012 = vunpack.c.h.b16 %v1980
    %v2013 = vunpack.c.l.b16 %v1981
    %v2014 = vunpack.c.h.b16 %v1981
    %v2015 = vunpack.c.l.b16 %v1982
    %v2016 = vunpack.c.h.b16 %v1982
    %v2017 = vunpack.c.l.b16 %v1983
    %v2018 = vunpack.c.h.b16 %v1983
    %v2019 = vunpack.c.l.b16 %v1984
    %v2020 = vunpack.c.h.b16 %v1984
    %v2021 = vunpack.c.l.b16 %v1985
    %v2022 = vunpack.c.h.b16 %v1985
    %v2023 = vunpack.c.l.b16 %v1986
    %v2024 = vunpack.c.h.b16 %v1986
    %v2025 = vunpack.c.l.b16 %v1987
    %v2026 = vunpack.c.h.b16 %v1987
    %v2027 = vpack.c.b16 %v2003, %v2001
    %v2028 = vpack.c.b16 %v2004, %v2002
    %v2029 = vpack.c.b16 %v2007, %v2005
    %v2030 = vpack.c.b16 %v2008, %v2006
    %v2031 = vpack.c.b16 %v2011, %v2009
    %v2032 = vpack.c.b16 %v2012, %v2010
    %v2033 = vpack.c.b16 %v2015, %v2013
    %v2034 = vpack.c.b16 %v2016, %v2014
    %v2035 = vpack.c.b16 %v2019, %v2017
    %v2036 = vpack.c.b16 %v2020, %v2018
    %v2037 = vpack.c.b16 %v2023, %v2021
    %v2038 = vpack.c.b16 %v2024, %v2022
    %v2039 = vpack.c.b16 %v2025, %v2025
    %v2040 = vpack.c.b16 %v2026, %v2026
    %vm2048 = vcmask 523264
    %v2050 = vsel %vm2048, %v2028, 0
    %v2053 = vsel %vm2048, %v2030, 0
    %v2056 = vsel %vm2048, %v2032, 0
    %v2059 = vsel %vm2048, %v2034, 0
    %v2062 = vsel %vm2048, %v2036, 0
    %v2065 = vsel %vm2048, %v2038, 0
    %v2068 = vsel %vm2048, %v2040, 0
    %2070 = vmatprep.subr.bf16.mxu0 0
    %2071 = vmatpush1.bf16.msra.mxu0 %v1970
    %2072 = vmatprep.subr.bf16.mxu0 0
    %2073 = vmatpush1.bf16.msra.mxu0 %v1969
    %2074 = vmatprep.subr.bf16.mxu0 0
    %2075 = vmatpush1.bf16.msra.mxu0 %v1968
    %2076 = vmatprep.subr.bf16.mxu0 0
    %2077 = vmatpush1.bf16.msra.mxu0 %v1967
    %2078 = vmatprep.subr.bf16.mxu0 0
    %2079 = vmatpush1.bf16.msra.mxu0 %v1966
    %2080 = vmatprep.subr.bf16.mxu0 0
    %2081 = vmatpush1.bf16.msra.mxu0 %v1965
    %2082 = vmatprep.subr.bf16.mxu0 0
    %2083 = vmatpush1.bf16.msra.mxu0 %v1964
    %2084 = vmatprep.subr.bf16.mxu0 0
    %2085 = vmatpush1.bf16.msra.mxu0 %v1963
    %2086 = vmatprep.subr.bf16.mxu0 0
    %2087 = vmatpush2.bf16.msra.mxu0 0
    %2088 = vmatprep.subr.bf16.mxu0 0
    %2089 = vmatpush2.bf16.msra.mxu0 0
    %2090 = vmatprep.subr.bf16.mxu0 0
    %2091 = vmatpush2.bf16.msra.mxu0 0
    %2092 = vmatprep.subr.bf16.mxu0 0
    %2093 = vmatpush2.bf16.msra.mxu0 0
    %2094 = vmatprep.subr.bf16.mxu0 0
    %2095 = vmatpush2.bf16.msra.mxu0 %v1974
    %2096 = vmatprep.subr.bf16.mxu0 0
    %2097 = vmatpush2.bf16.msra.mxu0 %v1973
    %2098 = vmatprep.subr.bf16.mxu0 0
    %2099 = vmatpush2.bf16.msra.mxu0 %v1972
    %2100 = vmatprep.subr.bf16.mxu0 0
    %2101 = vmatpush2.bf16.msra.mxu0 %v1971
    %2102 = vmatprep.mubr.bf16.mxu0 %v2050
    %2103 = vmatmul.mubr.bf16.gmra.mxu0 %v2027
    %v2104 = vpop.f32.mrf.mxu0
    %v2105 = vadd.f32 0.0, %v2104
    %v2106 = vpop.f32.mrf.mxu0
    %v2107 = vpop.f32.mrf.mxu0
    %v2108 = vadd.f32 0.0, %v2107
    %v2109 = vpop.f32.mrf.mxu0
    %2110 = vmatprep.mubr.bf16.mxu0 %v2053
    %2111 = vmatmul.mubr.bf16.gmra.mxu0 %v2029
    %v2112 = vpop.f32.mrf.mxu0
    %v2113 = vadd.f32 0.0, %v2112
    %v2114 = vpop.f32.mrf.mxu0
    %v2115 = vpop.f32.mrf.mxu0
    %v2116 = vadd.f32 0.0, %v2115
    %v2117 = vpop.f32.mrf.mxu0
    %2118 = vmatprep.mubr.bf16.mxu0 %v2056
    %2119 = vmatmul.mubr.bf16.gmra.mxu0 %v2031
    %v2120 = vpop.f32.mrf.mxu0
    %v2121 = vadd.f32 0.0, %v2120
    %v2122 = vpop.f32.mrf.mxu0
    %v2123 = vpop.f32.mrf.mxu0
    %v2124 = vadd.f32 0.0, %v2123
    %v2125 = vpop.f32.mrf.mxu0
    %2126 = vmatprep.mubr.bf16.mxu0 %v2059
    %2127 = vmatmul.mubr.bf16.gmra.mxu0 %v2033
    %v2128 = vpop.f32.mrf.mxu0
    %v2129 = vadd.f32 0.0, %v2128
    %v2130 = vpop.f32.mrf.mxu0
    %v2131 = vpop.f32.mrf.mxu0
    %v2132 = vadd.f32 0.0, %v2131
    %v2133 = vpop.f32.mrf.mxu0
    %2134 = vmatprep.mubr.bf16.mxu0 %v2062
    %2135 = vmatmul.mubr.bf16.gmra.mxu0 %v2035
    %v2136 = vpop.f32.mrf.mxu0
    %v2137 = vadd.f32 0.0, %v2136
    %v2138 = vpop.f32.mrf.mxu0
    %v2139 = vpop.f32.mrf.mxu0
    %v2140 = vadd.f32 0.0, %v2139
    %v2141 = vpop.f32.mrf.mxu0
    %2142 = vmatprep.mubr.bf16.mxu0 %v2065
    %2143 = vmatmul.mubr.bf16.gmra.mxu0 %v2037
    %v2144 = vpop.f32.mrf.mxu0
    %v2145 = vadd.f32 0.0, %v2144
    %v2146 = vpop.f32.mrf.mxu0
    %v2147 = vpop.f32.mrf.mxu0
    %v2148 = vadd.f32 0.0, %v2147
    %v2149 = vpop.f32.mrf.mxu0
    %2150 = vmatprep.mubr.bf16.mxu0 %v2068
    %2151 = vmatmul.mubr.bf16.gmra.mxu0 %v2039
    %v2152 = vpop.f32.mrf.mxu0
    %v2153 = vadd.f32 0.0, %v2152
    %v2154 = vpop.f32.mrf.mxu0
    %v2155 = vpop.f32.mrf.mxu0
    %v2156 = vpop.f32.mrf.mxu0
    %2157 = vdwg.mxu0
    %v2158 = vpack.c.bf16 %v2108, %v2105
    %v2159 = vpack.c.bf16 %v2116, %v2113
    %v2160 = vpack.c.bf16 %v2124, %v2121
    %v2161 = vpack.c.bf16 %v2132, %v2129
    %v2162 = vpack.c.bf16 %v2140, %v2137
    %v2163 = vpack.c.bf16 %v2148, %v2145
    %v2164 = vld [vmem:[%s5] sm:$0xf]
    %v2165 = vld [vmem:[%s5 + $0x4] sm:$0xf]
    %v2166 = vld [vmem:[%s5 + $0x8] sm:$0xf]
    %v2167 = vld [vmem:[%s5 + $0xc] sm:$0xf]
    %v2168 = vld [vmem:[%s5 + $0x10] sm:$0xf]
    %v2169 = vld [vmem:[%s5 + $0x14] sm:$0xf]
    %v2170 = vld [vmem:[%s5 + $0x18] sm:$0x1]
    %v2171 = vpack.c.bf16 %v2153, %v2153
    %s2172 = scalar_lea.vmem %s5, 28
    %v2173 = vld [vmem:[%s2172] sm:$0xf]
    %v2174 = vld [vmem:[%s2172 + $0x4] sm:$0xf]
    %v2175 = vld [vmem:[%s2172 + $0x8] sm:$0xf]
    %v2176 = vld [vmem:[%s2172 + $0xc] sm:$0xf]
    %v2177 = vld [vmem:[%s2172 + $0x10] sm:$0xf]
    %v2178 = vld [vmem:[%s2172 + $0x14] sm:$0xf]
    %v2179 = vld [vmem:[%s2172 + $0x18] sm:$0x1]
    %vm2180 = vsmask.f32 7424
    %v2182 = vshrl.u32 %v2158, 16
    %v2184 = vshll.u32 %v2158, 16
    %v2186 = vrot.slane %v2184, 1
    %v2187 = vor.u32 %v2182, %v2186
    %v2189 = vshll.u32 %v2159, 16
    %v2191 = vrot.slane %v2189, 1
    %v2192 = vsel %vm2180, %v2187, %v2191
    %v2193 = vshrl.u32 %v2159, 16
    %v2195 = vor.u32 %v2193, %v2191
    %v2197 = vshll.u32 %v2160, 16
    %v2199 = vrot.slane %v2197, 1
    %v2200 = vsel %vm2180, %v2195, %v2199
    %v2201 = vshrl.u32 %v2160, 16
    %v2203 = vor.u32 %v2201, %v2199
    %v2205 = vshll.u32 %v2161, 16
    %v2207 = vrot.slane %v2205, 1
    %v2208 = vsel %vm2180, %v2203, %v2207
    %v2209 = vshrl.u32 %v2161, 16
    %v2211 = vor.u32 %v2209, %v2207
    %v2213 = vshll.u32 %v2162, 16
    %v2215 = vrot.slane %v2213, 1
    %v2216 = vsel %vm2180, %v2211, %v2215
    %v2217 = vshrl.u32 %v2162, 16
    %v2219 = vor.u32 %v2217, %v2215
    %v2221 = vshll.u32 %v2163, 16
    %v2223 = vrot.slane %v2221, 1
    %v2224 = vsel %vm2180, %v2219, %v2223
    %v2225 = vshrl.u32 %v2163, 16
    %v2227 = vor.u32 %v2225, %v2223
    %v2229 = vshll.u32 %v2171, 16
    %v2231 = vrot.slane %v2229, 1
    %v2232 = vsel %vm2180, %v2227, %v2231
    %v2240 = vunpack.c.l.b16 %v2173
    %v2241 = vunpack.c.l.b16 %v2174
    %v2242 = vunpack.c.l.b16 %v2175
    %v2243 = vunpack.c.l.b16 %v2176
    %v2244 = vunpack.c.l.b16 %v2177
    %v2245 = vunpack.c.l.b16 %v2178
    %v2246 = vunpack.c.l.b16 %v2179
    %v2247 = vpack.c.b16 %v2241, %v2240
    %v2248 = vpack.c.b16 %v2243, %v2242
    %v2249 = vpack.c.b16 %v2245, %v2244
    %v2250 = vpack.c.b16 %v2246, %v2246
    %v2255 = vsel %vm1638, %v2192, 0
    %v2258 = vsel %vm1638, %v2200, 0
    %v2261 = vsel %vm1638, %v2208, 0
    %v2264 = vsel %vm1638, %v2216, 0
    %v2267 = vsel %vm1638, %v2224, 0
    %v2270 = vsel %vm1638, %v2232, 0
    %vm2272 = vcmask 1040384
    %v2274 = vsel %vm2272, %v2250, 0
    %2276 = vmatprep.subr.bf16.mxu0 0
    %2277 = vmatpush1.bf16.msra.mxu0 0
    %2278 = vmatprep.subr.bf16.mxu0 0
    %2279 = vmatpush1.bf16.msra.mxu0 0
    %2280 = vmatprep.subr.bf16.mxu0 0
    %2281 = vmatpush1.bf16.msra.mxu0 0
    %2282 = vmatprep.subr.bf16.mxu0 0
    %2283 = vmatpush1.bf16.msra.mxu0 0
    %2284 = vmatprep.subr.bf16.mxu0 0
    %2285 = vmatpush1.bf16.msra.mxu0 %v2274
    %2286 = vmatprep.subr.bf16.mxu0 0
    %2287 = vmatpush1.bf16.msra.mxu0 %v2249
    %2288 = vmatprep.subr.bf16.mxu0 0
    %2289 = vmatpush1.bf16.msra.mxu0 %v2248
    %2290 = vmatprep.subr.bf16.mxu0 0
    %2291 = vmatpush1.bf16.msra.mxu0 %v2247
    %2292 = vmatprep.subr.bf16.mxu0 0
    %2293 = vmatpush2.bf16.msra.mxu0 0
    %2294 = vmatprep.subr.bf16.mxu0 0
    %2295 = vmatpush2.bf16.msra.mxu0 0
    %2296 = vmatprep.subr.bf16.mxu0 0
    %2297 = vmatpush2.bf16.msra.mxu0 0
    %2298 = vmatprep.subr.bf16.mxu0 0
    %2299 = vmatpush2.bf16.msra.mxu0 0
    %2300 = vmatprep.subr.bf16.mxu0 0
    %2301 = vmatpush2.bf16.msra.mxu0 0
    %2302 = vmatprep.subr.bf16.mxu0 0
    %2303 = vmatpush2.bf16.msra.mxu0 0
    %2304 = vmatprep.subr.bf16.mxu0 0
    %2305 = vmatpush2.bf16.msra.mxu0 0
    %2306 = vmatprep.subr.bf16.mxu0 0
    %2307 = vmatpush2.bf16.msra.mxu0 0
    %2308 = vmatprep.mubr.bf16.mxu0 0
    %2309 = vmatmul.mubr.bf16.gmra.mxu0 %v2255
    %v2310 = vpop.f32.mrf.mxu0
    %v2311 = vadd.f32 0.0, %v2310
    %v2312 = vpop.f32.mrf.mxu0
    %v2313 = vpop.f32.mrf.mxu0
    %v2314 = vadd.f32 0.0, %v2313
    %v2315 = vpop.f32.mrf.mxu0
    %2316 = vmatprep.mubr.bf16.mxu0 0
    %2317 = vmatmul.mubr.bf16.gmra.mxu0 %v2258
    %v2318 = vpop.f32.mrf.mxu0
    %v2319 = vadd.f32 0.0, %v2318
    %v2320 = vpop.f32.mrf.mxu0
    %v2321 = vpop.f32.mrf.mxu0
    %v2322 = vadd.f32 0.0, %v2321
    %v2323 = vpop.f32.mrf.mxu0
    %2324 = vmatprep.mubr.bf16.mxu0 0
    %2325 = vmatmul.mubr.bf16.gmra.mxu0 %v2261
    %v2326 = vpop.f32.mrf.mxu0
    %v2327 = vadd.f32 0.0, %v2326
    %v2328 = vpop.f32.mrf.mxu0
    %v2329 = vpop.f32.mrf.mxu0
    %v2330 = vadd.f32 0.0, %v2329
    %v2331 = vpop.f32.mrf.mxu0
    %2332 = vmatprep.mubr.bf16.mxu0 0
    %2333 = vmatmul.mubr.bf16.gmra.mxu0 %v2264
    %v2334 = vpop.f32.mrf.mxu0
    %v2335 = vadd.f32 0.0, %v2334
    %v2336 = vpop.f32.mrf.mxu0
    %v2337 = vpop.f32.mrf.mxu0
    %v2338 = vadd.f32 0.0, %v2337
    %v2339 = vpop.f32.mrf.mxu0
    %2340 = vmatprep.mubr.bf16.mxu0 0
    %2341 = vmatmul.mubr.bf16.gmra.mxu0 %v2267
    %v2342 = vpop.f32.mrf.mxu0
    %v2343 = vadd.f32 0.0, %v2342
    %v2344 = vpop.f32.mrf.mxu0
    %v2345 = vpop.f32.mrf.mxu0
    %v2346 = vadd.f32 0.0, %v2345
    %v2347 = vpop.f32.mrf.mxu0
    %2348 = vmatprep.mubr.bf16.mxu0 0
    %2349 = vmatmul.mubr.bf16.gmra.mxu0 %v2270
    %v2350 = vpop.f32.mrf.mxu0
    %v2351 = vadd.f32 0.0, %v2350
    %v2352 = vpop.f32.mrf.mxu0
    %v2353 = vpop.f32.mrf.mxu0
    %v2354 = vadd.f32 0.0, %v2353
    %v2355 = vpop.f32.mrf.mxu0
    %2356 = vdwg.mxu0
    %v2364 = vunpack.c.l.b16 %v2164
    %v2365 = vunpack.c.l.b16 %v2165
    %v2366 = vunpack.c.l.b16 %v2166
    %v2367 = vunpack.c.l.b16 %v2167
    %v2368 = vunpack.c.l.b16 %v2168
    %v2369 = vunpack.c.l.b16 %v2169
    %v2370 = vunpack.c.l.b16 %v2170
    %v2371 = vpack.c.b16 %v2365, %v2364
    %v2372 = vpack.c.b16 %v2367, %v2366
    %v2373 = vpack.c.b16 %v2369, %v2368
    %v2374 = vpack.c.b16 %v2370, %v2370
    %v2378 = vsel %vm1638, %v2158, 0
    %v2380 = vsel %vm1638, %v2159, 0
    %v2382 = vsel %vm1638, %v2160, 0
    %v2384 = vsel %vm1638, %v2161, 0
    %v2386 = vsel %vm1638, %v2162, 0
    %v2388 = vsel %vm1638, %v2163, 0
    %v2391 = vsel %vm2272, %v2374, 0
    %2393 = vmatprep.subr.bf16.mxu0 0
    %2394 = vmatpush1.bf16.msra.mxu0 0
    %2395 = vmatprep.subr.bf16.mxu0 0
    %2396 = vmatpush1.bf16.msra.mxu0 0
    %2397 = vmatprep.subr.bf16.mxu0 0
    %2398 = vmatpush1.bf16.msra.mxu0 0
    %2399 = vmatprep.subr.bf16.mxu0 0
    %2400 = vmatpush1.bf16.msra.mxu0 0
    %2401 = vmatprep.subr.bf16.mxu0 0
    %2402 = vmatpush1.bf16.msra.mxu0 %v2391
    %2403 = vmatprep.subr.bf16.mxu0 0
    %2404 = vmatpush1.bf16.msra.mxu0 %v2373
    %2405 = vmatprep.subr.bf16.mxu0 0
    %2406 = vmatpush1.bf16.msra.mxu0 %v2372
    %2407 = vmatprep.subr.bf16.mxu0 0
    %2408 = vmatpush1.bf16.msra.mxu0 %v2371
    %2409 = vmatprep.subr.bf16.mxu0 0
    %2410 = vmatpush2.bf16.msra.mxu0 0
    %2411 = vmatprep.subr.bf16.mxu0 0
    %2412 = vmatpush2.bf16.msra.mxu0 0
    %2413 = vmatprep.subr.bf16.mxu0 0
    %2414 = vmatpush2.bf16.msra.mxu0 0
    %2415 = vmatprep.subr.bf16.mxu0 0
    %2416 = vmatpush2.bf16.msra.mxu0 0
    %2417 = vmatprep.subr.bf16.mxu0 0
    %2418 = vmatpush2.bf16.msra.mxu0 0
    %2419 = vmatprep.subr.bf16.mxu0 0
    %2420 = vmatpush2.bf16.msra.mxu0 0
    %2421 = vmatprep.subr.bf16.mxu0 0
    %2422 = vmatpush2.bf16.msra.mxu0 0
    %2423 = vmatprep.subr.bf16.mxu0 0
    %2424 = vmatpush2.bf16.msra.mxu0 0
    %2425 = vmatprep.mubr.bf16.mxu0 0
    %2426 = vmatmul.mubr.bf16.gmra.mxu0 %v2378
    %v2427 = vpop.f32.mrf.mxu0
    %v2428 = vadd.f32 %v2311, %v2427
    %v2429 = vpop.f32.mrf.mxu0
    %v2430 = vpop.f32.mrf.mxu0
    %v2431 = vadd.f32 %v2314, %v2430
    %v2432 = vpop.f32.mrf.mxu0
    %2433 = vmatprep.mubr.bf16.mxu0 0
    %2434 = vmatmul.mubr.bf16.gmra.mxu0 %v2380
    %v2435 = vpop.f32.mrf.mxu0
    %v2436 = vadd.f32 %v2319, %v2435
    %v2437 = vpop.f32.mrf.mxu0
    %v2438 = vpop.f32.mrf.mxu0
    %v2439 = vadd.f32 %v2322, %v2438
    %v2440 = vpop.f32.mrf.mxu0
    %2441 = vmatprep.mubr.bf16.mxu0 0
    %2442 = vmatmul.mubr.bf16.gmra.mxu0 %v2382
    %v2443 = vpop.f32.mrf.mxu0
    %v2444 = vadd.f32 %v2327, %v2443
    %v2445 = vpop.f32.mrf.mxu0
    %v2446 = vpop.f32.mrf.mxu0
    %v2447 = vadd.f32 %v2330, %v2446
    %v2448 = vpop.f32.mrf.mxu0
    %2449 = vmatprep.mubr.bf16.mxu0 0
    %2450 = vmatmul.mubr.bf16.gmra.mxu0 %v2384
    %v2451 = vpop.f32.mrf.mxu0
    %v2452 = vadd.f32 %v2335, %v2451
    %v2453 = vpop.f32.mrf.mxu0
    %v2454 = vpop.f32.mrf.mxu0
    %v2455 = vadd.f32 %v2338, %v2454
    %v2456 = vpop.f32.mrf.mxu0
    %2457 = vmatprep.mubr.bf16.mxu0 0
    %2458 = vmatmul.mubr.bf16.gmra.mxu0 %v2386
    %v2459 = vpop.f32.mrf.mxu0
    %v2460 = vadd.f32 %v2343, %v2459
    %v2461 = vpop.f32.mrf.mxu0
    %v2462 = vpop.f32.mrf.mxu0
    %v2463 = vadd.f32 %v2346, %v2462
    %v2464 = vpop.f32.mrf.mxu0
    %2465 = vmatprep.mubr.bf16.mxu0 0
    %2466 = vmatmul.mubr.bf16.gmra.mxu0 %v2388
    %v2467 = vpop.f32.mrf.mxu0
    %v2468 = vadd.f32 %v2351, %v2467
    %v2469 = vpop.f32.mrf.mxu0
    %v2470 = vpop.f32.mrf.mxu0
    %v2471 = vadd.f32 %v2354, %v2470
    %v2472 = vpop.f32.mrf.mxu0
    %2473 = vdwg.mxu0
    %s2474 = scalar_lea.vmem %s5, 56
    %v2475 = vld [vmem:[%s2474] sm:$0xf]
    %v2476 = vld [vmem:[%s2474 + $0x4] sm:$0xf]
    %v2477 = vld [vmem:[%s2474 + $0x8] sm:$0xf]
    %v2478 = vld [vmem:[%s2474 + $0xc] sm:$0xf]
    %v2479 = vld [vmem:[%s2474 + $0x10] sm:$0xf]
    %v2480 = vld [vmem:[%s2474 + $0x14] sm:$0xf]
    %v2481 = vld [vmem:[%s2474 + $0x18] sm:$0x1]
    %vm2489 = vcmask 1046528
    %v2490 = vrot.slane %v2158, 1
    %v2491 = vrot.slane %v2159, 1
    %v2492 = vsel %vm2489, %v2490, %v2491
    %v2493 = vrot.slane %v2160, 1
    %v2494 = vsel %vm2489, %v2491, %v2493
    %v2495 = vrot.slane %v2161, 1
    %v2496 = vsel %vm2489, %v2493, %v2495
    %v2497 = vrot.slane %v2162, 1
    %v2498 = vsel %vm2489, %v2495, %v2497
    %v2499 = vrot.slane %v2163, 1
    %v2500 = vsel %vm2489, %v2497, %v2499
    %v2501 = vrot.slane %v2171, 1
    %v2502 = vsel %vm2489, %v2499, %v2501
    %v2510 = vunpack.c.l.b16 %v2475
    %v2511 = vunpack.c.l.b16 %v2476
    %v2512 = vunpack.c.l.b16 %v2477
    %v2513 = vunpack.c.l.b16 %v2478
    %v2514 = vunpack.c.l.b16 %v2479
    %v2515 = vunpack.c.l.b16 %v2480
    %v2516 = vunpack.c.l.b16 %v2481
    %v2517 = vpack.c.b16 %v2511, %v2510
    %v2518 = vpack.c.b16 %v2513, %v2512
    %v2519 = vpack.c.b16 %v2515, %v2514
    %v2520 = vpack.c.b16 %v2516, %v2516
    %v2525 = vsel %vm1638, %v2492, 0
    %v2528 = vsel %vm1638, %v2494, 0
    %v2531 = vsel %vm1638, %v2496, 0
    %v2534 = vsel %vm1638, %v2498, 0
    %v2537 = vsel %vm1638, %v2500, 0
    %v2540 = vsel %vm1638, %v2502, 0
    %v2543 = vsel %vm2272, %v2520, 0
    %2545 = vmatprep.subr.bf16.mxu0 0
    %2546 = vmatpush1.bf16.msra.mxu0 0
    %2547 = vmatprep.subr.bf16.mxu0 0
    %2548 = vmatpush1.bf16.msra.mxu0 0
    %2549 = vmatprep.subr.bf16.mxu0 0
    %2550 = vmatpush1.bf16.msra.mxu0 0
    %2551 = vmatprep.subr.bf16.mxu0 0
    %2552 = vmatpush1.bf16.msra.mxu0 0
    %2553 = vmatprep.subr.bf16.mxu0 0
    %2554 = vmatpush1.bf16.msra.mxu0 %v2543
    %2555 = vmatprep.subr.bf16.mxu0 0
    %2556 = vmatpush1.bf16.msra.mxu0 %v2519
    %2557 = vmatprep.subr.bf16.mxu0 0
    %2558 = vmatpush1.bf16.msra.mxu0 %v2518
    %2559 = vmatprep.subr.bf16.mxu0 0
    %2560 = vmatpush1.bf16.msra.mxu0 %v2517
    %2561 = vmatprep.subr.bf16.mxu0 0
    %2562 = vmatpush2.bf16.msra.mxu0 0
    %2563 = vmatprep.subr.bf16.mxu0 0
    %2564 = vmatpush2.bf16.msra.mxu0 0
    %2565 = vmatprep.subr.bf16.mxu0 0
    %2566 = vmatpush2.bf16.msra.mxu0 0
    %2567 = vmatprep.subr.bf16.mxu0 0
    %2568 = vmatpush2.bf16.msra.mxu0 0
    %2569 = vmatprep.subr.bf16.mxu0 0
    %2570 = vmatpush2.bf16.msra.mxu0 0
    %2571 = vmatprep.subr.bf16.mxu0 0
    %2572 = vmatpush2.bf16.msra.mxu0 0
    %2573 = vmatprep.subr.bf16.mxu0 0
    %2574 = vmatpush2.bf16.msra.mxu0 0
    %2575 = vmatprep.subr.bf16.mxu0 0
    %2576 = vmatpush2.bf16.msra.mxu0 0
    %2577 = vmatprep.mubr.bf16.mxu0 0
    %2578 = vmatmul.mubr.bf16.gmra.mxu0 %v2525
    %v2579 = vpop.f32.mrf.mxu0
    %v2580 = vadd.f32 0.0, %v2579
    %v2581 = vpop.f32.mrf.mxu0
    %v2582 = vpop.f32.mrf.mxu0
    %v2583 = vadd.f32 0.0, %v2582
    %v2584 = vpop.f32.mrf.mxu0
    %2585 = vmatprep.mubr.bf16.mxu0 0
    %2586 = vmatmul.mubr.bf16.gmra.mxu0 %v2528
    %v2587 = vpop.f32.mrf.mxu0
    %v2588 = vadd.f32 0.0, %v2587
    %v2589 = vpop.f32.mrf.mxu0
    %v2590 = vpop.f32.mrf.mxu0
    %v2591 = vadd.f32 0.0, %v2590
    %v2592 = vpop.f32.mrf.mxu0
    %2593 = vmatprep.mubr.bf16.mxu0 0
    %2594 = vmatmul.mubr.bf16.gmra.mxu0 %v2531
    %v2595 = vpop.f32.mrf.mxu0
    %v2596 = vadd.f32 0.0, %v2595
    %v2597 = vpop.f32.mrf.mxu0
    %v2598 = vpop.f32.mrf.mxu0
    %v2599 = vadd.f32 0.0, %v2598
    %v2600 = vpop.f32.mrf.mxu0
    %2601 = vmatprep.mubr.bf16.mxu0 0
    %2602 = vmatmul.mubr.bf16.gmra.mxu0 %v2534
    %v2603 = vpop.f32.mrf.mxu0
    %v2604 = vadd.f32 0.0, %v2603
    %v2605 = vpop.f32.mrf.mxu0
    %v2606 = vpop.f32.mrf.mxu0
    %v2607 = vadd.f32 0.0, %v2606
    %v2608 = vpop.f32.mrf.mxu0
    %2609 = vmatprep.mubr.bf16.mxu0 0
    %2610 = vmatmul.mubr.bf16.gmra.mxu0 %v2537
    %v2611 = vpop.f32.mrf.mxu0
    %v2612 = vadd.f32 0.0, %v2611
    %v2613 = vpop.f32.mrf.mxu0
    %v2614 = vpop.f32.mrf.mxu0
    %v2615 = vadd.f32 0.0, %v2614
    %v2616 = vpop.f32.mrf.mxu0
    %2617 = vmatprep.mubr.bf16.mxu0 0
    %2618 = vmatmul.mubr.bf16.gmra.mxu0 %v2540
    %v2619 = vpop.f32.mrf.mxu0
    %v2620 = vadd.f32 0.0, %v2619
    %v2621 = vpop.f32.mrf.mxu0
    %v2622 = vpop.f32.mrf.mxu0
    %v2623 = vadd.f32 0.0, %v2622
    %v2624 = vpop.f32.mrf.mxu0
    %2625 = vdwg.mxu0
    %v2626 = vadd.f32 %v2428, %v2580
    %v2627 = vadd.f32 %v2431, %v2583
    %v2628 = vadd.f32 %v2436, %v2588
    %v2629 = vadd.f32 %v2439, %v2591
    %v2630 = vadd.f32 %v2444, %v2596
    %v2631 = vadd.f32 %v2447, %v2599
    %v2632 = vadd.f32 %v2452, %v2604
    %v2633 = vadd.f32 %v2455, %v2607
    %v2634 = vadd.f32 %v2460, %v2612
    %v2635 = vadd.f32 %v2463, %v2615
    %v2636 = vadd.f32 %v2468, %v2620
    %v2637 = vadd.f32 %v2471, %v2623
    %v2638 = vmax.f32 %v2626, 0.0
    %v2639 = vmax.f32 %v2627, 0.0
    %v2640 = vmax.f32 %v2628, 0.0
    %v2641 = vmax.f32 %v2629, 0.0
    %v2642 = vmax.f32 %v2630, 0.0
    %v2643 = vmax.f32 %v2631, 0.0
    %v2644 = vmax.f32 %v2632, 0.0
    %v2645 = vmax.f32 %v2633, 0.0
    %v2646 = vmax.f32 %v2634, 0.0
    %v2647 = vmax.f32 %v2635, 0.0
    %v2648 = vmax.f32 %v2636, 0.0
    %v2649 = vmax.f32 %v2637, 0.0
    %v2651 = vrot.slane %v2638, 1
    %2652 = vrot.lane.b32.xlu0 %v2651, 30
    %v2653 = vpop.permute.xlu0 %2652
    %v2655 = vrot.slane %v2638, 2
    %2656 = vrot.lane.b32.xlu0 %v2655, 60
    %v2657 = vpop.permute.xlu0 %2656
    %v2659 = vrot.slane %v2638, 3
    %2660 = vrot.lane.b32.xlu0 %v2659, 90
    %v2661 = vpop.permute.xlu0 %2660
    %v2663 = vrot.slane %v2638, 4
    %2664 = vrot.lane.b32.xlu0 %v2663, 120
    %v2665 = vpop.permute.xlu0 %2664
    %v2667 = vrot.slane %v2638, 5
    %2668 = vrot.lane.b32.xlu0 %v2667, 22
    %v2669 = vpop.permute.xlu0 %2668
    %v2671 = vrot.slane %v2638, 6
    %2672 = vrot.lane.b32.xlu0 %v2671, 52
    %v2673 = vpop.permute.xlu0 %2672
    %v2675 = vrot.slane %v2638, 7
    %2676 = vrot.lane.b32.xlu0 %v2675, 82
    %v2677 = vpop.permute.xlu0 %2676
    %2680 = vrot.lane.b32.xlu0 %v2639, 112
    %v2681 = vpop.permute.xlu0 %2680
    %v2683 = vrot.slane %v2639, 1
    %2684 = vrot.lane.b32.xlu0 %v2683, 14
    %v2685 = vpop.permute.xlu0 %2684
    %v2687 = vrot.slane %v2639, 2
    %2688 = vrot.lane.b32.xlu0 %v2687, 44
    %v2689 = vpop.permute.xlu0 %2688
    %v2691 = vrot.slane %v2639, 3
    %2692 = vrot.lane.b32.xlu0 %v2691, 74
    %v2693 = vpop.permute.xlu0 %2692
    %v2695 = vrot.slane %v2639, 4
    %2696 = vrot.lane.b32.xlu0 %v2695, 104
    %v2697 = vpop.permute.xlu0 %2696
    %v2699 = vrot.slane %v2639, 5
    %2700 = vrot.lane.b32.xlu0 %v2699, 6
    %v2701 = vpop.permute.xlu0 %2700
    %v2703 = vrot.slane %v2639, 6
    %2704 = vrot.lane.b32.xlu0 %v2703, 36
    %v2705 = vpop.permute.xlu0 %2704
    %v2707 = vrot.slane %v2639, 7
    %2708 = vrot.lane.b32.xlu0 %v2707, 66
    %v2709 = vpop.permute.xlu0 %2708
    %vm2711 = vcmask 244736
    %v2712 = vsel %vm2711, %v2638, %v2653
    %vm2713 = vcmask 490496
    %v2714 = vsel %vm2713, %v2712, %v2657
    %vm2715 = vcmask 736256
    %v2716 = vsel %vm2715, %v2714, %v2661
    %vm2717 = vcmask 982016
    %v2718 = vsel %vm2717, %v2716, %v2665
    %vm2719 = vcmask 179200
    %v2720 = vsel %vm2719, %v2665, %v2669
    %vm2721 = vcmask 424960
    %v2722 = vsel %vm2721, %v2720, %v2673
    %vm2723 = vcmask 670720
    %v2724 = vsel %vm2723, %v2722, %v2677
    %vm2725 = vcmask 916480
    %v2726 = vsel %vm2725, %v2724, %v2681
    %vm2727 = vcmask 113664
    %v2728 = vsel %vm2727, %v2681, %v2685
    %vm2729 = vcmask 359424
    %v2730 = vsel %vm2729, %v2728, %v2689
    %vm2731 = vcmask 605184
    %v2732 = vsel %vm2731, %v2730, %v2693
    %vm2733 = vcmask 850944
    %v2734 = vsel %vm2733, %v2732, %v2697
    %vm2735 = vcmask 48128
    %v2736 = vsel %vm2735, %v2697, %v2701
    %vm2737 = vcmask 293888
    %v2738 = vsel %vm2737, %v2736, %v2705
    %vm2739 = vcmask 539648
    %v2740 = vsel %vm2739, %v2738, %v2709
    %v2742 = vrot.slane %v2640, 1
    %2743 = vrot.lane.b32.xlu0 %v2742, 30
    %v2744 = vpop.permute.xlu0 %2743
    %v2746 = vrot.slane %v2640, 2
    %2747 = vrot.lane.b32.xlu0 %v2746, 60
    %v2748 = vpop.permute.xlu0 %2747
    %v2750 = vrot.slane %v2640, 3
    %2751 = vrot.lane.b32.xlu0 %v2750, 90
    %v2752 = vpop.permute.xlu0 %2751
    %v2754 = vrot.slane %v2640, 4
    %2755 = vrot.lane.b32.xlu0 %v2754, 120
    %v2756 = vpop.permute.xlu0 %2755
    %v2758 = vrot.slane %v2640, 5
    %2759 = vrot.lane.b32.xlu0 %v2758, 22
    %v2760 = vpop.permute.xlu0 %2759
    %v2762 = vrot.slane %v2640, 6
    %2763 = vrot.lane.b32.xlu0 %v2762, 52
    %v2764 = vpop.permute.xlu0 %2763
    %v2766 = vrot.slane %v2640, 7
    %2767 = vrot.lane.b32.xlu0 %v2766, 82
    %v2768 = vpop.permute.xlu0 %2767
    %2771 = vrot.lane.b32.xlu0 %v2641, 112
    %v2772 = vpop.permute.xlu0 %2771
    %v2774 = vrot.slane %v2641, 1
    %2775 = vrot.lane.b32.xlu0 %v2774, 14
    %v2776 = vpop.permute.xlu0 %2775
    %v2778 = vrot.slane %v2641, 2
    %2779 = vrot.lane.b32.xlu0 %v2778, 44
    %v2780 = vpop.permute.xlu0 %2779
    %v2782 = vrot.slane %v2641, 3
    %2783 = vrot.lane.b32.xlu0 %v2782, 74
    %v2784 = vpop.permute.xlu0 %2783
    %v2786 = vrot.slane %v2641, 4
    %2787 = vrot.lane.b32.xlu0 %v2786, 104
    %v2788 = vpop.permute.xlu0 %2787
    %v2790 = vrot.slane %v2641, 5
    %2791 = vrot.lane.b32.xlu0 %v2790, 6
    %v2792 = vpop.permute.xlu0 %2791
    %v2794 = vrot.slane %v2641, 6
    %2795 = vrot.lane.b32.xlu0 %v2794, 36
    %v2796 = vpop.permute.xlu0 %2795
    %v2798 = vrot.slane %v2641, 7
    %2799 = vrot.lane.b32.xlu0 %v2798, 66
    %v2800 = vpop.permute.xlu0 %2799
    %v2802 = vsel %vm2711, %v2640, %v2744
    %v2803 = vsel %vm2713, %v2802, %v2748
    %v2804 = vsel %vm2715, %v2803, %v2752
    %v2805 = vsel %vm2717, %v2804, %v2756
    %v2806 = vsel %vm2719, %v2756, %v2760
    %v2807 = vsel %vm2721, %v2806, %v2764
    %v2808 = vsel %vm2723, %v2807, %v2768
    %v2809 = vsel %vm2725, %v2808, %v2772
    %v2810 = vsel %vm2727, %v2772, %v2776
    %v2811 = vsel %vm2729, %v2810, %v2780
    %v2812 = vsel %vm2731, %v2811, %v2784
    %v2813 = vsel %vm2733, %v2812, %v2788
    %v2814 = vsel %vm2735, %v2788, %v2792
    %v2815 = vsel %vm2737, %v2814, %v2796
    %v2816 = vsel %vm2739, %v2815, %v2800
    %v2818 = vrot.slane %v2642, 1
    %2819 = vrot.lane.b32.xlu0 %v2818, 30
    %v2820 = vpop.permute.xlu0 %2819
    %v2822 = vrot.slane %v2642, 2
    %2823 = vrot.lane.b32.xlu0 %v2822, 60
    %v2824 = vpop.permute.xlu0 %2823
    %v2826 = vrot.slane %v2642, 3
    %2827 = vrot.lane.b32.xlu0 %v2826, 90
    %v2828 = vpop.permute.xlu0 %2827
    %v2830 = vrot.slane %v2642, 4
    %2831 = vrot.lane.b32.xlu0 %v2830, 120
    %v2832 = vpop.permute.xlu0 %2831
    %v2834 = vrot.slane %v2642, 5
    %2835 = vrot.lane.b32.xlu0 %v2834, 22
    %v2836 = vpop.permute.xlu0 %2835
    %v2838 = vrot.slane %v2642, 6
    %2839 = vrot.lane.b32.xlu0 %v2838, 52
    %v2840 = vpop.permute.xlu0 %2839
    %v2842 = vrot.slane %v2642, 7
    %2843 = vrot.lane.b32.xlu0 %v2842, 82
    %v2844 = vpop.permute.xlu0 %2843
    %2847 = vrot.lane.b32.xlu0 %v2643, 112
    %v2848 = vpop.permute.xlu0 %2847
    %v2850 = vrot.slane %v2643, 1
    %2851 = vrot.lane.b32.xlu0 %v2850, 14
    %v2852 = vpop.permute.xlu0 %2851
    %v2854 = vrot.slane %v2643, 2
    %2855 = vrot.lane.b32.xlu0 %v2854, 44
    %v2856 = vpop.permute.xlu0 %2855
    %v2858 = vrot.slane %v2643, 3
    %2859 = vrot.lane.b32.xlu0 %v2858, 74
    %v2860 = vpop.permute.xlu0 %2859
    %v2862 = vrot.slane %v2643, 4
    %2863 = vrot.lane.b32.xlu0 %v2862, 104
    %v2864 = vpop.permute.xlu0 %2863
    %v2866 = vrot.slane %v2643, 5
    %2867 = vrot.lane.b32.xlu0 %v2866, 6
    %v2868 = vpop.permute.xlu0 %2867
    %v2870 = vsel %vm2711, %v2642, %v2820
    %v2871 = vsel %vm2713, %v2870, %v2824
    %v2872 = vsel %vm2715, %v2871, %v2828
    %v2873 = vsel %vm2717, %v2872, %v2832
    %v2874 = vsel %vm2719, %v2832, %v2836
    %v2875 = vsel %vm2721, %v2874, %v2840
    %v2876 = vsel %vm2723, %v2875, %v2844
    %v2877 = vsel %vm2725, %v2876, %v2848
    %v2878 = vsel %vm2727, %v2848, %v2852
    %v2879 = vsel %vm2729, %v2878, %v2856
    %v2880 = vsel %vm2731, %v2879, %v2860
    %v2881 = vsel %vm2733, %v2880, %v2864
    %v2882 = vsel %vm2735, %v2864, %v2868
    %2887 = vrot.lane.b32.xlu0 %v2805, 96
    %v2888 = vpop.permute.xlu0 %2887
    %2889 = vrot.lane.b32.xlu0 %v2809, 96
    %v2890 = vpop.permute.xlu0 %2889
    %2891 = vrot.lane.b32.xlu0 %v2813, 96
    %v2892 = vpop.permute.xlu0 %2891
    %2893 = vrot.lane.b32.xlu0 %v2816, 96
    %v2894 = vpop.permute.xlu0 %2893
    %vm2895 = vcmask 785408
    %v2896 = vsel %vm2895, %v2888, %v2890
    %v2897 = vsel %vm2895, %v2890, %v2892
    %v2898 = vsel %vm2895, %v2892, %v2894
    %2908 = vrot.lane.b32.xlu0 %v2873, 64
    %v2909 = vpop.permute.xlu0 %2908
    %2910 = vrot.lane.b32.xlu0 %v2877, 64
    %v2911 = vpop.permute.xlu0 %2910
    %2912 = vrot.lane.b32.xlu0 %v2881, 64
    %v2913 = vpop.permute.xlu0 %2912
    %2914 = vrot.lane.b32.xlu0 %v2882, 64
    %v2915 = vpop.permute.xlu0 %2914
    %v2916 = vsel %vm2048, %v2909, %v2911
    %v2917 = vsel %vm2048, %v2911, %v2913
    %v2918 = vsel %vm2048, %v2913, %v2915
    %v2923 = vsel %vm2895, %v2740, %v2888
    %v2924 = vsel %vm2048, %v2894, %v2909
    %v2926 = vrot.slane %v2644, 1
    %2927 = vrot.lane.b32.xlu0 %v2926, 30
    %v2928 = vpop.permute.xlu0 %2927
    %v2930 = vrot.slane %v2644, 2
    %2931 = vrot.lane.b32.xlu0 %v2930, 60
    %v2932 = vpop.permute.xlu0 %2931
    %v2934 = vrot.slane %v2644, 3
    %2935 = vrot.lane.b32.xlu0 %v2934, 90
    %v2936 = vpop.permute.xlu0 %2935
    %v2938 = vrot.slane %v2644, 4
    %2939 = vrot.lane.b32.xlu0 %v2938, 120
    %v2940 = vpop.permute.xlu0 %2939
    %v2942 = vrot.slane %v2644, 5
    %2943 = vrot.lane.b32.xlu0 %v2942, 22
    %v2944 = vpop.permute.xlu0 %2943
    %v2946 = vrot.slane %v2644, 6
    %2947 = vrot.lane.b32.xlu0 %v2946, 52
    %v2948 = vpop.permute.xlu0 %2947
    %v2950 = vrot.slane %v2644, 7
    %2951 = vrot.lane.b32.xlu0 %v2950, 82
    %v2952 = vpop.permute.xlu0 %2951
    %2955 = vrot.lane.b32.xlu0 %v2645, 112
    %v2956 = vpop.permute.xlu0 %2955
    %v2958 = vrot.slane %v2645, 1
    %2959 = vrot.lane.b32.xlu0 %v2958, 14
    %v2960 = vpop.permute.xlu0 %2959
    %v2962 = vrot.slane %v2645, 2
    %2963 = vrot.lane.b32.xlu0 %v2962, 44
    %v2964 = vpop.permute.xlu0 %2963
    %v2966 = vrot.slane %v2645, 3
    %2967 = vrot.lane.b32.xlu0 %v2966, 74
    %v2968 = vpop.permute.xlu0 %2967
    %v2970 = vrot.slane %v2645, 4
    %2971 = vrot.lane.b32.xlu0 %v2970, 104
    %v2972 = vpop.permute.xlu0 %2971
    %v2974 = vrot.slane %v2645, 5
    %2975 = vrot.lane.b32.xlu0 %v2974, 6
    %v2976 = vpop.permute.xlu0 %2975
    %v2978 = vrot.slane %v2645, 6
    %2979 = vrot.lane.b32.xlu0 %v2978, 36
    %v2980 = vpop.permute.xlu0 %2979
    %v2982 = vrot.slane %v2645, 7
    %2983 = vrot.lane.b32.xlu0 %v2982, 66
    %v2984 = vpop.permute.xlu0 %2983
    %v2986 = vsel %vm2711, %v2644, %v2928
    %v2987 = vsel %vm2713, %v2986, %v2932
    %v2988 = vsel %vm2715, %v2987, %v2936
    %v2989 = vsel %vm2717, %v2988, %v2940
    %v2990 = vsel %vm2719, %v2940, %v2944
    %v2991 = vsel %vm2721, %v2990, %v2948
    %v2992 = vsel %vm2723, %v2991, %v2952
    %v2993 = vsel %vm2725, %v2992, %v2956
    %v2994 = vsel %vm2727, %v2956, %v2960
    %v2995 = vsel %vm2729, %v2994, %v2964
    %v2996 = vsel %vm2731, %v2995, %v2968
    %v2997 = vsel %vm2733, %v2996, %v2972
    %v2998 = vsel %vm2735, %v2972, %v2976
    %v2999 = vsel %vm2737, %v2998, %v2980
    %v3000 = vsel %vm2739, %v2999, %v2984
    %v3002 = vrot.slane %v2646, 1
    %3003 = vrot.lane.b32.xlu0 %v3002, 30
    %v3004 = vpop.permute.xlu0 %3003
    %v3006 = vrot.slane %v2646, 2
    %3007 = vrot.lane.b32.xlu0 %v3006, 60
    %v3008 = vpop.permute.xlu0 %3007
    %v3010 = vrot.slane %v2646, 3
    %3011 = vrot.lane.b32.xlu0 %v3010, 90
    %v3012 = vpop.permute.xlu0 %3011
    %v3014 = vrot.slane %v2646, 4
    %3015 = vrot.lane.b32.xlu0 %v3014, 120
    %v3016 = vpop.permute.xlu0 %3015
    %v3018 = vrot.slane %v2646, 5
    %3019 = vrot.lane.b32.xlu0 %v3018, 22
    %v3020 = vpop.permute.xlu0 %3019
    %v3022 = vrot.slane %v2646, 6
    %3023 = vrot.lane.b32.xlu0 %v3022, 52
    %v3024 = vpop.permute.xlu0 %3023
    %v3026 = vrot.slane %v2646, 7
    %3027 = vrot.lane.b32.xlu0 %v3026, 82
    %v3028 = vpop.permute.xlu0 %3027
    %3031 = vrot.lane.b32.xlu0 %v2647, 112
    %v3032 = vpop.permute.xlu0 %3031
    %v3034 = vrot.slane %v2647, 1
    %3035 = vrot.lane.b32.xlu0 %v3034, 14
    %v3036 = vpop.permute.xlu0 %3035
    %v3038 = vrot.slane %v2647, 2
    %3039 = vrot.lane.b32.xlu0 %v3038, 44
    %v3040 = vpop.permute.xlu0 %3039
    %v3042 = vrot.slane %v2647, 3
    %3043 = vrot.lane.b32.xlu0 %v3042, 74
    %v3044 = vpop.permute.xlu0 %3043
    %v3046 = vrot.slane %v2647, 4
    %3047 = vrot.lane.b32.xlu0 %v3046, 104
    %v3048 = vpop.permute.xlu0 %3047
    %v3050 = vrot.slane %v2647, 5
    %3051 = vrot.lane.b32.xlu0 %v3050, 6
    %v3052 = vpop.permute.xlu0 %3051
    %v3054 = vrot.slane %v2647, 6
    %3055 = vrot.lane.b32.xlu0 %v3054, 36
    %v3056 = vpop.permute.xlu0 %3055
    %v3058 = vrot.slane %v2647, 7
    %3059 = vrot.lane.b32.xlu0 %v3058, 66
    %v3060 = vpop.permute.xlu0 %3059
    %v3062 = vsel %vm2711, %v2646, %v3004
    %v3063 = vsel %vm2713, %v3062, %v3008
    %v3064 = vsel %vm2715, %v3063, %v3012
    %v3065 = vsel %vm2717, %v3064, %v3016
    %v3066 = vsel %vm2719, %v3016, %v3020
    %v3067 = vsel %vm2721, %v3066, %v3024
    %v3068 = vsel %vm2723, %v3067, %v3028
    %v3069 = vsel %vm2725, %v3068, %v3032
    %v3070 = vsel %vm2727, %v3032, %v3036
    %v3071 = vsel %vm2729, %v3070, %v3040
    %v3072 = vsel %vm2731, %v3071, %v3044
    %v3073 = vsel %vm2733, %v3072, %v3048
    %v3074 = vsel %vm2735, %v3048, %v3052
    %v3075 = vsel %vm2737, %v3074, %v3056
    %v3076 = vsel %vm2739, %v3075, %v3060
    %v3078 = vrot.slane %v2648, 1
    %3079 = vrot.lane.b32.xlu0 %v3078, 30
    %v3080 = vpop.permute.xlu0 %3079
    %v3082 = vrot.slane %v2648, 2
    %3083 = vrot.lane.b32.xlu0 %v3082, 60
    %v3084 = vpop.permute.xlu0 %3083
    %v3086 = vrot.slane %v2648, 3
    %3087 = vrot.lane.b32.xlu0 %v3086, 90
    %v3088 = vpop.permute.xlu0 %3087
    %v3090 = vrot.slane %v2648, 4
    %3091 = vrot.lane.b32.xlu0 %v3090, 120
    %v3092 = vpop.permute.xlu0 %3091
    %v3094 = vrot.slane %v2648, 5
    %3095 = vrot.lane.b32.xlu0 %v3094, 22
    %v3096 = vpop.permute.xlu0 %3095
    %v3098 = vrot.slane %v2648, 6
    %3099 = vrot.lane.b32.xlu0 %v3098, 52
    %v3100 = vpop.permute.xlu0 %3099
    %v3102 = vrot.slane %v2648, 7
    %3103 = vrot.lane.b32.xlu0 %v3102, 82
    %v3104 = vpop.permute.xlu0 %3103
    %3107 = vrot.lane.b32.xlu0 %v2649, 112
    %v3108 = vpop.permute.xlu0 %3107
    %v3110 = vrot.slane %v2649, 1
    %3111 = vrot.lane.b32.xlu0 %v3110, 14
    %v3112 = vpop.permute.xlu0 %3111
    %v3114 = vrot.slane %v2649, 2
    %3115 = vrot.lane.b32.xlu0 %v3114, 44
    %v3116 = vpop.permute.xlu0 %3115
    %v3118 = vrot.slane %v2649, 3
    %3119 = vrot.lane.b32.xlu0 %v3118, 74
    %v3120 = vpop.permute.xlu0 %3119
    %v3122 = vrot.slane %v2649, 4
    %3123 = vrot.lane.b32.xlu0 %v3122, 104
    %v3124 = vpop.permute.xlu0 %3123
    %v3126 = vrot.slane %v2649, 5
    %3127 = vrot.lane.b32.xlu0 %v3126, 6
    %v3128 = vpop.permute.xlu0 %3127
    %v3130 = vsel %vm2711, %v2648, %v3080
    %v3131 = vsel %vm2713, %v3130, %v3084
    %v3132 = vsel %vm2715, %v3131, %v3088
    %v3133 = vsel %vm2717, %v3132, %v3092
    %v3134 = vsel %vm2719, %v3092, %v3096
    %v3135 = vsel %vm2721, %v3134, %v3100
    %v3136 = vsel %vm2723, %v3135, %v3104
    %v3137 = vsel %vm2725, %v3136, %v3108
    %v3138 = vsel %vm2727, %v3108, %v3112
    %v3139 = vsel %vm2729, %v3138, %v3116
    %v3140 = vsel %vm2731, %v3139, %v3120
    %v3141 = vsel %vm2733, %v3140, %v3124
    %v3142 = vsel %vm2735, %v3124, %v3128
    %3147 = vrot.lane.b32.xlu0 %v3065, 96
    %v3148 = vpop.permute.xlu0 %3147
    %3149 = vrot.lane.b32.xlu0 %v3069, 96
    %v3150 = vpop.permute.xlu0 %3149
    %3151 = vrot.lane.b32.xlu0 %v3073, 96
    %v3152 = vpop.permute.xlu0 %3151
    %3153 = vrot.lane.b32.xlu0 %v3076, 96
    %v3154 = vpop.permute.xlu0 %3153
    %v3155 = vsel %vm2895, %v3148, %v3150
    %v3156 = vsel %vm2895, %v3150, %v3152
    %v3157 = vsel %vm2895, %v3152, %v3154
    %3164 = vrot.lane.b32.xlu0 %v3133, 64
    %v3165 = vpop.permute.xlu0 %3164
    %3166 = vrot.lane.b32.xlu0 %v3137, 64
    %v3167 = vpop.permute.xlu0 %3166
    %3168 = vrot.lane.b32.xlu0 %v3141, 64
    %v3169 = vpop.permute.xlu0 %3168
    %3170 = vrot.lane.b32.xlu0 %v3142, 64
    %v3171 = vpop.permute.xlu0 %3170
    %v3172 = vsel %vm2048, %v3165, %v3167
    %v3173 = vsel %vm2048, %v3167, %v3169
    %v3174 = vsel %vm2048, %v3169, %v3171
    %v3176 = vsel %vm2895, %v3000, %v3148
    %v3177 = vsel %vm2048, %v3154, %v3165
    %v3183 = vrot.slane %v2989, 7
    %v3184 = vrot.slane %v2993, 7
    %v3185 = vrot.slane %v2997, 7
    %v3186 = vrot.slane %v3176, 7
    %v3187 = vrot.slane %v3155, 7
    %v3188 = vrot.slane %v3156, 7
    %v3189 = vrot.slane %v3157, 7
    %v3190 = vrot.slane %v3177, 7
    %v3191 = vrot.slane %v3172, 7
    %v3192 = vrot.slane %v3173, 7
    %v3193 = vrot.slane %v3174, 7
    %v3205 = vsel %vm2272, %v2718, %v3183
    %v3206 = vsel %vm2272, %v2726, %v3184
    %v3207 = vsel %vm2272, %v2734, %v3185
    %v3208 = vsel %vm2272, %v2923, %v3186
    %v3209 = vsel %vm2272, %v2896, %v3187
    %v3210 = vsel %vm2272, %v2897, %v3188
    %v3211 = vsel %vm2272, %v2898, %v3189
    %v3212 = vsel %vm2272, %v2924, %v3190
    %v3213 = vsel %vm2272, %v2916, %v3191
    %v3214 = vsel %vm2272, %v2917, %v3192
    %v3215 = vsel %vm2272, %v2918, %v3193
    %v3216 = vpack.c.bf16 %v3205, %v3205
    %v3217 = vpack.c.bf16 %v3206, %v3206
    %v3218 = vpack.c.bf16 %v3207, %v3207
    %v3219 = vpack.c.bf16 %v3208, %v3208
    %v3220 = vpack.c.bf16 %v3209, %v3209
    %v3221 = vpack.c.bf16 %v3210, %v3210
    %v3222 = vpack.c.bf16 %v3211, %v3211
    %v3223 = vpack.c.bf16 %v3212, %v3212
    %v3224 = vpack.c.bf16 %v3213, %v3213
    %v3225 = vpack.c.bf16 %v3214, %v3214
    %v3226 = vpack.c.bf16 %v3215, %v3215
    %s3227 = smul.u32 4, 173
    %s3228 = smul.u32 %s3227, 4
    %s3229 = sshll.u32 %s3228, 4
    %3230 = dma.done [#allocation4], %s3229
    %v3231 = vld [vmem:[#allocation2] sm:$0xff]
    %v3232 = vld [vmem:[#allocation2 + $0x8] sm:$0xff]
    %v3233 = vld [vmem:[#allocation2 + $0x10] sm:$0xff]
    %v3234 = vld [vmem:[#allocation2 + $0x18] sm:$0xff]
    %v3235 = vld [vmem:[#allocation2 + $0x20] sm:$0xff]
    %v3236 = vld [vmem:[#allocation2 + $0x28] sm:$0xff]
    %v3237 = vld [vmem:[#allocation2 + $0x30] sm:$0xff]
    %v3238 = vld [vmem:[#allocation2 + $0x38] sm:$0xff]
    %v3239 = vld [vmem:[#allocation2 + $0x40] sm:$0xff]
    %v3240 = vld [vmem:[#allocation2 + $0x48] sm:$0xff]
    %v3241 = vld [vmem:[#allocation2 + $0x50] sm:$0xff]
    %v3242 = vld [vmem:[#allocation2 + $0x58] sm:$0xff]
    %v3243 = vld [vmem:[#allocation2 + $0x60] sm:$0xff]
    %v3244 = vld [vmem:[#allocation2 + $0x68] sm:$0xff]
    %v3245 = vld [vmem:[#allocation2 + $0x70] sm:$0xff]
    %v3246 = vld [vmem:[#allocation2 + $0x78] sm:$0xff]
    %v3247 = vld [vmem:[#allocation2 + $0x80] sm:$0xff]
    %v3248 = vld [vmem:[#allocation2 + $0x88] sm:$0xff]
    %v3249 = vld [vmem:[#allocation2 + $0x90] sm:$0xff]
    %v3250 = vld [vmem:[#allocation2 + $0x98] sm:$0xff]
    %v3251 = vld [vmem:[#allocation2 + $0xa0] sm:$0xff]
    %v3252 = vld [vmem:[#allocation2 + $0xa8] sm:$0xff]
    %v3253 = vld [vmem:[#allocation2 + $0xb0] sm:$0xff]
    %v3254 = vld [vmem:[#allocation2 + $0xb8] sm:$0xff]
    %v3255 = vld [vmem:[#allocation2 + $0xc0] sm:$0xff]
    %v3256 = vld [vmem:[#allocation2 + $0xc8] sm:$0xff]
    %v3257 = vld [vmem:[#allocation2 + $0xd0] sm:$0xff]
    %v3258 = vld [vmem:[#allocation2 + $0xd8] sm:$0xff]
    %v3259 = vld [vmem:[#allocation2 + $0xe0] sm:$0xff]
    %v3260 = vld [vmem:[#allocation2 + $0xe8] sm:$0xff]
    %v3261 = vld [vmem:[#allocation2 + $0xf0] sm:$0xff]
    %v3262 = vld [vmem:[#allocation2 + $0xf8] sm:$0xff]
    %v3263 = vld [vmem:[#allocation2 + $0x100] sm:$0xff]
    %v3264 = vld [vmem:[#allocation2 + $0x108] sm:$0xff]
    %v3265 = vld [vmem:[#allocation2 + $0x110] sm:$0xff]
    %v3266 = vld [vmem:[#allocation2 + $0x118] sm:$0xff]
    %v3267 = vld [vmem:[#allocation2 + $0x120] sm:$0xff]
    %v3268 = vld [vmem:[#allocation2 + $0x128] sm:$0xff]
    %v3269 = vld [vmem:[#allocation2 + $0x130] sm:$0xff]
    %v3270 = vld [vmem:[#allocation2 + $0x138] sm:$0xff]
    %v3271 = vld [vmem:[#allocation2 + $0x140] sm:$0xff]
    %v3272 = vld [vmem:[#allocation2 + $0x148] sm:$0xff]
    %v3273 = vld [vmem:[#allocation2 + $0x150] sm:$0xff]
    %v3274 = vld [vmem:[#allocation2 + $0x158] sm:$0xff]
    %v3275 = vld [vmem:[#allocation2 + $0x160] sm:$0xff]
    %v3276 = vld [vmem:[#allocation2 + $0x168] sm:$0xff]
    %v3277 = vld [vmem:[#allocation2 + $0x170] sm:$0xff]
    %v3278 = vld [vmem:[#allocation2 + $0x178] sm:$0xff]
    %v3279 = vld [vmem:[#allocation2 + $0x180] sm:$0xff]
    %v3280 = vld [vmem:[#allocation2 + $0x188] sm:$0xff]
    %v3281 = vld [vmem:[#allocation2 + $0x190] sm:$0xff]
    %v3282 = vld [vmem:[#allocation2 + $0x198] sm:$0xff]
    %v3283 = vld [vmem:[#allocation2 + $0x1a0] sm:$0xff]
    %v3284 = vld [vmem:[#allocation2 + $0x1a8] sm:$0xff]
    %v3285 = vld [vmem:[#allocation2 + $0x1b0] sm:$0xff]
    %v3286 = vld [vmem:[#allocation2 + $0x1b8] sm:$0xff]
    %v3287 = vld [vmem:[#allocation2 + $0x1c0] sm:$0xff]
    %v3288 = vld [vmem:[#allocation2 + $0x1c8] sm:$0xff]
    %v3289 = vld [vmem:[#allocation2 + $0x1d0] sm:$0xff]
    %v3290 = vld [vmem:[#allocation2 + $0x1d8] sm:$0xff]
    %v3291 = vld [vmem:[#allocation2 + $0x1e0] sm:$0xff]
    %v3292 = vld [vmem:[#allocation2 + $0x1e8] sm:$0xff]
    %v3293 = vld [vmem:[#allocation2 + $0x1f0] sm:$0xff]
    %v3294 = vld [vmem:[#allocation2 + $0x1f8] sm:$0xff]
    %v3295 = vld [vmem:[#allocation2 + $0x200] sm:$0xff]
    %v3296 = vld [vmem:[#allocation2 + $0x208] sm:$0xff]
    %v3297 = vld [vmem:[#allocation2 + $0x210] sm:$0xff]
    %v3298 = vld [vmem:[#allocation2 + $0x218] sm:$0xff]
    %v3299 = vld [vmem:[#allocation2 + $0x220] sm:$0xff]
    %v3300 = vld [vmem:[#allocation2 + $0x228] sm:$0xff]
    %v3301 = vld [vmem:[#allocation2 + $0x230] sm:$0xff]
    %v3302 = vld [vmem:[#allocation2 + $0x238] sm:$0xff]
    %v3303 = vld [vmem:[#allocation2 + $0x240] sm:$0xff]
    %v3304 = vld [vmem:[#allocation2 + $0x248] sm:$0xff]
    %v3305 = vld [vmem:[#allocation2 + $0x250] sm:$0xff]
    %v3306 = vld [vmem:[#allocation2 + $0x258] sm:$0xff]
    %v3307 = vld [vmem:[#allocation2 + $0x260] sm:$0xff]
    %v3308 = vld [vmem:[#allocation2 + $0x268] sm:$0xff]
    %v3309 = vld [vmem:[#allocation2 + $0x270] sm:$0xff]
    %v3310 = vld [vmem:[#allocation2 + $0x278] sm:$0xff]
    %v3311 = vld [vmem:[#allocation2 + $0x280] sm:$0xff]
    %v3312 = vld [vmem:[#allocation2 + $0x288] sm:$0xff]
    %v3313 = vld [vmem:[#allocation2 + $0x290] sm:$0xff]
    %v3314 = vld [vmem:[#allocation2 + $0x298] sm:$0xff]
    %v3315 = vld [vmem:[#allocation2 + $0x2a0] sm:$0xff]
    %v3316 = vld [vmem:[#allocation2 + $0x2a8] sm:$0xff]
    %v3317 = vld [vmem:[#allocation2 + $0x2b0] sm:$0xff]
    %v3318 = vld [vmem:[#allocation2 + $0x2b8] sm:$0xff]
    %v3319 = vld [vmem:[#allocation2 + $0x2c0] sm:$0xff]
    %v3320 = vld [vmem:[#allocation2 + $0x2c8] sm:$0xff]
    %v3321 = vld [vmem:[#allocation2 + $0x2d0] sm:$0xff]
    %v3322 = vld [vmem:[#allocation2 + $0x2d8] sm:$0xff]
    %v3323 = vld [vmem:[#allocation2 + $0x2e0] sm:$0xff]
    %v3324 = vld [vmem:[#allocation2 + $0x2e8] sm:$0xff]
    %v3325 = vld [vmem:[#allocation2 + $0x2f0] sm:$0xff]
    %v3326 = vld [vmem:[#allocation2 + $0x2f8] sm:$0xff]
    %v3327 = vld [vmem:[#allocation2 + $0x300] sm:$0xff]
    %v3328 = vld [vmem:[#allocation2 + $0x308] sm:$0xff]
    %v3329 = vld [vmem:[#allocation2 + $0x310] sm:$0xff]
    %v3330 = vld [vmem:[#allocation2 + $0x318] sm:$0xff]
    %v3331 = vld [vmem:[#allocation2 + $0x320] sm:$0xff]
    %v3332 = vld [vmem:[#allocation2 + $0x328] sm:$0xff]
    %v3333 = vld [vmem:[#allocation2 + $0x330] sm:$0xff]
    %v3334 = vld [vmem:[#allocation2 + $0x338] sm:$0xff]
    %v3335 = vld [vmem:[#allocation2 + $0x340] sm:$0xff]
    %v3336 = vld [vmem:[#allocation2 + $0x348] sm:$0xff]
    %v3337 = vld [vmem:[#allocation2 + $0x350] sm:$0xff]
    %v3338 = vld [vmem:[#allocation2 + $0x358] sm:$0xff]
    %v3339 = vld [vmem:[#allocation2 + $0x360] sm:$0xff]
    %v3340 = vld [vmem:[#allocation2 + $0x368] sm:$0xff]
    %v3341 = vld [vmem:[#allocation2 + $0x370] sm:$0xff]
    %v3342 = vld [vmem:[#allocation2 + $0x378] sm:$0xff]
    %v3343 = vld [vmem:[#allocation2 + $0x380] sm:$0xff]
    %v3344 = vld [vmem:[#allocation2 + $0x388] sm:$0xff]
    %v3345 = vld [vmem:[#allocation2 + $0x390] sm:$0xff]
    %v3346 = vld [vmem:[#allocation2 + $0x398] sm:$0xff]
    %v3347 = vld [vmem:[#allocation2 + $0x3a0] sm:$0xff]
    %v3348 = vld [vmem:[#allocation2 + $0x3a8] sm:$0xff]
    %v3349 = vld [vmem:[#allocation2 + $0x3b0] sm:$0xff]
    %v3350 = vld [vmem:[#allocation2 + $0x3b8] sm:$0xff]
    %v3351 = vld [vmem:[#allocation2 + $0x3c0] sm:$0xff]
    %v3352 = vld [vmem:[#allocation2 + $0x3c8] sm:$0xff]
    %v3353 = vld [vmem:[#allocation2 + $0x3d0] sm:$0xff]
    %v3354 = vld [vmem:[#allocation2 + $0x3d8] sm:$0xff]
    %v3355 = vld [vmem:[#allocation2 + $0x3e0] sm:$0xff]
    %v3356 = vld [vmem:[#allocation2 + $0x3e8] sm:$0xff]
    %v3357 = vld [vmem:[#allocation2 + $0x3f0] sm:$0xff]
    %v3358 = vld [vmem:[#allocation2 + $0x3f8] sm:$0xff]
    %v3359 = vld [vmem:[#allocation2 + $0x400] sm:$0xff]
    %v3360 = vld [vmem:[#allocation2 + $0x408] sm:$0xff]
    %v3361 = vld [vmem:[#allocation2 + $0x410] sm:$0xff]
    %v3362 = vld [vmem:[#allocation2 + $0x418] sm:$0xff]
    %v3363 = vld [vmem:[#allocation2 + $0x420] sm:$0xff]
    %v3364 = vld [vmem:[#allocation2 + $0x428] sm:$0xff]
    %v3365 = vld [vmem:[#allocation2 + $0x430] sm:$0xff]
    %v3366 = vld [vmem:[#allocation2 + $0x438] sm:$0xff]
    %v3367 = vld [vmem:[#allocation2 + $0x440] sm:$0xff]
    %v3368 = vld [vmem:[#allocation2 + $0x448] sm:$0xff]
    %v3369 = vld [vmem:[#allocation2 + $0x450] sm:$0xff]
    %v3370 = vld [vmem:[#allocation2 + $0x458] sm:$0xff]
    %v3371 = vld [vmem:[#allocation2 + $0x460] sm:$0xff]
    %v3372 = vld [vmem:[#allocation2 + $0x468] sm:$0xff]
    %v3373 = vld [vmem:[#allocation2 + $0x470] sm:$0xff]
    %v3374 = vld [vmem:[#allocation2 + $0x478] sm:$0xff]
    %v3375 = vld [vmem:[#allocation2 + $0x480] sm:$0xff]
    %v3376 = vld [vmem:[#allocation2 + $0x488] sm:$0xff]
    %v3377 = vld [vmem:[#allocation2 + $0x490] sm:$0xff]
    %v3378 = vld [vmem:[#allocation2 + $0x498] sm:$0xff]
    %v3379 = vld [vmem:[#allocation2 + $0x4a0] sm:$0xff]
    %v3380 = vld [vmem:[#allocation2 + $0x4a8] sm:$0xff]
    %v3381 = vld [vmem:[#allocation2 + $0x4b0] sm:$0xff]
    %v3382 = vld [vmem:[#allocation2 + $0x4b8] sm:$0xff]
    %v3383 = vld [vmem:[#allocation2 + $0x4c0] sm:$0xff]
    %v3384 = vld [vmem:[#allocation2 + $0x4c8] sm:$0xff]
    %v3385 = vld [vmem:[#allocation2 + $0x4d0] sm:$0xff]
    %v3386 = vld [vmem:[#allocation2 + $0x4d8] sm:$0xff]
    %v3387 = vld [vmem:[#allocation2 + $0x4e0] sm:$0xff]
    %v3388 = vld [vmem:[#allocation2 + $0x4e8] sm:$0xff]
    %v3389 = vld [vmem:[#allocation2 + $0x4f0] sm:$0xff]
    %v3390 = vld [vmem:[#allocation2 + $0x4f8] sm:$0xff]
    %v3391 = vld [vmem:[#allocation2 + $0x500] sm:$0xff]
    %v3392 = vld [vmem:[#allocation2 + $0x508] sm:$0xff]
    %v3393 = vld [vmem:[#allocation2 + $0x510] sm:$0xff]
    %v3394 = vld [vmem:[#allocation2 + $0x518] sm:$0xff]
    %v3395 = vld [vmem:[#allocation2 + $0x520] sm:$0xff]
    %v3396 = vld [vmem:[#allocation2 + $0x528] sm:$0xff]
    %v3397 = vld [vmem:[#allocation2 + $0x530] sm:$0xff]
    %v3398 = vld [vmem:[#allocation2 + $0x538] sm:$0xff]
    %v3399 = vld [vmem:[#allocation2 + $0x540] sm:$0xff]
    %v3400 = vld [vmem:[#allocation2 + $0x548] sm:$0xff]
    %v3401 = vld [vmem:[#allocation2 + $0x550] sm:$0xff]
    %v3402 = vld [vmem:[#allocation2 + $0x558] sm:$0xff]
    %v3403 = vld [vmem:[#allocation2 + $0x560] sm:$0xff]
    %v3404 = vld [vmem:[#allocation2 + $0x568] sm:$0xff]
    %v3405 = vld [vmem:[#allocation2 + $0x570] sm:$0xff]
    %v3406 = vld [vmem:[#allocation2 + $0x578] sm:$0xff]
    %v3407 = vld [vmem:[#allocation2 + $0x580] sm:$0xff]
    %v3408 = vld [vmem:[#allocation2 + $0x588] sm:$0xff]
    %v3409 = vld [vmem:[#allocation2 + $0x590] sm:$0xff]
    %v3410 = vld [vmem:[#allocation2 + $0x598] sm:$0xff]
    %v3411 = vld [vmem:[#allocation2 + $0x5a0] sm:$0xff]
    %v3412 = vld [vmem:[#allocation2 + $0x5a8] sm:$0xff]
    %v3413 = vld [vmem:[#allocation2 + $0x5b0] sm:$0xff]
    %v3414 = vld [vmem:[#allocation2 + $0x5b8] sm:$0xff]
    %v3415 = vld [vmem:[#allocation2 + $0x5c0] sm:$0xff]
    %v3416 = vld [vmem:[#allocation2 + $0x5c8] sm:$0xff]
    %v3417 = vld [vmem:[#allocation2 + $0x5d0] sm:$0xff]
    %v3418 = vld [vmem:[#allocation2 + $0x5d8] sm:$0xff]
    %v3419 = vld [vmem:[#allocation2 + $0x5e0] sm:$0xff]
    %v3420 = vld [vmem:[#allocation2 + $0x5e8] sm:$0xff]
    %v3421 = vld [vmem:[#allocation2 + $0x5f0] sm:$0xff]
    %v3422 = vld [vmem:[#allocation2 + $0x5f8] sm:$0xff]
    %v3423 = vld [vmem:[#allocation2 + $0x600] sm:$0xff]
    %v3424 = vld [vmem:[#allocation2 + $0x608] sm:$0xff]
    %v3425 = vld [vmem:[#allocation2 + $0x610] sm:$0xff]
    %v3426 = vld [vmem:[#allocation2 + $0x618] sm:$0xff]
    %v3427 = vld [vmem:[#allocation2 + $0x620] sm:$0xff]
    %v3428 = vld [vmem:[#allocation2 + $0x628] sm:$0xff]
    %v3429 = vld [vmem:[#allocation2 + $0x630] sm:$0xff]
    %v3430 = vld [vmem:[#allocation2 + $0x638] sm:$0xff]
    %v3431 = vld [vmem:[#allocation2 + $0x640] sm:$0xff]
    %v3432 = vld [vmem:[#allocation2 + $0x648] sm:$0xff]
    %v3433 = vld [vmem:[#allocation2 + $0x650] sm:$0xff]
    %v3434 = vld [vmem:[#allocation2 + $0x658] sm:$0xff]
    %v3435 = vld [vmem:[#allocation2 + $0x660] sm:$0xff]
    %v3436 = vld [vmem:[#allocation2 + $0x668] sm:$0xff]
    %v3437 = vld [vmem:[#allocation2 + $0x670] sm:$0xff]
    %v3438 = vld [vmem:[#allocation2 + $0x678] sm:$0xff]
    %v3439 = vld [vmem:[#allocation2 + $0x680] sm:$0xff]
    %v3440 = vld [vmem:[#allocation2 + $0x688] sm:$0xff]
    %v3441 = vld [vmem:[#allocation2 + $0x690] sm:$0xff]
    %v3442 = vld [vmem:[#allocation2 + $0x698] sm:$0xff]
    %v3443 = vld [vmem:[#allocation2 + $0x6a0] sm:$0xff]
    %v3444 = vld [vmem:[#allocation2 + $0x6a8] sm:$0xff]
    %v3445 = vld [vmem:[#allocation2 + $0x6b0] sm:$0xff]
    %v3446 = vld [vmem:[#allocation2 + $0x6b8] sm:$0xff]
    %v3447 = vld [vmem:[#allocation2 + $0x6c0] sm:$0xff]
    %v3448 = vld [vmem:[#allocation2 + $0x6c8] sm:$0xff]
    %v3449 = vld [vmem:[#allocation2 + $0x6d0] sm:$0xff]
    %v3450 = vld [vmem:[#allocation2 + $0x6d8] sm:$0xff]
    %v3451 = vld [vmem:[#allocation2 + $0x6e0] sm:$0xff]
    %v3452 = vld [vmem:[#allocation2 + $0x6e8] sm:$0xff]
    %v3453 = vld [vmem:[#allocation2 + $0x6f0] sm:$0xff]
    %v3454 = vld [vmem:[#allocation2 + $0x6f8] sm:$0xff]
    %v3455 = vld [vmem:[#allocation2 + $0x700] sm:$0xff]
    %v3456 = vld [vmem:[#allocation2 + $0x708] sm:$0xff]
    %v3457 = vld [vmem:[#allocation2 + $0x710] sm:$0xff]
    %v3458 = vld [vmem:[#allocation2 + $0x718] sm:$0xff]
    %v3459 = vld [vmem:[#allocation2 + $0x720] sm:$0xff]
    %v3460 = vld [vmem:[#allocation2 + $0x728] sm:$0xff]
    %v3461 = vld [vmem:[#allocation2 + $0x730] sm:$0xff]
    %v3462 = vld [vmem:[#allocation2 + $0x738] sm:$0xff]
    %v3463 = vld [vmem:[#allocation2 + $0x740] sm:$0xff]
    %v3464 = vld [vmem:[#allocation2 + $0x748] sm:$0xff]
    %v3465 = vld [vmem:[#allocation2 + $0x750] sm:$0xff]
    %v3466 = vld [vmem:[#allocation2 + $0x758] sm:$0xff]
    %v3467 = vld [vmem:[#allocation2 + $0x760] sm:$0xff]
    %v3468 = vld [vmem:[#allocation2 + $0x768] sm:$0xff]
    %v3469 = vld [vmem:[#allocation2 + $0x770] sm:$0xff]
    %v3470 = vld [vmem:[#allocation2 + $0x778] sm:$0xff]
    %v3471 = vld [vmem:[#allocation2 + $0x780] sm:$0xff]
    %v3472 = vld [vmem:[#allocation2 + $0x788] sm:$0xff]
    %v3473 = vld [vmem:[#allocation2 + $0x790] sm:$0xff]
    %v3474 = vld [vmem:[#allocation2 + $0x798] sm:$0xff]
    %v3475 = vld [vmem:[#allocation2 + $0x7a0] sm:$0xff]
    %v3476 = vld [vmem:[#allocation2 + $0x7a8] sm:$0xff]
    %v3477 = vld [vmem:[#allocation2 + $0x7b0] sm:$0xff]
    %v3478 = vld [vmem:[#allocation2 + $0x7b8] sm:$0xff]
    %v3479 = vld [vmem:[#allocation2 + $0x7c0] sm:$0xff]
    %v3480 = vld [vmem:[#allocation2 + $0x7c8] sm:$0xff]
    %v3481 = vld [vmem:[#allocation2 + $0x7d0] sm:$0xff]
    %v3482 = vld [vmem:[#allocation2 + $0x7d8] sm:$0xff]
    %v3483 = vld [vmem:[#allocation2 + $0x7e0] sm:$0xff]
    %v3484 = vld [vmem:[#allocation2 + $0x7e8] sm:$0xff]
    %v3485 = vld [vmem:[#allocation2 + $0x7f0] sm:$0xff]
    %v3486 = vld [vmem:[#allocation2 + $0x7f8] sm:$0xff]
    %v3487 = vld [vmem:[#allocation2 + $0x800] sm:$0xff]
    %v3488 = vld [vmem:[#allocation2 + $0x808] sm:$0xff]
    %v3489 = vld [vmem:[#allocation2 + $0x810] sm:$0xff]
    %v3490 = vld [vmem:[#allocation2 + $0x818] sm:$0xff]
    %v3491 = vld [vmem:[#allocation2 + $0x820] sm:$0xff]
    %v3492 = vld [vmem:[#allocation2 + $0x828] sm:$0xff]
    %v3493 = vld [vmem:[#allocation2 + $0x830] sm:$0xff]
    %v3494 = vld [vmem:[#allocation2 + $0x838] sm:$0xff]
    %v3495 = vld [vmem:[#allocation2 + $0x840] sm:$0xff]
    %v3496 = vld [vmem:[#allocation2 + $0x848] sm:$0xff]
    %v3497 = vld [vmem:[#allocation2 + $0x850] sm:$0xff]
    %v3498 = vld [vmem:[#allocation2 + $0x858] sm:$0xff]
    %v3499 = vld [vmem:[#allocation2 + $0x860] sm:$0xff]
    %v3500 = vld [vmem:[#allocation2 + $0x868] sm:$0xff]
    %v3501 = vld [vmem:[#allocation2 + $0x870] sm:$0xff]
    %v3502 = vld [vmem:[#allocation2 + $0x878] sm:$0xff]
    %v3503 = vld [vmem:[#allocation2 + $0x880] sm:$0xff]
    %v3504 = vld [vmem:[#allocation2 + $0x888] sm:$0xff]
    %v3505 = vld [vmem:[#allocation2 + $0x890] sm:$0xff]
    %v3506 = vld [vmem:[#allocation2 + $0x898] sm:$0xff]
    %v3507 = vld [vmem:[#allocation2 + $0x8a0] sm:$0xff]
    %v3508 = vld [vmem:[#allocation2 + $0x8a8] sm:$0xff]
    %v3509 = vld [vmem:[#allocation2 + $0x8b0] sm:$0xff]
    %v3510 = vld [vmem:[#allocation2 + $0x8b8] sm:$0xff]
    %v3511 = vld [vmem:[#allocation2 + $0x8c0] sm:$0xff]
    %v3512 = vld [vmem:[#allocation2 + $0x8c8] sm:$0xff]
    %v3513 = vld [vmem:[#allocation2 + $0x8d0] sm:$0xff]
    %v3514 = vld [vmem:[#allocation2 + $0x8d8] sm:$0xff]
    %v3515 = vld [vmem:[#allocation2 + $0x8e0] sm:$0xff]
    %v3516 = vld [vmem:[#allocation2 + $0x8e8] sm:$0xff]
    %v3517 = vld [vmem:[#allocation2 + $0x8f0] sm:$0xff]
    %v3518 = vld [vmem:[#allocation2 + $0x8f8] sm:$0xff]
    %v3519 = vld [vmem:[#allocation2 + $0x900] sm:$0xff]
    %v3520 = vld [vmem:[#allocation2 + $0x908] sm:$0xff]
    %v3521 = vld [vmem:[#allocation2 + $0x910] sm:$0xff]
    %v3522 = vld [vmem:[#allocation2 + $0x918] sm:$0xff]
    %v3523 = vld [vmem:[#allocation2 + $0x920] sm:$0xff]
    %v3524 = vld [vmem:[#allocation2 + $0x928] sm:$0xff]
    %v3525 = vld [vmem:[#allocation2 + $0x930] sm:$0xff]
    %v3526 = vld [vmem:[#allocation2 + $0x938] sm:$0xff]
    %v3527 = vld [vmem:[#allocation2 + $0x940] sm:$0xff]
    %v3528 = vld [vmem:[#allocation2 + $0x948] sm:$0xff]
    %v3529 = vld [vmem:[#allocation2 + $0x950] sm:$0xff]
    %v3530 = vld [vmem:[#allocation2 + $0x958] sm:$0xff]
    %v3531 = vld [vmem:[#allocation2 + $0x960] sm:$0xff]
    %v3532 = vld [vmem:[#allocation2 + $0x968] sm:$0xff]
    %v3533 = vld [vmem:[#allocation2 + $0x970] sm:$0xff]
    %v3534 = vld [vmem:[#allocation2 + $0x978] sm:$0xff]
    %v3535 = vld [vmem:[#allocation2 + $0x980] sm:$0xff]
    %v3536 = vld [vmem:[#allocation2 + $0x988] sm:$0xff]
    %v3537 = vld [vmem:[#allocation2 + $0x990] sm:$0xff]
    %v3538 = vld [vmem:[#allocation2 + $0x998] sm:$0xff]
    %v3539 = vld [vmem:[#allocation2 + $0x9a0] sm:$0xff]
    %v3540 = vld [vmem:[#allocation2 + $0x9a8] sm:$0xff]
    %v3541 = vld [vmem:[#allocation2 + $0x9b0] sm:$0xff]
    %v3542 = vld [vmem:[#allocation2 + $0x9b8] sm:$0xff]
    %v3543 = vld [vmem:[#allocation2 + $0x9c0] sm:$0xff]
    %v3544 = vld [vmem:[#allocation2 + $0x9c8] sm:$0xff]
    %v3545 = vld [vmem:[#allocation2 + $0x9d0] sm:$0xff]
    %v3546 = vld [vmem:[#allocation2 + $0x9d8] sm:$0xff]
    %v3547 = vld [vmem:[#allocation2 + $0x9e0] sm:$0xff]
    %v3548 = vld [vmem:[#allocation2 + $0x9e8] sm:$0xff]
    %v3549 = vld [vmem:[#allocation2 + $0x9f0] sm:$0xff]
    %v3550 = vld [vmem:[#allocation2 + $0x9f8] sm:$0xff]
    %v3551 = vld [vmem:[#allocation2 + $0xa00] sm:$0xff]
    %v3552 = vld [vmem:[#allocation2 + $0xa08] sm:$0xff]
    %v3553 = vld [vmem:[#allocation2 + $0xa10] sm:$0xff]
    %v3554 = vld [vmem:[#allocation2 + $0xa18] sm:$0xff]
    %v3555 = vld [vmem:[#allocation2 + $0xa20] sm:$0xff]
    %v3556 = vld [vmem:[#allocation2 + $0xa28] sm:$0xff]
    %v3557 = vld [vmem:[#allocation2 + $0xa30] sm:$0xff]
    %v3558 = vld [vmem:[#allocation2 + $0xa38] sm:$0xff]
    %v3559 = vld [vmem:[#allocation2 + $0xa40] sm:$0xff]
    %v3560 = vld [vmem:[#allocation2 + $0xa48] sm:$0xff]
    %v3561 = vld [vmem:[#allocation2 + $0xa50] sm:$0xff]
    %v3562 = vld [vmem:[#allocation2 + $0xa58] sm:$0xff]
    %v3563 = vld [vmem:[#allocation2 + $0xa60] sm:$0xff]
    %v3564 = vld [vmem:[#allocation2 + $0xa68] sm:$0xff]
    %v3565 = vld [vmem:[#allocation2 + $0xa70] sm:$0xff]
    %v3566 = vld [vmem:[#allocation2 + $0xa78] sm:$0xff]
    %v3567 = vld [vmem:[#allocation2 + $0xa80] sm:$0xff]
    %v3568 = vld [vmem:[#allocation2 + $0xa88] sm:$0xff]
    %v3569 = vld [vmem:[#allocation2 + $0xa90] sm:$0xff]
    %v3570 = vld [vmem:[#allocation2 + $0xa98] sm:$0xff]
    %v3571 = vld [vmem:[#allocation2 + $0xaa0] sm:$0xff]
    %v3572 = vld [vmem:[#allocation2 + $0xaa8] sm:$0xff]
    %v3573 = vld [vmem:[#allocation2 + $0xab0] sm:$0xff]
    %v3574 = vld [vmem:[#allocation2 + $0xab8] sm:$0xff]
    %v3575 = vld [vmem:[#allocation2 + $0xac0] sm:$0x33]
    %v3576 = vld [vmem:[#allocation2 + $0xac8] sm:$0x33]
    %v3577 = vld [vmem:[#allocation11] sm:$0xf]
    %v3579 = vlaneseq
    %v3580 = vshrl.u32 %v3579, 7
    %v3581 = vsub.s32 0, %v3580
    %v3582 = vrot.slane %v3577, %v3581
    %v3583 = vlaneseq
    %v3584 = vshrl.u32 %v3583, 7
    %v3585 = vsub.s32 1, %v3584
    %v3586 = vrot.slane %v3577, %v3585
    %v3587 = vlaneseq
    %v3588 = vshrl.u32 %v3587, 7
    %v3589 = vsub.s32 2, %v3588
    %v3590 = vrot.slane %v3577, %v3589
    %v3591 = vlaneseq
    %v3592 = vshrl.u32 %v3591, 7
    %v3593 = vsub.s32 3, %v3592
    %v3594 = vrot.slane %v3577, %v3593
    %v3945 = vunpack.c.l.b16 %v3231
    %v3946 = vunpack.c.h.b16 %v3231
    %v3947 = vunpack.c.l.b16 %v3232
    %v3948 = vunpack.c.h.b16 %v3232
    %v3949 = vunpack.c.l.b16 %v3233
    %v3950 = vunpack.c.h.b16 %v3233
    %v3951 = vunpack.c.l.b16 %v3234
    %v3952 = vunpack.c.h.b16 %v3234
    %v3953 = vunpack.c.l.b16 %v3235
    %v3954 = vunpack.c.h.b16 %v3235
    %v3955 = vunpack.c.l.b16 %v3236
    %v3956 = vunpack.c.h.b16 %v3236
    %v3957 = vunpack.c.l.b16 %v3237
    %v3958 = vunpack.c.h.b16 %v3237
    %v3959 = vunpack.c.l.b16 %v3238
    %v3960 = vunpack.c.h.b16 %v3238
    %v3961 = vunpack.c.l.b16 %v3239
    %v3962 = vunpack.c.h.b16 %v3239
    %v3963 = vunpack.c.l.b16 %v3240
    %v3964 = vunpack.c.h.b16 %v3240
    %v3965 = vunpack.c.l.b16 %v3241
    %v3966 = vunpack.c.h.b16 %v3241
    %v3967 = vunpack.c.l.b16 %v3242
    %v3968 = vunpack.c.h.b16 %v3242
    %v3969 = vunpack.c.l.b16 %v3243
    %v3970 = vunpack.c.h.b16 %v3243
    %v3971 = vunpack.c.l.b16 %v3244
    %v3972 = vunpack.c.h.b16 %v3244
    %v3973 = vunpack.c.l.b16 %v3245
    %v3974 = vunpack.c.h.b16 %v3245
    %v3975 = vunpack.c.l.b16 %v3246
    %v3976 = vunpack.c.h.b16 %v3246
    %v3977 = vunpack.c.l.b16 %v3247
    %v3978 = vunpack.c.h.b16 %v3247
    %v3979 = vunpack.c.l.b16 %v3248
    %v3980 = vunpack.c.h.b16 %v3248
    %v3981 = vunpack.c.l.b16 %v3249
    %v3982 = vunpack.c.h.b16 %v3249
    %v3983 = vunpack.c.l.b16 %v3250
    %v3984 = vunpack.c.h.b16 %v3250
    %v3985 = vunpack.c.l.b16 %v3251
    %v3986 = vunpack.c.h.b16 %v3251
    %v3987 = vunpack.c.l.b16 %v3252
    %v3988 = vunpack.c.h.b16 %v3252
    %v3989 = vunpack.c.l.b16 %v3253
    %v3990 = vunpack.c.h.b16 %v3253
    %v3991 = vunpack.c.l.b16 %v3254
    %v3992 = vunpack.c.h.b16 %v3254
    %v3993 = vunpack.c.l.b16 %v3255
    %v3994 = vunpack.c.h.b16 %v3255
    %v3995 = vunpack.c.l.b16 %v3256
    %v3996 = vunpack.c.h.b16 %v3256
    %v3997 = vunpack.c.l.b16 %v3257
    %v3998 = vunpack.c.h.b16 %v3257
    %v3999 = vunpack.c.l.b16 %v3258
    %v4000 = vunpack.c.h.b16 %v3258
    %v4001 = vunpack.c.l.b16 %v3259
    %v4002 = vunpack.c.h.b16 %v3259
    %v4003 = vunpack.c.l.b16 %v3260
    %v4004 = vunpack.c.h.b16 %v3260
    %v4005 = vunpack.c.l.b16 %v3261
    %v4006 = vunpack.c.h.b16 %v3261
    %v4007 = vunpack.c.l.b16 %v3262
    %v4008 = vunpack.c.h.b16 %v3262
    %v4009 = vunpack.c.l.b16 %v3263
    %v4010 = vunpack.c.h.b16 %v3263
    %v4011 = vunpack.c.l.b16 %v3264
    %v4012 = vunpack.c.h.b16 %v3264
    %v4013 = vunpack.c.l.b16 %v3265
    %v4014 = vunpack.c.h.b16 %v3265
    %v4015 = vunpack.c.l.b16 %v3266
    %v4016 = vunpack.c.h.b16 %v3266
    %v4017 = vunpack.c.l.b16 %v3267
    %v4018 = vunpack.c.h.b16 %v3267
    %v4019 = vunpack.c.l.b16 %v3268
    %v4020 = vunpack.c.h.b16 %v3268
    %v4021 = vunpack.c.l.b16 %v3269
    %v4022 = vunpack.c.h.b16 %v3269
    %v4023 = vunpack.c.l.b16 %v3270
    %v4024 = vunpack.c.h.b16 %v3270
    %v4025 = vunpack.c.l.b16 %v3271
    %v4026 = vunpack.c.h.b16 %v3271
    %v4027 = vunpack.c.l.b16 %v3272
    %v4028 = vunpack.c.h.b16 %v3272
    %v4029 = vunpack.c.l.b16 %v3273
    %v4030 = vunpack.c.h.b16 %v3273
    %v4031 = vunpack.c.l.b16 %v3274
    %v4032 = vunpack.c.h.b16 %v3274
    %v4033 = vunpack.c.l.b16 %v3275
    %v4034 = vunpack.c.h.b16 %v3275
    %v4035 = vunpack.c.l.b16 %v3276
    %v4036 = vunpack.c.h.b16 %v3276
    %v4037 = vunpack.c.l.b16 %v3277
    %v4038 = vunpack.c.h.b16 %v3277
    %v4039 = vunpack.c.l.b16 %v3278
    %v4040 = vunpack.c.h.b16 %v3278
    %v4041 = vunpack.c.l.b16 %v3279
    %v4042 = vunpack.c.h.b16 %v3279
    %v4043 = vunpack.c.l.b16 %v3280
    %v4044 = vunpack.c.h.b16 %v3280
    %v4045 = vunpack.c.l.b16 %v3281
    %v4046 = vunpack.c.h.b16 %v3281
    %v4047 = vunpack.c.l.b16 %v3282
    %v4048 = vunpack.c.h.b16 %v3282
    %v4049 = vunpack.c.l.b16 %v3283
    %v4050 = vunpack.c.h.b16 %v3283
    %v4051 = vunpack.c.l.b16 %v3284
    %v4052 = vunpack.c.h.b16 %v3284
    %v4053 = vunpack.c.l.b16 %v3285
    %v4054 = vunpack.c.h.b16 %v3285
    %v4055 = vunpack.c.l.b16 %v3286
    %v4056 = vunpack.c.h.b16 %v3286
    %v4057 = vunpack.c.l.b16 %v3287
    %v4058 = vunpack.c.h.b16 %v3287
    %v4059 = vunpack.c.l.b16 %v3288
    %v4060 = vunpack.c.h.b16 %v3288
    %v4061 = vunpack.c.l.b16 %v3289
    %v4062 = vunpack.c.h.b16 %v3289
    %v4063 = vunpack.c.l.b16 %v3290
    %v4064 = vunpack.c.h.b16 %v3290
    %v4065 = vunpack.c.l.b16 %v3291
    %v4066 = vunpack.c.h.b16 %v3291
    %v4067 = vunpack.c.l.b16 %v3292
    %v4068 = vunpack.c.h.b16 %v3292
    %v4069 = vunpack.c.l.b16 %v3293
    %v4070 = vunpack.c.h.b16 %v3293
    %v4071 = vunpack.c.l.b16 %v3294
    %v4072 = vunpack.c.h.b16 %v3294
    %v4073 = vunpack.c.l.b16 %v3295
    %v4074 = vunpack.c.h.b16 %v3295
    %v4075 = vunpack.c.l.b16 %v3296
    %v4076 = vunpack.c.h.b16 %v3296
    %v4077 = vunpack.c.l.b16 %v3297
    %v4078 = vunpack.c.h.b16 %v3297
    %v4079 = vunpack.c.l.b16 %v3298
    %v4080 = vunpack.c.h.b16 %v3298
    %v4081 = vunpack.c.l.b16 %v3299
    %v4082 = vunpack.c.h.b16 %v3299
    %v4083 = vunpack.c.l.b16 %v3300
    %v4084 = vunpack.c.h.b16 %v3300
    %v4085 = vunpack.c.l.b16 %v3301
    %v4086 = vunpack.c.h.b16 %v3301
    %v4087 = vunpack.c.l.b16 %v3302
    %v4088 = vunpack.c.h.b16 %v3302
    %v4089 = vunpack.c.l.b16 %v3303
    %v4090 = vunpack.c.h.b16 %v3303
    %v4091 = vunpack.c.l.b16 %v3304
    %v4092 = vunpack.c.h.b16 %v3304
    %v4093 = vunpack.c.l.b16 %v3305
    %v4094 = vunpack.c.h.b16 %v3305
    %v4095 = vunpack.c.l.b16 %v3306
    %v4096 = vunpack.c.h.b16 %v3306
    %v4097 = vunpack.c.l.b16 %v3307
    %v4098 = vunpack.c.h.b16 %v3307
    %v4099 = vunpack.c.l.b16 %v3308
    %v4100 = vunpack.c.h.b16 %v3308
    %v4101 = vunpack.c.l.b16 %v3309
    %v4102 = vunpack.c.h.b16 %v3309
    %v4103 = vunpack.c.l.b16 %v3310
    %v4104 = vunpack.c.h.b16 %v3310
    %v4105 = vunpack.c.l.b16 %v3311
    %v4106 = vunpack.c.h.b16 %v3311
    %v4107 = vunpack.c.l.b16 %v3312
    %v4108 = vunpack.c.h.b16 %v3312
    %v4109 = vunpack.c.l.b16 %v3313
    %v4110 = vunpack.c.h.b16 %v3313
    %v4111 = vunpack.c.l.b16 %v3314
    %v4112 = vunpack.c.h.b16 %v3314
    %v4113 = vunpack.c.l.b16 %v3315
    %v4114 = vunpack.c.h.b16 %v3315
    %v4115 = vunpack.c.l.b16 %v3316
    %v4116 = vunpack.c.h.b16 %v3316
    %v4117 = vunpack.c.l.b16 %v3317
    %v4118 = vunpack.c.h.b16 %v3317
    %v4119 = vunpack.c.l.b16 %v3318
    %v4120 = vunpack.c.h.b16 %v3318
    %v4121 = vunpack.c.l.b16 %v3319
    %v4122 = vunpack.c.h.b16 %v3319
    %v4123 = vunpack.c.l.b16 %v3320
    %v4124 = vunpack.c.h.b16 %v3320
    %v4125 = vunpack.c.l.b16 %v3321
    %v4126 = vunpack.c.h.b16 %v3321
    %v4127 = vunpack.c.l.b16 %v3322
    %v4128 = vunpack.c.h.b16 %v3322
    %v4129 = vunpack.c.l.b16 %v3323
    %v4130 = vunpack.c.h.b16 %v3323
    %v4131 = vunpack.c.l.b16 %v3324
    %v4132 = vunpack.c.h.b16 %v3324
    %v4133 = vunpack.c.l.b16 %v3325
    %v4134 = vunpack.c.h.b16 %v3325
    %v4135 = vunpack.c.l.b16 %v3326
    %v4136 = vunpack.c.h.b16 %v3326
    %v4137 = vunpack.c.l.b16 %v3327
    %v4138 = vunpack.c.h.b16 %v3327
    %v4139 = vunpack.c.l.b16 %v3328
    %v4140 = vunpack.c.h.b16 %v3328
    %v4141 = vunpack.c.l.b16 %v3329
    %v4142 = vunpack.c.h.b16 %v3329
    %v4143 = vunpack.c.l.b16 %v3330
    %v4144 = vunpack.c.h.b16 %v3330
    %v4145 = vunpack.c.l.b16 %v3331
    %v4146 = vunpack.c.h.b16 %v3331
    %v4147 = vunpack.c.l.b16 %v3332
    %v4148 = vunpack.c.h.b16 %v3332
    %v4149 = vunpack.c.l.b16 %v3333
    %v4150 = vunpack.c.h.b16 %v3333
    %v4151 = vunpack.c.l.b16 %v3334
    %v4152 = vunpack.c.h.b16 %v3334
    %v4153 = vunpack.c.l.b16 %v3335
    %v4154 = vunpack.c.h.b16 %v3335
    %v4155 = vunpack.c.l.b16 %v3336
    %v4156 = vunpack.c.h.b16 %v3336
    %v4157 = vunpack.c.l.b16 %v3337
    %v4158 = vunpack.c.h.b16 %v3337
    %v4159 = vunpack.c.l.b16 %v3338
    %v4160 = vunpack.c.h.b16 %v3338
    %v4161 = vunpack.c.l.b16 %v3339
    %v4162 = vunpack.c.h.b16 %v3339
    %v4163 = vunpack.c.l.b16 %v3340
    %v4164 = vunpack.c.h.b16 %v3340
    %v4165 = vunpack.c.l.b16 %v3341
    %v4166 = vunpack.c.h.b16 %v3341
    %v4167 = vunpack.c.l.b16 %v3342
    %v4168 = vunpack.c.h.b16 %v3342
    %v4169 = vunpack.c.l.b16 %v3343
    %v4170 = vunpack.c.h.b16 %v3343
    %v4171 = vunpack.c.l.b16 %v3344
    %v4172 = vunpack.c.h.b16 %v3344
    %v4173 = vunpack.c.l.b16 %v3345
    %v4174 = vunpack.c.h.b16 %v3345
    %v4175 = vunpack.c.l.b16 %v3346
    %v4176 = vunpack.c.h.b16 %v3346
    %v4177 = vunpack.c.l.b16 %v3347
    %v4178 = vunpack.c.h.b16 %v3347
    %v4179 = vunpack.c.l.b16 %v3348
    %v4180 = vunpack.c.h.b16 %v3348
    %v4181 = vunpack.c.l.b16 %v3349
    %v4182 = vunpack.c.h.b16 %v3349
    %v4183 = vunpack.c.l.b16 %v3350
    %v4184 = vunpack.c.h.b16 %v3350
    %v4185 = vunpack.c.l.b16 %v3351
    %v4186 = vunpack.c.h.b16 %v3351
    %v4187 = vunpack.c.l.b16 %v3352
    %v4188 = vunpack.c.h.b16 %v3352
    %v4189 = vunpack.c.l.b16 %v3353
    %v4190 = vunpack.c.h.b16 %v3353
    %v4191 = vunpack.c.l.b16 %v3354
    %v4192 = vunpack.c.h.b16 %v3354
    %v4193 = vunpack.c.l.b16 %v3355
    %v4194 = vunpack.c.h.b16 %v3355
    %v4195 = vunpack.c.l.b16 %v3356
    %v4196 = vunpack.c.h.b16 %v3356
    %v4197 = vunpack.c.l.b16 %v3357
    %v4198 = vunpack.c.h.b16 %v3357
    %v4199 = vunpack.c.l.b16 %v3358
    %v4200 = vunpack.c.h.b16 %v3358
    %v4201 = vunpack.c.l.b16 %v3359
    %v4202 = vunpack.c.h.b16 %v3359
    %v4203 = vunpack.c.l.b16 %v3360
    %v4204 = vunpack.c.h.b16 %v3360
    %v4205 = vunpack.c.l.b16 %v3361
    %v4206 = vunpack.c.h.b16 %v3361
    %v4207 = vunpack.c.l.b16 %v3362
    %v4208 = vunpack.c.h.b16 %v3362
    %v4209 = vunpack.c.l.b16 %v3363
    %v4210 = vunpack.c.h.b16 %v3363
    %v4211 = vunpack.c.l.b16 %v3364
    %v4212 = vunpack.c.h.b16 %v3364
    %v4213 = vunpack.c.l.b16 %v3365
    %v4214 = vunpack.c.h.b16 %v3365
    %v4215 = vunpack.c.l.b16 %v3366
    %v4216 = vunpack.c.h.b16 %v3366
    %v4217 = vunpack.c.l.b16 %v3367
    %v4218 = vunpack.c.h.b16 %v3367
    %v4219 = vunpack.c.l.b16 %v3368
    %v4220 = vunpack.c.h.b16 %v3368
    %v4221 = vunpack.c.l.b16 %v3369
    %v4222 = vunpack.c.h.b16 %v3369
    %v4223 = vunpack.c.l.b16 %v3370
    %v4224 = vunpack.c.h.b16 %v3370
    %v4225 = vunpack.c.l.b16 %v3371
    %v4226 = vunpack.c.h.b16 %v3371
    %v4227 = vunpack.c.l.b16 %v3372
    %v4228 = vunpack.c.h.b16 %v3372
    %v4229 = vunpack.c.l.b16 %v3373
    %v4230 = vunpack.c.h.b16 %v3373
    %v4231 = vunpack.c.l.b16 %v3374
    %v4232 = vunpack.c.h.b16 %v3374
    %v4233 = vunpack.c.l.b16 %v3375
    %v4234 = vunpack.c.h.b16 %v3375
    %v4235 = vunpack.c.l.b16 %v3376
    %v4236 = vunpack.c.h.b16 %v3376
    %v4237 = vunpack.c.l.b16 %v3377
    %v4238 = vunpack.c.h.b16 %v3377
    %v4239 = vunpack.c.l.b16 %v3378
    %v4240 = vunpack.c.h.b16 %v3378
    %v4241 = vunpack.c.l.b16 %v3379
    %v4242 = vunpack.c.h.b16 %v3379
    %v4243 = vunpack.c.l.b16 %v3380
    %v4244 = vunpack.c.h.b16 %v3380
    %v4245 = vunpack.c.l.b16 %v3381
    %v4246 = vunpack.c.h.b16 %v3381
    %v4247 = vunpack.c.l.b16 %v3382
    %v4248 = vunpack.c.h.b16 %v3382
    %v4249 = vunpack.c.l.b16 %v3383
    %v4250 = vunpack.c.h.b16 %v3383
    %v4251 = vunpack.c.l.b16 %v3384
    %v4252 = vunpack.c.h.b16 %v3384
    %v4253 = vunpack.c.l.b16 %v3385
    %v4254 = vunpack.c.h.b16 %v3385
    %v4255 = vunpack.c.l.b16 %v3386
    %v4256 = vunpack.c.h.b16 %v3386
    %v4257 = vunpack.c.l.b16 %v3387
    %v4258 = vunpack.c.h.b16 %v3387
    %v4259 = vunpack.c.l.b16 %v3388
    %v4260 = vunpack.c.h.b16 %v3388
    %v4261 = vunpack.c.l.b16 %v3389
    %v4262 = vunpack.c.h.b16 %v3389
    %v4263 = vunpack.c.l.b16 %v3390
    %v4264 = vunpack.c.h.b16 %v3390
    %v4265 = vunpack.c.l.b16 %v3391
    %v4266 = vunpack.c.h.b16 %v3391
    %v4267 = vunpack.c.l.b16 %v3392
    %v4268 = vunpack.c.h.b16 %v3392
    %v4269 = vunpack.c.l.b16 %v3393
    %v4270 = vunpack.c.h.b16 %v3393
    %v4271 = vunpack.c.l.b16 %v3394
    %v4272 = vunpack.c.h.b16 %v3394
    %v4273 = vunpack.c.l.b16 %v3395
    %v4274 = vunpack.c.h.b16 %v3395
    %v4275 = vunpack.c.l.b16 %v3396
    %v4276 = vunpack.c.h.b16 %v3396
    %v4277 = vunpack.c.l.b16 %v3397
    %v4278 = vunpack.c.h.b16 %v3397
    %v4279 = vunpack.c.l.b16 %v3398
    %v4280 = vunpack.c.h.b16 %v3398
    %v4281 = vunpack.c.l.b16 %v3399
    %v4282 = vunpack.c.h.b16 %v3399
    %v4283 = vunpack.c.l.b16 %v3400
    %v4284 = vunpack.c.h.b16 %v3400
    %v4285 = vunpack.c.l.b16 %v3401
    %v4286 = vunpack.c.h.b16 %v3401
    %v4287 = vunpack.c.l.b16 %v3402
    %v4288 = vunpack.c.h.b16 %v3402
    %v4289 = vunpack.c.l.b16 %v3403
    %v4290 = vunpack.c.h.b16 %v3403
    %v4291 = vunpack.c.l.b16 %v3404
    %v4292 = vunpack.c.h.b16 %v3404
    %v4293 = vunpack.c.l.b16 %v3405
    %v4294 = vunpack.c.h.b16 %v3405
    %v4295 = vunpack.c.l.b16 %v3406
    %v4296 = vunpack.c.h.b16 %v3406
    %v4297 = vunpack.c.l.b16 %v3407
    %v4298 = vunpack.c.h.b16 %v3407
    %v4299 = vunpack.c.l.b16 %v3408
    %v4300 = vunpack.c.h.b16 %v3408
    %v4301 = vunpack.c.l.b16 %v3409
    %v4302 = vunpack.c.h.b16 %v3409
    %v4303 = vunpack.c.l.b16 %v3410
    %v4304 = vunpack.c.h.b16 %v3410
    %v4305 = vunpack.c.l.b16 %v3411
    %v4306 = vunpack.c.h.b16 %v3411
    %v4307 = vunpack.c.l.b16 %v3412
    %v4308 = vunpack.c.h.b16 %v3412
    %v4309 = vunpack.c.l.b16 %v3413
    %v4310 = vunpack.c.h.b16 %v3413
    %v4311 = vunpack.c.l.b16 %v3414
    %v4312 = vunpack.c.h.b16 %v3414
    %v4313 = vunpack.c.l.b16 %v3415
    %v4314 = vunpack.c.h.b16 %v3415
    %v4315 = vunpack.c.l.b16 %v3416
    %v4316 = vunpack.c.h.b16 %v3416
    %v4317 = vunpack.c.l.b16 %v3417
    %v4318 = vunpack.c.h.b16 %v3417
    %v4319 = vunpack.c.l.b16 %v3418
    %v4320 = vunpack.c.h.b16 %v3418
    %v4321 = vunpack.c.l.b16 %v3419
    %v4322 = vunpack.c.h.b16 %v3419
    %v4323 = vunpack.c.l.b16 %v3420
    %v4324 = vunpack.c.h.b16 %v3420
    %v4325 = vunpack.c.l.b16 %v3421
    %v4326 = vunpack.c.h.b16 %v3421
    %v4327 = vunpack.c.l.b16 %v3422
    %v4328 = vunpack.c.h.b16 %v3422
    %v4329 = vunpack.c.l.b16 %v3423
    %v4330 = vunpack.c.h.b16 %v3423
    %v4331 = vunpack.c.l.b16 %v3424
    %v4332 = vunpack.c.h.b16 %v3424
    %v4333 = vunpack.c.l.b16 %v3425
    %v4334 = vunpack.c.h.b16 %v3425
    %v4335 = vunpack.c.l.b16 %v3426
    %v4336 = vunpack.c.h.b16 %v3426
    %v4337 = vunpack.c.l.b16 %v3427
    %v4338 = vunpack.c.h.b16 %v3427
    %v4339 = vunpack.c.l.b16 %v3428
    %v4340 = vunpack.c.h.b16 %v3428
    %v4341 = vunpack.c.l.b16 %v3429
    %v4342 = vunpack.c.h.b16 %v3429
    %v4343 = vunpack.c.l.b16 %v3430
    %v4344 = vunpack.c.h.b16 %v3430
    %v4345 = vunpack.c.l.b16 %v3431
    %v4346 = vunpack.c.h.b16 %v3431
    %v4347 = vunpack.c.l.b16 %v3432
    %v4348 = vunpack.c.h.b16 %v3432
    %v4349 = vunpack.c.l.b16 %v3433
    %v4350 = vunpack.c.h.b16 %v3433
    %v4351 = vunpack.c.l.b16 %v3434
    %v4352 = vunpack.c.h.b16 %v3434
    %v4353 = vunpack.c.l.b16 %v3435
    %v4354 = vunpack.c.h.b16 %v3435
    %v4355 = vunpack.c.l.b16 %v3436
    %v4356 = vunpack.c.h.b16 %v3436
    %v4357 = vunpack.c.l.b16 %v3437
    %v4358 = vunpack.c.h.b16 %v3437
    %v4359 = vunpack.c.l.b16 %v3438
    %v4360 = vunpack.c.h.b16 %v3438
    %v4361 = vunpack.c.l.b16 %v3439
    %v4362 = vunpack.c.h.b16 %v3439
    %v4363 = vunpack.c.l.b16 %v3440
    %v4364 = vunpack.c.h.b16 %v3440
    %v4365 = vunpack.c.l.b16 %v3441
    %v4366 = vunpack.c.h.b16 %v3441
    %v4367 = vunpack.c.l.b16 %v3442
    %v4368 = vunpack.c.h.b16 %v3442
    %v4369 = vunpack.c.l.b16 %v3443
    %v4370 = vunpack.c.h.b16 %v3443
    %v4371 = vunpack.c.l.b16 %v3444
    %v4372 = vunpack.c.h.b16 %v3444
    %v4373 = vunpack.c.l.b16 %v3445
    %v4374 = vunpack.c.h.b16 %v3445
    %v4375 = vunpack.c.l.b16 %v3446
    %v4376 = vunpack.c.h.b16 %v3446
    %v4377 = vunpack.c.l.b16 %v3447
    %v4378 = vunpack.c.h.b16 %v3447
    %v4379 = vunpack.c.l.b16 %v3448
    %v4380 = vunpack.c.h.b16 %v3448
    %v4381 = vunpack.c.l.b16 %v3449
    %v4382 = vunpack.c.h.b16 %v3449
    %v4383 = vunpack.c.l.b16 %v3450
    %v4384 = vunpack.c.h.b16 %v3450
    %v4385 = vunpack.c.l.b16 %v3451
    %v4386 = vunpack.c.h.b16 %v3451
    %v4387 = vunpack.c.l.b16 %v3452
    %v4388 = vunpack.c.h.b16 %v3452
    %v4389 = vunpack.c.l.b16 %v3453
    %v4390 = vunpack.c.h.b16 %v3453
    %v4391 = vunpack.c.l.b16 %v3454
    %v4392 = vunpack.c.h.b16 %v3454
    %v4393 = vunpack.c.l.b16 %v3455
    %v4394 = vunpack.c.h.b16 %v3455
    %v4395 = vunpack.c.l.b16 %v3456
    %v4396 = vunpack.c.h.b16 %v3456
    %v4397 = vunpack.c.l.b16 %v3457
    %v4398 = vunpack.c.h.b16 %v3457
    %v4399 = vunpack.c.l.b16 %v3458
    %v4400 = vunpack.c.h.b16 %v3458
    %v4401 = vunpack.c.l.b16 %v3459
    %v4402 = vunpack.c.h.b16 %v3459
    %v4403 = vunpack.c.l.b16 %v3460
    %v4404 = vunpack.c.h.b16 %v3460
    %v4405 = vunpack.c.l.b16 %v3461
    %v4406 = vunpack.c.h.b16 %v3461
    %v4407 = vunpack.c.l.b16 %v3462
    %v4408 = vunpack.c.h.b16 %v3462
    %v4409 = vunpack.c.l.b16 %v3463
    %v4410 = vunpack.c.h.b16 %v3463
    %v4411 = vunpack.c.l.b16 %v3464
    %v4412 = vunpack.c.h.b16 %v3464
    %v4413 = vunpack.c.l.b16 %v3465
    %v4414 = vunpack.c.h.b16 %v3465
    %v4415 = vunpack.c.l.b16 %v3466
    %v4416 = vunpack.c.h.b16 %v3466
    %v4417 = vunpack.c.l.b16 %v3467
    %v4418 = vunpack.c.h.b16 %v3467
    %v4419 = vunpack.c.l.b16 %v3468
    %v4420 = vunpack.c.h.b16 %v3468
    %v4421 = vunpack.c.l.b16 %v3469
    %v4422 = vunpack.c.h.b16 %v3469
    %v4423 = vunpack.c.l.b16 %v3470
    %v4424 = vunpack.c.h.b16 %v3470
    %v4425 = vunpack.c.l.b16 %v3471
    %v4426 = vunpack.c.h.b16 %v3471
    %v4427 = vunpack.c.l.b16 %v3472
    %v4428 = vunpack.c.h.b16 %v3472
    %v4429 = vunpack.c.l.b16 %v3473
    %v4430 = vunpack.c.h.b16 %v3473
    %v4431 = vunpack.c.l.b16 %v3474
    %v4432 = vunpack.c.h.b16 %v3474
    %v4433 = vunpack.c.l.b16 %v3475
    %v4434 = vunpack.c.h.b16 %v3475
    %v4435 = vunpack.c.l.b16 %v3476
    %v4436 = vunpack.c.h.b16 %v3476
    %v4437 = vunpack.c.l.b16 %v3477
    %v4438 = vunpack.c.h.b16 %v3477
    %v4439 = vunpack.c.l.b16 %v3478
    %v4440 = vunpack.c.h.b16 %v3478
    %v4441 = vunpack.c.l.b16 %v3479
    %v4442 = vunpack.c.h.b16 %v3479
    %v4443 = vunpack.c.l.b16 %v3480
    %v4444 = vunpack.c.h.b16 %v3480
    %v4445 = vunpack.c.l.b16 %v3481
    %v4446 = vunpack.c.h.b16 %v3481
    %v4447 = vunpack.c.l.b16 %v3482
    %v4448 = vunpack.c.h.b16 %v3482
    %v4449 = vunpack.c.l.b16 %v3483
    %v4450 = vunpack.c.h.b16 %v3483
    %v4451 = vunpack.c.l.b16 %v3484
    %v4452 = vunpack.c.h.b16 %v3484
    %v4453 = vunpack.c.l.b16 %v3485
    %v4454 = vunpack.c.h.b16 %v3485
    %v4455 = vunpack.c.l.b16 %v3486
    %v4456 = vunpack.c.h.b16 %v3486
    %v4457 = vunpack.c.l.b16 %v3487
    %v4458 = vunpack.c.h.b16 %v3487
    %v4459 = vunpack.c.l.b16 %v3488
    %v4460 = vunpack.c.h.b16 %v3488
    %v4461 = vunpack.c.l.b16 %v3489
    %v4462 = vunpack.c.h.b16 %v3489
    %v4463 = vunpack.c.l.b16 %v3490
    %v4464 = vunpack.c.h.b16 %v3490
    %v4465 = vunpack.c.l.b16 %v3491
    %v4466 = vunpack.c.h.b16 %v3491
    %v4467 = vunpack.c.l.b16 %v3492
    %v4468 = vunpack.c.h.b16 %v3492
    %v4469 = vunpack.c.l.b16 %v3493
    %v4470 = vunpack.c.h.b16 %v3493
    %v4471 = vunpack.c.l.b16 %v3494
    %v4472 = vunpack.c.h.b16 %v3494
    %v4473 = vunpack.c.l.b16 %v3495
    %v4474 = vunpack.c.h.b16 %v3495
    %v4475 = vunpack.c.l.b16 %v3496
    %v4476 = vunpack.c.h.b16 %v3496
    %v4477 = vunpack.c.l.b16 %v3497
    %v4478 = vunpack.c.h.b16 %v3497
    %v4479 = vunpack.c.l.b16 %v3498
    %v4480 = vunpack.c.h.b16 %v3498
    %v4481 = vunpack.c.l.b16 %v3499
    %v4482 = vunpack.c.h.b16 %v3499
    %v4483 = vunpack.c.l.b16 %v3500
    %v4484 = vunpack.c.h.b16 %v3500
    %v4485 = vunpack.c.l.b16 %v3501
    %v4486 = vunpack.c.h.b16 %v3501
    %v4487 = vunpack.c.l.b16 %v3502
    %v4488 = vunpack.c.h.b16 %v3502
    %v4489 = vunpack.c.l.b16 %v3503
    %v4490 = vunpack.c.h.b16 %v3503
    %v4491 = vunpack.c.l.b16 %v3504
    %v4492 = vunpack.c.h.b16 %v3504
    %v4493 = vunpack.c.l.b16 %v3505
    %v4494 = vunpack.c.h.b16 %v3505
    %v4495 = vunpack.c.l.b16 %v3506
    %v4496 = vunpack.c.h.b16 %v3506
    %v4497 = vunpack.c.l.b16 %v3507
    %v4498 = vunpack.c.h.b16 %v3507
    %v4499 = vunpack.c.l.b16 %v3508
    %v4500 = vunpack.c.h.b16 %v3508
    %v4501 = vunpack.c.l.b16 %v3509
    %v4502 = vunpack.c.h.b16 %v3509
    %v4503 = vunpack.c.l.b16 %v3510
    %v4504 = vunpack.c.h.b16 %v3510
    %v4505 = vunpack.c.l.b16 %v3511
    %v4506 = vunpack.c.h.b16 %v3511
    %v4507 = vunpack.c.l.b16 %v3512
    %v4508 = vunpack.c.h.b16 %v3512
    %v4509 = vunpack.c.l.b16 %v3513
    %v4510 = vunpack.c.h.b16 %v3513
    %v4511 = vunpack.c.l.b16 %v3514
    %v4512 = vunpack.c.h.b16 %v3514
    %v4513 = vunpack.c.l.b16 %v3515
    %v4514 = vunpack.c.h.b16 %v3515
    %v4515 = vunpack.c.l.b16 %v3516
    %v4516 = vunpack.c.h.b16 %v3516
    %v4517 = vunpack.c.l.b16 %v3517
    %v4518 = vunpack.c.h.b16 %v3517
    %v4519 = vunpack.c.l.b16 %v3518
    %v4520 = vunpack.c.h.b16 %v3518
    %v4521 = vunpack.c.l.b16 %v3519
    %v4522 = vunpack.c.h.b16 %v3519
    %v4523 = vunpack.c.l.b16 %v3520
    %v4524 = vunpack.c.h.b16 %v3520
    %v4525 = vunpack.c.l.b16 %v3521
    %v4526 = vunpack.c.h.b16 %v3521
    %v4527 = vunpack.c.l.b16 %v3522
    %v4528 = vunpack.c.h.b16 %v3522
    %v4529 = vunpack.c.l.b16 %v3523
    %v4530 = vunpack.c.h.b16 %v3523
    %v4531 = vunpack.c.l.b16 %v3524
    %v4532 = vunpack.c.h.b16 %v3524
    %v4533 = vunpack.c.l.b16 %v3525
    %v4534 = vunpack.c.h.b16 %v3525
    %v4535 = vunpack.c.l.b16 %v3526
    %v4536 = vunpack.c.h.b16 %v3526
    %v4537 = vunpack.c.l.b16 %v3527
    %v4538 = vunpack.c.h.b16 %v3527
    %v4539 = vunpack.c.l.b16 %v3528
    %v4540 = vunpack.c.h.b16 %v3528
    %v4541 = vunpack.c.l.b16 %v3529
    %v4542 = vunpack.c.h.b16 %v3529
    %v4543 = vunpack.c.l.b16 %v3530
    %v4544 = vunpack.c.h.b16 %v3530
    %v4545 = vunpack.c.l.b16 %v3531
    %v4546 = vunpack.c.h.b16 %v3531
    %v4547 = vunpack.c.l.b16 %v3532
    %v4548 = vunpack.c.h.b16 %v3532
    %v4549 = vunpack.c.l.b16 %v3533
    %v4550 = vunpack.c.h.b16 %v3533
    %v4551 = vunpack.c.l.b16 %v3534
    %v4552 = vunpack.c.h.b16 %v3534
    %v4553 = vunpack.c.l.b16 %v3535
    %v4554 = vunpack.c.h.b16 %v3535
    %v4555 = vunpack.c.l.b16 %v3536
    %v4556 = vunpack.c.h.b16 %v3536
    %v4557 = vunpack.c.l.b16 %v3537
    %v4558 = vunpack.c.h.b16 %v3537
    %v4559 = vunpack.c.l.b16 %v3538
    %v4560 = vunpack.c.h.b16 %v3538
    %v4561 = vunpack.c.l.b16 %v3539
    %v4562 = vunpack.c.h.b16 %v3539
    %v4563 = vunpack.c.l.b16 %v3540
    %v4564 = vunpack.c.h.b16 %v3540
    %v4565 = vunpack.c.l.b16 %v3541
    %v4566 = vunpack.c.h.b16 %v3541
    %v4567 = vunpack.c.l.b16 %v3542
    %v4568 = vunpack.c.h.b16 %v3542
    %v4569 = vunpack.c.l.b16 %v3543
    %v4570 = vunpack.c.h.b16 %v3543
    %v4571 = vunpack.c.l.b16 %v3544
    %v4572 = vunpack.c.h.b16 %v3544
    %v4573 = vunpack.c.l.b16 %v3545
    %v4574 = vunpack.c.h.b16 %v3545
    %v4575 = vunpack.c.l.b16 %v3546
    %v4576 = vunpack.c.h.b16 %v3546
    %v4577 = vunpack.c.l.b16 %v3547
    %v4578 = vunpack.c.h.b16 %v3547
    %v4579 = vunpack.c.l.b16 %v3548
    %v4580 = vunpack.c.h.b16 %v3548
    %v4581 = vunpack.c.l.b16 %v3549
    %v4582 = vunpack.c.h.b16 %v3549
    %v4583 = vunpack.c.l.b16 %v3550
    %v4584 = vunpack.c.h.b16 %v3550
    %v4585 = vunpack.c.l.b16 %v3551
    %v4586 = vunpack.c.h.b16 %v3551
    %v4587 = vunpack.c.l.b16 %v3552
    %v4588 = vunpack.c.h.b16 %v3552
    %v4589 = vunpack.c.l.b16 %v3553
    %v4590 = vunpack.c.h.b16 %v3553
    %v4591 = vunpack.c.l.b16 %v3554
    %v4592 = vunpack.c.h.b16 %v3554
    %v4593 = vunpack.c.l.b16 %v3555
    %v4594 = vunpack.c.h.b16 %v3555
    %v4595 = vunpack.c.l.b16 %v3556
    %v4596 = vunpack.c.h.b16 %v3556
    %v4597 = vunpack.c.l.b16 %v3557
    %v4598 = vunpack.c.h.b16 %v3557
    %v4599 = vunpack.c.l.b16 %v3558
    %v4600 = vunpack.c.h.b16 %v3558
    %v4601 = vunpack.c.l.b16 %v3559
    %v4602 = vunpack.c.h.b16 %v3559
    %v4603 = vunpack.c.l.b16 %v3560
    %v4604 = vunpack.c.h.b16 %v3560
    %v4605 = vunpack.c.l.b16 %v3561
    %v4606 = vunpack.c.h.b16 %v3561
    %v4607 = vunpack.c.l.b16 %v3562
    %v4608 = vunpack.c.h.b16 %v3562
    %v4609 = vunpack.c.l.b16 %v3563
    %v4610 = vunpack.c.h.b16 %v3563
    %v4611 = vunpack.c.l.b16 %v3564
    %v4612 = vunpack.c.h.b16 %v3564
    %v4613 = vunpack.c.l.b16 %v3565
    %v4614 = vunpack.c.h.b16 %v3565
    %v4615 = vunpack.c.l.b16 %v3566
    %v4616 = vunpack.c.h.b16 %v3566
    %v4617 = vunpack.c.l.b16 %v3567
    %v4618 = vunpack.c.h.b16 %v3567
    %v4619 = vunpack.c.l.b16 %v3568
    %v4620 = vunpack.c.h.b16 %v3568
    %v4621 = vunpack.c.l.b16 %v3569
    %v4622 = vunpack.c.h.b16 %v3569
    %v4623 = vunpack.c.l.b16 %v3570
    %v4624 = vunpack.c.h.b16 %v3570
    %v4625 = vunpack.c.l.b16 %v3571
    %v4626 = vunpack.c.h.b16 %v3571
    %v4627 = vunpack.c.l.b16 %v3572
    %v4628 = vunpack.c.h.b16 %v3572
    %v4629 = vunpack.c.l.b16 %v3573
    %v4630 = vunpack.c.h.b16 %v3573
    %v4631 = vunpack.c.l.b16 %v3574
    %v4632 = vunpack.c.h.b16 %v3574
    %v4633 = vunpack.c.l.b16 %v3575
    %v4634 = vunpack.c.h.b16 %v3575
    %v4635 = vunpack.c.l.b16 %v3576
    %v4636 = vunpack.c.h.b16 %v3576
    %v4637 = vpack.c.b16 %v3949, %v3945
    %v4638 = vpack.c.b16 %v3950, %v3946
    %v4639 = vpack.c.b16 %v3951, %v3947
    %v4640 = vpack.c.b16 %v3952, %v3948
    %v4641 = vpack.c.b16 %v3957, %v3953
    %v4642 = vpack.c.b16 %v3958, %v3954
    %v4643 = vpack.c.b16 %v3959, %v3955
    %v4644 = vpack.c.b16 %v3960, %v3956
    %v4645 = vpack.c.b16 %v3965, %v3961
    %v4646 = vpack.c.b16 %v3966, %v3962
    %v4647 = vpack.c.b16 %v3967, %v3963
    %v4648 = vpack.c.b16 %v3968, %v3964
    %v4649 = vpack.c.b16 %v3973, %v3969
    %v4650 = vpack.c.b16 %v3974, %v3970
    %v4651 = vpack.c.b16 %v3975, %v3971
    %v4652 = vpack.c.b16 %v3976, %v3972
    %v4653 = vpack.c.b16 %v3981, %v3977
    %v4654 = vpack.c.b16 %v3982, %v3978
    %v4655 = vpack.c.b16 %v3983, %v3979
    %v4656 = vpack.c.b16 %v3984, %v3980
    %v4657 = vpack.c.b16 %v3989, %v3985
    %v4658 = vpack.c.b16 %v3990, %v3986
    %v4659 = vpack.c.b16 %v3991, %v3987
    %v4660 = vpack.c.b16 %v3992, %v3988
    %v4661 = vpack.c.b16 %v3997, %v3993
    %v4662 = vpack.c.b16 %v3998, %v3994
    %v4663 = vpack.c.b16 %v3999, %v3995
    %v4664 = vpack.c.b16 %v4000, %v3996
    %v4665 = vpack.c.b16 %v4005, %v4001
    %v4666 = vpack.c.b16 %v4006, %v4002
    %v4667 = vpack.c.b16 %v4007, %v4003
    %v4668 = vpack.c.b16 %v4008, %v4004
    %v4669 = vpack.c.b16 %v4013, %v4009
    %v4670 = vpack.c.b16 %v4014, %v4010
    %v4671 = vpack.c.b16 %v4015, %v4011
    %v4672 = vpack.c.b16 %v4016, %v4012
    %v4673 = vpack.c.b16 %v4021, %v4017
    %v4674 = vpack.c.b16 %v4022, %v4018
    %v4675 = vpack.c.b16 %v4023, %v4019
    %v4676 = vpack.c.b16 %v4024, %v4020
    %v4677 = vpack.c.b16 %v4029, %v4025
    %v4678 = vpack.c.b16 %v4030, %v4026
    %v4679 = vpack.c.b16 %v4031, %v4027
    %v4680 = vpack.c.b16 %v4032, %v4028
    %v4681 = vpack.c.b16 %v4037, %v4033
    %v4682 = vpack.c.b16 %v4038, %v4034
    %v4683 = vpack.c.b16 %v4039, %v4035
    %v4684 = vpack.c.b16 %v4040, %v4036
    %v4685 = vpack.c.b16 %v4045, %v4041
    %v4686 = vpack.c.b16 %v4046, %v4042
    %v4687 = vpack.c.b16 %v4047, %v4043
    %v4688 = vpack.c.b16 %v4048, %v4044
    %v4689 = vpack.c.b16 %v4053, %v4049
    %v4690 = vpack.c.b16 %v4054, %v4050
    %v4691 = vpack.c.b16 %v4055, %v4051
    %v4692 = vpack.c.b16 %v4056, %v4052
    %v4693 = vpack.c.b16 %v4061, %v4057
    %v4694 = vpack.c.b16 %v4062, %v4058
    %v4695 = vpack.c.b16 %v4063, %v4059
    %v4696 = vpack.c.b16 %v4064, %v4060
    %v4697 = vpack.c.b16 %v4069, %v4065
    %v4698 = vpack.c.b16 %v4070, %v4066
    %v4699 = vpack.c.b16 %v4071, %v4067
    %v4700 = vpack.c.b16 %v4072, %v4068
    %v4701 = vpack.c.b16 %v4077, %v4073
    %v4702 = vpack.c.b16 %v4078, %v4074
    %v4703 = vpack.c.b16 %v4079, %v4075
    %v4704 = vpack.c.b16 %v4080, %v4076
    %v4705 = vpack.c.b16 %v4085, %v4081
    %v4706 = vpack.c.b16 %v4086, %v4082
    %v4707 = vpack.c.b16 %v4087, %v4083
    %v4708 = vpack.c.b16 %v4088, %v4084
    %v4709 = vpack.c.b16 %v4093, %v4089
    %v4710 = vpack.c.b16 %v4094, %v4090
    %v4711 = vpack.c.b16 %v4095, %v4091
    %v4712 = vpack.c.b16 %v4096, %v4092
    %v4713 = vpack.c.b16 %v4101, %v4097
    %v4714 = vpack.c.b16 %v4102, %v4098
    %v4715 = vpack.c.b16 %v4103, %v4099
    %v4716 = vpack.c.b16 %v4104, %v4100
    %v4717 = vpack.c.b16 %v4109, %v4105
    %v4718 = vpack.c.b16 %v4110, %v4106
    %v4719 = vpack.c.b16 %v4111, %v4107
    %v4720 = vpack.c.b16 %v4112, %v4108
    %v4721 = vpack.c.b16 %v4117, %v4113
    %v4722 = vpack.c.b16 %v4118, %v4114
    %v4723 = vpack.c.b16 %v4119, %v4115
    %v4724 = vpack.c.b16 %v4120, %v4116
    %v4725 = vpack.c.b16 %v4125, %v4121
    %v4726 = vpack.c.b16 %v4126, %v4122
    %v4727 = vpack.c.b16 %v4127, %v4123
    %v4728 = vpack.c.b16 %v4128, %v4124
    %v4729 = vpack.c.b16 %v4133, %v4129
    %v4730 = vpack.c.b16 %v4134, %v4130
    %v4731 = vpack.c.b16 %v4135, %v4131
    %v4732 = vpack.c.b16 %v4136, %v4132
    %v4733 = vpack.c.b16 %v4141, %v4137
    %v4734 = vpack.c.b16 %v4142, %v4138
    %v4735 = vpack.c.b16 %v4143, %v4139
    %v4736 = vpack.c.b16 %v4144, %v4140
    %v4737 = vpack.c.b16 %v4149, %v4145
    %v4738 = vpack.c.b16 %v4150, %v4146
    %v4739 = vpack.c.b16 %v4151, %v4147
    %v4740 = vpack.c.b16 %v4152, %v4148
    %v4741 = vpack.c.b16 %v4157, %v4153
    %v4742 = vpack.c.b16 %v4158, %v4154
    %v4743 = vpack.c.b16 %v4159, %v4155
    %v4744 = vpack.c.b16 %v4160, %v4156
    %v4745 = vpack.c.b16 %v4165, %v4161
    %v4746 = vpack.c.b16 %v4166, %v4162
    %v4747 = vpack.c.b16 %v4167, %v4163
    %v4748 = vpack.c.b16 %v4168, %v4164
    %v4749 = vpack.c.b16 %v4173, %v4169
    %v4750 = vpack.c.b16 %v4174, %v4170
    %v4751 = vpack.c.b16 %v4175, %v4171
    %v4752 = vpack.c.b16 %v4176, %v4172
    %v4753 = vpack.c.b16 %v4181, %v4177
    %v4754 = vpack.c.b16 %v4182, %v4178
    %v4755 = vpack.c.b16 %v4183, %v4179
    %v4756 = vpack.c.b16 %v4184, %v4180
    %v4757 = vpack.c.b16 %v4189, %v4185
    %v4758 = vpack.c.b16 %v4190, %v4186
    %v4759 = vpack.c.b16 %v4191, %v4187
    %v4760 = vpack.c.b16 %v4192, %v4188
    %v4761 = vpack.c.b16 %v4197, %v4193
    %v4762 = vpack.c.b16 %v4198, %v4194
    %v4763 = vpack.c.b16 %v4199, %v4195
    %v4764 = vpack.c.b16 %v4200, %v4196
    %v4765 = vpack.c.b16 %v4205, %v4201
    %v4766 = vpack.c.b16 %v4206, %v4202
    %v4767 = vpack.c.b16 %v4207, %v4203
    %v4768 = vpack.c.b16 %v4208, %v4204
    %v4769 = vpack.c.b16 %v4213, %v4209
    %v4770 = vpack.c.b16 %v4214, %v4210
    %v4771 = vpack.c.b16 %v4215, %v4211
    %v4772 = vpack.c.b16 %v4216, %v4212
    %v4773 = vpack.c.b16 %v4221, %v4217
    %v4774 = vpack.c.b16 %v4222, %v4218
    %v4775 = vpack.c.b16 %v4223, %v4219
    %v4776 = vpack.c.b16 %v4224, %v4220
    %v4777 = vpack.c.b16 %v4229, %v4225
    %v4778 = vpack.c.b16 %v4230, %v4226
    %v4779 = vpack.c.b16 %v4231, %v4227
    %v4780 = vpack.c.b16 %v4232, %v4228
    %v4781 = vpack.c.b16 %v4237, %v4233
    %v4782 = vpack.c.b16 %v4238, %v4234
    %v4783 = vpack.c.b16 %v4239, %v4235
    %v4784 = vpack.c.b16 %v4240, %v4236
    %v4785 = vpack.c.b16 %v4245, %v4241
    %v4786 = vpack.c.b16 %v4246, %v4242
    %v4787 = vpack.c.b16 %v4247, %v4243
    %v4788 = vpack.c.b16 %v4248, %v4244
    %v4789 = vpack.c.b16 %v4253, %v4249
    %v4790 = vpack.c.b16 %v4254, %v4250
    %v4791 = vpack.c.b16 %v4255, %v4251
    %v4792 = vpack.c.b16 %v4256, %v4252
    %v4793 = vpack.c.b16 %v4261, %v4257
    %v4794 = vpack.c.b16 %v4262, %v4258
    %v4795 = vpack.c.b16 %v4263, %v4259
    %v4796 = vpack.c.b16 %v4264, %v4260
    %v4797 = vpack.c.b16 %v4269, %v4265
    %v4798 = vpack.c.b16 %v4270, %v4266
    %v4799 = vpack.c.b16 %v4271, %v4267
    %v4800 = vpack.c.b16 %v4272, %v4268
    %v4801 = vpack.c.b16 %v4277, %v4273
    %v4802 = vpack.c.b16 %v4278, %v4274
    %v4803 = vpack.c.b16 %v4279, %v4275
    %v4804 = vpack.c.b16 %v4280, %v4276
    %v4805 = vpack.c.b16 %v4285, %v4281
    %v4806 = vpack.c.b16 %v4286, %v4282
    %v4807 = vpack.c.b16 %v4287, %v4283
    %v4808 = vpack.c.b16 %v4288, %v4284
    %v4809 = vpack.c.b16 %v4293, %v4289
    %v4810 = vpack.c.b16 %v4294, %v4290
    %v4811 = vpack.c.b16 %v4295, %v4291
    %v4812 = vpack.c.b16 %v4296, %v4292
    %v4813 = vpack.c.b16 %v4301, %v4297
    %v4814 = vpack.c.b16 %v4302, %v4298
    %v4815 = vpack.c.b16 %v4303, %v4299
    %v4816 = vpack.c.b16 %v4304, %v4300
    %v4817 = vpack.c.b16 %v4309, %v4305
    %v4818 = vpack.c.b16 %v4310, %v4306
    %v4819 = vpack.c.b16 %v4311, %v4307
    %v4820 = vpack.c.b16 %v4312, %v4308
    %v4821 = vpack.c.b16 %v4317, %v4313
    %v4822 = vpack.c.b16 %v4318, %v4314
    %v4823 = vpack.c.b16 %v4319, %v4315
    %v4824 = vpack.c.b16 %v4320, %v4316
    %v4825 = vpack.c.b16 %v4325, %v4321
    %v4826 = vpack.c.b16 %v4326, %v4322
    %v4827 = vpack.c.b16 %v4327, %v4323
    %v4828 = vpack.c.b16 %v4328, %v4324
    %v4829 = vpack.c.b16 %v4333, %v4329
    %v4830 = vpack.c.b16 %v4334, %v4330
    %v4831 = vpack.c.b16 %v4335, %v4331
    %v4832 = vpack.c.b16 %v4336, %v4332
    %v4833 = vpack.c.b16 %v4341, %v4337
    %v4834 = vpack.c.b16 %v4342, %v4338
    %v4835 = vpack.c.b16 %v4343, %v4339
    %v4836 = vpack.c.b16 %v4344, %v4340
    %v4837 = vpack.c.b16 %v4349, %v4345
    %v4838 = vpack.c.b16 %v4350, %v4346
    %v4839 = vpack.c.b16 %v4351, %v4347
    %v4840 = vpack.c.b16 %v4352, %v4348
    %v4841 = vpack.c.b16 %v4357, %v4353
    %v4842 = vpack.c.b16 %v4358, %v4354
    %v4843 = vpack.c.b16 %v4359, %v4355
    %v4844 = vpack.c.b16 %v4360, %v4356
    %v4845 = vpack.c.b16 %v4365, %v4361
    %v4846 = vpack.c.b16 %v4366, %v4362
    %v4847 = vpack.c.b16 %v4367, %v4363
    %v4848 = vpack.c.b16 %v4368, %v4364
    %v4849 = vpack.c.b16 %v4373, %v4369
    %v4850 = vpack.c.b16 %v4374, %v4370
    %v4851 = vpack.c.b16 %v4375, %v4371
    %v4852 = vpack.c.b16 %v4376, %v4372
    %v4853 = vpack.c.b16 %v4381, %v4377
    %v4854 = vpack.c.b16 %v4382, %v4378
    %v4855 = vpack.c.b16 %v4383, %v4379
    %v4856 = vpack.c.b16 %v4384, %v4380
    %v4857 = vpack.c.b16 %v4389, %v4385
    %v4858 = vpack.c.b16 %v4390, %v4386
    %v4859 = vpack.c.b16 %v4391, %v4387
    %v4860 = vpack.c.b16 %v4392, %v4388
    %v4861 = vpack.c.b16 %v4397, %v4393
    %v4862 = vpack.c.b16 %v4398, %v4394
    %v4863 = vpack.c.b16 %v4399, %v4395
    %v4864 = vpack.c.b16 %v4400, %v4396
    %v4865 = vpack.c.b16 %v4405, %v4401
    %v4866 = vpack.c.b16 %v4406, %v4402
    %v4867 = vpack.c.b16 %v4407, %v4403
    %v4868 = vpack.c.b16 %v4408, %v4404
    %v4869 = vpack.c.b16 %v4413, %v4409
    %v4870 = vpack.c.b16 %v4414, %v4410
    %v4871 = vpack.c.b16 %v4415, %v4411
    %v4872 = vpack.c.b16 %v4416, %v4412
    %v4873 = vpack.c.b16 %v4421, %v4417
    %v4874 = vpack.c.b16 %v4422, %v4418
    %v4875 = vpack.c.b16 %v4423, %v4419
    %v4876 = vpack.c.b16 %v4424, %v4420
    %v4877 = vpack.c.b16 %v4429, %v4425
    %v4878 = vpack.c.b16 %v4430, %v4426
    %v4879 = vpack.c.b16 %v4431, %v4427
    %v4880 = vpack.c.b16 %v4432, %v4428
    %v4881 = vpack.c.b16 %v4437, %v4433
    %v4882 = vpack.c.b16 %v4438, %v4434
    %v4883 = vpack.c.b16 %v4439, %v4435
    %v4884 = vpack.c.b16 %v4440, %v4436
    %v4885 = vpack.c.b16 %v4445, %v4441
    %v4886 = vpack.c.b16 %v4446, %v4442
    %v4887 = vpack.c.b16 %v4447, %v4443
    %v4888 = vpack.c.b16 %v4448, %v4444
    %v4889 = vpack.c.b16 %v4453, %v4449
    %v4890 = vpack.c.b16 %v4454, %v4450
    %v4891 = vpack.c.b16 %v4455, %v4451
    %v4892 = vpack.c.b16 %v4456, %v4452
    %v4893 = vpack.c.b16 %v4461, %v4457
    %v4894 = vpack.c.b16 %v4462, %v4458
    %v4895 = vpack.c.b16 %v4463, %v4459
    %v4896 = vpack.c.b16 %v4464, %v4460
    %v4897 = vpack.c.b16 %v4469, %v4465
    %v4898 = vpack.c.b16 %v4470, %v4466
    %v4899 = vpack.c.b16 %v4471, %v4467
    %v4900 = vpack.c.b16 %v4472, %v4468
    %v4901 = vpack.c.b16 %v4477, %v4473
    %v4902 = vpack.c.b16 %v4478, %v4474
    %v4903 = vpack.c.b16 %v4479, %v4475
    %v4904 = vpack.c.b16 %v4480, %v4476
    %v4905 = vpack.c.b16 %v4485, %v4481
    %v4906 = vpack.c.b16 %v4486, %v4482
    %v4907 = vpack.c.b16 %v4487, %v4483
    %v4908 = vpack.c.b16 %v4488, %v4484
    %v4909 = vpack.c.b16 %v4493, %v4489
    %v4910 = vpack.c.b16 %v4494, %v4490
    %v4911 = vpack.c.b16 %v4495, %v4491
    %v4912 = vpack.c.b16 %v4496, %v4492
    %v4913 = vpack.c.b16 %v4501, %v4497
    %v4914 = vpack.c.b16 %v4502, %v4498
    %v4915 = vpack.c.b16 %v4503, %v4499
    %v4916 = vpack.c.b16 %v4504, %v4500
    %v4917 = vpack.c.b16 %v4509, %v4505
    %v4918 = vpack.c.b16 %v4510, %v4506
    %v4919 = vpack.c.b16 %v4511, %v4507
    %v4920 = vpack.c.b16 %v4512, %v4508
    %v4921 = vpack.c.b16 %v4517, %v4513
    %v4922 = vpack.c.b16 %v4518, %v4514
    %v4923 = vpack.c.b16 %v4519, %v4515
    %v4924 = vpack.c.b16 %v4520, %v4516
    %v4925 = vpack.c.b16 %v4525, %v4521
    %v4926 = vpack.c.b16 %v4526, %v4522
    %v4927 = vpack.c.b16 %v4527, %v4523
    %v4928 = vpack.c.b16 %v4528, %v4524
    %v4929 = vpack.c.b16 %v4533, %v4529
    %v4930 = vpack.c.b16 %v4534, %v4530
    %v4931 = vpack.c.b16 %v4535, %v4531
    %v4932 = vpack.c.b16 %v4536, %v4532
    %v4933 = vpack.c.b16 %v4541, %v4537
    %v4934 = vpack.c.b16 %v4542, %v4538
    %v4935 = vpack.c.b16 %v4543, %v4539
    %v4936 = vpack.c.b16 %v4544, %v4540
    %v4937 = vpack.c.b16 %v4549, %v4545
    %v4938 = vpack.c.b16 %v4550, %v4546
    %v4939 = vpack.c.b16 %v4551, %v4547
    %v4940 = vpack.c.b16 %v4552, %v4548
    %v4941 = vpack.c.b16 %v4557, %v4553
    %v4942 = vpack.c.b16 %v4558, %v4554
    %v4943 = vpack.c.b16 %v4559, %v4555
    %v4944 = vpack.c.b16 %v4560, %v4556
    %v4945 = vpack.c.b16 %v4565, %v4561
    %v4946 = vpack.c.b16 %v4566, %v4562
    %v4947 = vpack.c.b16 %v4567, %v4563
    %v4948 = vpack.c.b16 %v4568, %v4564
    %v4949 = vpack.c.b16 %v4573, %v4569
    %v4950 = vpack.c.b16 %v4574, %v4570
    %v4951 = vpack.c.b16 %v4575, %v4571
    %v4952 = vpack.c.b16 %v4576, %v4572
    %v4953 = vpack.c.b16 %v4581, %v4577
    %v4954 = vpack.c.b16 %v4582, %v4578
    %v4955 = vpack.c.b16 %v4583, %v4579
    %v4956 = vpack.c.b16 %v4584, %v4580
    %v4957 = vpack.c.b16 %v4589, %v4585
    %v4958 = vpack.c.b16 %v4590, %v4586
    %v4959 = vpack.c.b16 %v4591, %v4587
    %v4960 = vpack.c.b16 %v4592, %v4588
    %v4961 = vpack.c.b16 %v4597, %v4593
    %v4962 = vpack.c.b16 %v4598, %v4594
    %v4963 = vpack.c.b16 %v4599, %v4595
    %v4964 = vpack.c.b16 %v4600, %v4596
    %v4965 = vpack.c.b16 %v4605, %v4601
    %v4966 = vpack.c.b16 %v4606, %v4602
    %v4967 = vpack.c.b16 %v4607, %v4603
    %v4968 = vpack.c.b16 %v4608, %v4604
    %v4969 = vpack.c.b16 %v4613, %v4609
    %v4970 = vpack.c.b16 %v4614, %v4610
    %v4971 = vpack.c.b16 %v4615, %v4611
    %v4972 = vpack.c.b16 %v4616, %v4612
    %v4973 = vpack.c.b16 %v4621, %v4617
    %v4974 = vpack.c.b16 %v4622, %v4618
    %v4975 = vpack.c.b16 %v4623, %v4619
    %v4976 = vpack.c.b16 %v4624, %v4620
    %v4977 = vpack.c.b16 %v4629, %v4625
    %v4978 = vpack.c.b16 %v4630, %v4626
    %v4979 = vpack.c.b16 %v4631, %v4627
    %v4980 = vpack.c.b16 %v4632, %v4628
    %v4981 = vpack.c.b16 %v4633, %v4633
    %v4982 = vpack.c.b16 %v4634, %v4634
    %v4983 = vpack.c.b16 %v4635, %v4635
    %v4984 = vpack.c.b16 %v4636, %v4636
    %vm5329 = vcmask 818176
    %v5331 = vsel %vm5329, %v3226, 0
    %v5334 = vsel %vm470, %v4981, 0
    %v5337 = vsel %vm470, %v4982, 0
    %v5340 = vsel %vm470, %v4983, 0
    %v5343 = vsel %vm470, %v4984, 0
    %5345 = vmatprep.subr.bf16.mxu0 %v4666
    %5346 = vmatpush1.bf16.msra.mxu0 %v4665
    %5347 = vmatprep.subr.bf16.mxu0 %v4662
    %5348 = vmatpush1.bf16.msra.mxu0 %v4661
    %5349 = vmatprep.subr.bf16.mxu0 %v4658
    %5350 = vmatpush1.bf16.msra.mxu0 %v4657
    %5351 = vmatprep.subr.bf16.mxu0 %v4654
    %5352 = vmatpush1.bf16.msra.mxu0 %v4653
    %5353 = vmatprep.subr.bf16.mxu0 %v4650
    %5354 = vmatpush1.bf16.msra.mxu0 %v4649
    %5355 = vmatprep.subr.bf16.mxu0 %v4646
    %5356 = vmatpush1.bf16.msra.mxu0 %v4645
    %5357 = vmatprep.subr.bf16.mxu0 %v4642
    %5358 = vmatpush1.bf16.msra.mxu0 %v4641
    %5359 = vmatprep.subr.bf16.mxu0 %v4638
    %5360 = vmatpush1.bf16.msra.mxu0 %v4637
    %5361 = vmatprep.subr.bf16.mxu0 %v4698
    %5362 = vmatpush2.bf16.msra.mxu0 %v4697
    %5363 = vmatprep.subr.bf16.mxu0 %v4694
    %5364 = vmatpush2.bf16.msra.mxu0 %v4693
    %5365 = vmatprep.subr.bf16.mxu0 %v4690
    %5366 = vmatpush2.bf16.msra.mxu0 %v4689
    %5367 = vmatprep.subr.bf16.mxu0 %v4686
    %5368 = vmatpush2.bf16.msra.mxu0 %v4685
    %5369 = vmatprep.subr.bf16.mxu0 %v4682
    %5370 = vmatpush2.bf16.msra.mxu0 %v4681
    %5371 = vmatprep.subr.bf16.mxu0 %v4678
    %5372 = vmatpush2.bf16.msra.mxu0 %v4677
    %5373 = vmatprep.subr.bf16.mxu0 %v4674
    %5374 = vmatpush2.bf16.msra.mxu0 %v4673
    %5375 = vmatprep.subr.bf16.mxu0 %v4670
    %5376 = vmatpush2.bf16.msra.mxu0 %v4669
    %5377 = vmatprep.mubr.bf16.mxu0 %v3217
    %5378 = vmatmul.mubr.bf16.gmra.mxu0 %v3216
    %v5379 = vpop.f32.mrf.mxu0
    %v5380 = vadd.f32 %v3582, %v5379
    %v5381 = vpop.f32.mrf.mxu0
    %v5382 = vadd.f32 %v3586, %v5381
    %v5383 = vpop.f32.mrf.mxu0
    %v5384 = vpop.f32.mrf.mxu0
    %5385 = vdwg.mxu0
    %5386 = vmatprep.subr.bf16.mxu0 %v4730
    %5387 = vmatpush1.bf16.msra.mxu0 %v4729
    %5388 = vmatprep.subr.bf16.mxu0 %v4726
    %5389 = vmatpush1.bf16.msra.mxu0 %v4725
    %5390 = vmatprep.subr.bf16.mxu0 %v4722
    %5391 = vmatpush1.bf16.msra.mxu0 %v4721
    %5392 = vmatprep.subr.bf16.mxu0 %v4718
    %5393 = vmatpush1.bf16.msra.mxu0 %v4717
    %5394 = vmatprep.subr.bf16.mxu0 %v4714
    %5395 = vmatpush1.bf16.msra.mxu0 %v4713
    %5396 = vmatprep.subr.bf16.mxu0 %v4710
    %5397 = vmatpush1.bf16.msra.mxu0 %v4709
    %5398 = vmatprep.subr.bf16.mxu0 %v4706
    %5399 = vmatpush1.bf16.msra.mxu0 %v4705
    %5400 = vmatprep.subr.bf16.mxu0 %v4702
    %5401 = vmatpush1.bf16.msra.mxu0 %v4701
    %5402 = vmatprep.subr.bf16.mxu0 %v4762
    %5403 = vmatpush2.bf16.msra.mxu0 %v4761
    %5404 = vmatprep.subr.bf16.mxu0 %v4758
    %5405 = vmatpush2.bf16.msra.mxu0 %v4757
    %5406 = vmatprep.subr.bf16.mxu0 %v4754
    %5407 = vmatpush2.bf16.msra.mxu0 %v4753
    %5408 = vmatprep.subr.bf16.mxu0 %v4750
    %5409 = vmatpush2.bf16.msra.mxu0 %v4749
    %5410 = vmatprep.subr.bf16.mxu0 %v4746
    %5411 = vmatpush2.bf16.msra.mxu0 %v4745
    %5412 = vmatprep.subr.bf16.mxu0 %v4742
    %5413 = vmatpush2.bf16.msra.mxu0 %v4741
    %5414 = vmatprep.subr.bf16.mxu0 %v4738
    %5415 = vmatpush2.bf16.msra.mxu0 %v4737
    %5416 = vmatprep.subr.bf16.mxu0 %v4734
    %5417 = vmatpush2.bf16.msra.mxu0 %v4733
    %5418 = vmatprep.mubr.bf16.mxu0 %v3219
    %5419 = vmatmul.mubr.bf16.gmra.mxu0 %v3218
    %v5420 = vpop.f32.mrf.mxu0
    %v5421 = vadd.f32 %v5380, %v5420
    %v5422 = vpop.f32.mrf.mxu0
    %v5423 = vadd.f32 %v5382, %v5422
    %v5424 = vpop.f32.mrf.mxu0
    %v5425 = vpop.f32.mrf.mxu0
    %5426 = vdwg.mxu0
    %5427 = vmatprep.subr.bf16.mxu0 %v4794
    %5428 = vmatpush1.bf16.msra.mxu0 %v4793
    %5429 = vmatprep.subr.bf16.mxu0 %v4790
    %5430 = vmatpush1.bf16.msra.mxu0 %v4789
    %5431 = vmatprep.subr.bf16.mxu0 %v4786
    %5432 = vmatpush1.bf16.msra.mxu0 %v4785
    %5433 = vmatprep.subr.bf16.mxu0 %v4782
    %5434 = vmatpush1.bf16.msra.mxu0 %v4781
    %5435 = vmatprep.subr.bf16.mxu0 %v4778
    %5436 = vmatpush1.bf16.msra.mxu0 %v4777
    %5437 = vmatprep.subr.bf16.mxu0 %v4774
    %5438 = vmatpush1.bf16.msra.mxu0 %v4773
    %5439 = vmatprep.subr.bf16.mxu0 %v4770
    %5440 = vmatpush1.bf16.msra.mxu0 %v4769
    %5441 = vmatprep.subr.bf16.mxu0 %v4766
    %5442 = vmatpush1.bf16.msra.mxu0 %v4765
    %5443 = vmatprep.subr.bf16.mxu0 %v4826
    %5444 = vmatpush2.bf16.msra.mxu0 %v4825
    %5445 = vmatprep.subr.bf16.mxu0 %v4822
    %5446 = vmatpush2.bf16.msra.mxu0 %v4821
    %5447 = vmatprep.subr.bf16.mxu0 %v4818
    %5448 = vmatpush2.bf16.msra.mxu0 %v4817
    %5449 = vmatprep.subr.bf16.mxu0 %v4814
    %5450 = vmatpush2.bf16.msra.mxu0 %v4813
    %5451 = vmatprep.subr.bf16.mxu0 %v4810
    %5452 = vmatpush2.bf16.msra.mxu0 %v4809
    %5453 = vmatprep.subr.bf16.mxu0 %v4806
    %5454 = vmatpush2.bf16.msra.mxu0 %v4805
    %5455 = vmatprep.subr.bf16.mxu0 %v4802
    %5456 = vmatpush2.bf16.msra.mxu0 %v4801
    %5457 = vmatprep.subr.bf16.mxu0 %v4798
    %5458 = vmatpush2.bf16.msra.mxu0 %v4797
    %5459 = vmatprep.mubr.bf16.mxu0 %v3221
    %5460 = vmatmul.mubr.bf16.gmra.mxu0 %v3220
    %v5461 = vpop.f32.mrf.mxu0
    %v5462 = vadd.f32 %v5421, %v5461
    %v5463 = vpop.f32.mrf.mxu0
    %v5464 = vadd.f32 %v5423, %v5463
    %v5465 = vpop.f32.mrf.mxu0
    %v5466 = vpop.f32.mrf.mxu0
    %5467 = vdwg.mxu0
    %5468 = vmatprep.subr.bf16.mxu0 %v4858
    %5469 = vmatpush1.bf16.msra.mxu0 %v4857
    %5470 = vmatprep.subr.bf16.mxu0 %v4854
    %5471 = vmatpush1.bf16.msra.mxu0 %v4853
    %5472 = vmatprep.subr.bf16.mxu0 %v4850
    %5473 = vmatpush1.bf16.msra.mxu0 %v4849
    %5474 = vmatprep.subr.bf16.mxu0 %v4846
    %5475 = vmatpush1.bf16.msra.mxu0 %v4845
    %5476 = vmatprep.subr.bf16.mxu0 %v4842
    %5477 = vmatpush1.bf16.msra.mxu0 %v4841
    %5478 = vmatprep.subr.bf16.mxu0 %v4838
    %5479 = vmatpush1.bf16.msra.mxu0 %v4837
    %5480 = vmatprep.subr.bf16.mxu0 %v4834
    %5481 = vmatpush1.bf16.msra.mxu0 %v4833
    %5482 = vmatprep.subr.bf16.mxu0 %v4830
    %5483 = vmatpush1.bf16.msra.mxu0 %v4829
    %5484 = vmatprep.subr.bf16.mxu0 %v4890
    %5485 = vmatpush2.bf16.msra.mxu0 %v4889
    %5486 = vmatprep.subr.bf16.mxu0 %v4886
    %5487 = vmatpush2.bf16.msra.mxu0 %v4885
    %5488 = vmatprep.subr.bf16.mxu0 %v4882
    %5489 = vmatpush2.bf16.msra.mxu0 %v4881
    %5490 = vmatprep.subr.bf16.mxu0 %v4878
    %5491 = vmatpush2.bf16.msra.mxu0 %v4877
    %5492 = vmatprep.subr.bf16.mxu0 %v4874
    %5493 = vmatpush2.bf16.msra.mxu0 %v4873
    %5494 = vmatprep.subr.bf16.mxu0 %v4870
    %5495 = vmatpush2.bf16.msra.mxu0 %v4869
    %5496 = vmatprep.subr.bf16.mxu0 %v4866
    %5497 = vmatpush2.bf16.msra.mxu0 %v4865
    %5498 = vmatprep.subr.bf16.mxu0 %v4862
    %5499 = vmatpush2.bf16.msra.mxu0 %v4861
    %5500 = vmatprep.mubr.bf16.mxu0 %v3223
    %5501 = vmatmul.mubr.bf16.gmra.mxu0 %v3222
    %v5502 = vpop.f32.mrf.mxu0
    %v5503 = vadd.f32 %v5462, %v5502
    %v5504 = vpop.f32.mrf.mxu0
    %v5505 = vadd.f32 %v5464, %v5504
    %v5506 = vpop.f32.mrf.mxu0
    %v5507 = vpop.f32.mrf.mxu0
    %5508 = vdwg.mxu0
    %5509 = vmatprep.subr.bf16.mxu0 %v4922
    %5510 = vmatpush1.bf16.msra.mxu0 %v4921
    %5511 = vmatprep.subr.bf16.mxu0 %v4918
    %5512 = vmatpush1.bf16.msra.mxu0 %v4917
    %5513 = vmatprep.subr.bf16.mxu0 %v4914
    %5514 = vmatpush1.bf16.msra.mxu0 %v4913
    %5515 = vmatprep.subr.bf16.mxu0 %v4910
    %5516 = vmatpush1.bf16.msra.mxu0 %v4909
    %5517 = vmatprep.subr.bf16.mxu0 %v4906
    %5518 = vmatpush1.bf16.msra.mxu0 %v4905
    %5519 = vmatprep.subr.bf16.mxu0 %v4902
    %5520 = vmatpush1.bf16.msra.mxu0 %v4901
    %5521 = vmatprep.subr.bf16.mxu0 %v4898
    %5522 = vmatpush1.bf16.msra.mxu0 %v4897
    %5523 = vmatprep.subr.bf16.mxu0 %v4894
    %5524 = vmatpush1.bf16.msra.mxu0 %v4893
    %5525 = vmatprep.subr.bf16.mxu0 %v4954
    %5526 = vmatpush2.bf16.msra.mxu0 %v4953
    %5527 = vmatprep.subr.bf16.mxu0 %v4950
    %5528 = vmatpush2.bf16.msra.mxu0 %v4949
    %5529 = vmatprep.subr.bf16.mxu0 %v4946
    %5530 = vmatpush2.bf16.msra.mxu0 %v4945
    %5531 = vmatprep.subr.bf16.mxu0 %v4942
    %5532 = vmatpush2.bf16.msra.mxu0 %v4941
    %5533 = vmatprep.subr.bf16.mxu0 %v4938
    %5534 = vmatpush2.bf16.msra.mxu0 %v4937
    %5535 = vmatprep.subr.bf16.mxu0 %v4934
    %5536 = vmatpush2.bf16.msra.mxu0 %v4933
    %5537 = vmatprep.subr.bf16.mxu0 %v4930
    %5538 = vmatpush2.bf16.msra.mxu0 %v4929
    %5539 = vmatprep.subr.bf16.mxu0 %v4926
    %5540 = vmatpush2.bf16.msra.mxu0 %v4925
    %5541 = vmatprep.mubr.bf16.mxu0 %v3225
    %5542 = vmatmul.mubr.bf16.gmra.mxu0 %v3224
    %v5543 = vpop.f32.mrf.mxu0
    %v5544 = vadd.f32 %v5503, %v5543
    %v5545 = vpop.f32.mrf.mxu0
    %v5546 = vadd.f32 %v5505, %v5545
    %v5547 = vpop.f32.mrf.mxu0
    %v5548 = vpop.f32.mrf.mxu0
    %5549 = vdwg.mxu0
    %5550 = vmatprep.subr.bf16.mxu0 0
    %5551 = vmatpush1.bf16.msra.mxu0 0
    %5552 = vmatprep.subr.bf16.mxu0 %v5337
    %5553 = vmatpush1.bf16.msra.mxu0 %v5334
    %5554 = vmatprep.subr.bf16.mxu0 %v4978
    %5555 = vmatpush1.bf16.msra.mxu0 %v4977
    %5556 = vmatprep.subr.bf16.mxu0 %v4974
    %5557 = vmatpush1.bf16.msra.mxu0 %v4973
    %5558 = vmatprep.subr.bf16.mxu0 %v4970
    %5559 = vmatpush1.bf16.msra.mxu0 %v4969
    %5560 = vmatprep.subr.bf16.mxu0 %v4966
    %5561 = vmatpush1.bf16.msra.mxu0 %v4965
    %5562 = vmatprep.subr.bf16.mxu0 %v4962
    %5563 = vmatpush1.bf16.msra.mxu0 %v4961
    %5564 = vmatprep.subr.bf16.mxu0 %v4958
    %5565 = vmatpush1.bf16.msra.mxu0 %v4957
    %5566 = vmatprep.subr.bf16.mxu0 0
    %5567 = vmatpush2.bf16.msra.mxu0 0
    %5568 = vmatprep.subr.bf16.mxu0 0
    %5569 = vmatpush2.bf16.msra.mxu0 0
    %5570 = vmatprep.subr.bf16.mxu0 0
    %5571 = vmatpush2.bf16.msra.mxu0 0
    %5572 = vmatprep.subr.bf16.mxu0 0
    %5573 = vmatpush2.bf16.msra.mxu0 0
    %5574 = vmatprep.subr.bf16.mxu0 0
    %5575 = vmatpush2.bf16.msra.mxu0 0
    %5576 = vmatprep.subr.bf16.mxu0 0
    %5577 = vmatpush2.bf16.msra.mxu0 0
    %5578 = vmatprep.subr.bf16.mxu0 0
    %5579 = vmatpush2.bf16.msra.mxu0 0
    %5580 = vmatprep.subr.bf16.mxu0 0
    %5581 = vmatpush2.bf16.msra.mxu0 0
    %5582 = vmatprep.mubr.bf16.mxu0 0
    %5583 = vmatmul.mubr.bf16.gmra.mxu0 %v5331
    %v5584 = vpop.f32.mrf.mxu0
    %v5585 = vadd.f32 %v5544, %v5584
    %v5586 = vpop.f32.mrf.mxu0
    %v5587 = vadd.f32 %v5546, %v5586
    %v5588 = vpop.f32.mrf.mxu0
    %v5589 = vpop.f32.mrf.mxu0
    %5590 = vdwg.mxu0
    %5591 = vmatprep.subr.bf16.mxu0 %v4668
    %5592 = vmatpush1.bf16.msra.mxu0 %v4667
    %5593 = vmatprep.subr.bf16.mxu0 %v4664
    %5594 = vmatpush1.bf16.msra.mxu0 %v4663
    %5595 = vmatprep.subr.bf16.mxu0 %v4660
    %5596 = vmatpush1.bf16.msra.mxu0 %v4659
    %5597 = vmatprep.subr.bf16.mxu0 %v4656
    %5598 = vmatpush1.bf16.msra.mxu0 %v4655
    %5599 = vmatprep.subr.bf16.mxu0 %v4652
    %5600 = vmatpush1.bf16.msra.mxu0 %v4651
    %5601 = vmatprep.subr.bf16.mxu0 %v4648
    %5602 = vmatpush1.bf16.msra.mxu0 %v4647
    %5603 = vmatprep.subr.bf16.mxu0 %v4644
    %5604 = vmatpush1.bf16.msra.mxu0 %v4643
    %5605 = vmatprep.subr.bf16.mxu0 %v4640
    %5606 = vmatpush1.bf16.msra.mxu0 %v4639
    %5607 = vmatprep.subr.bf16.mxu0 %v4700
    %5608 = vmatpush2.bf16.msra.mxu0 %v4699
    %5609 = vmatprep.subr.bf16.mxu0 %v4696
    %5610 = vmatpush2.bf16.msra.mxu0 %v4695
    %5611 = vmatprep.subr.bf16.mxu0 %v4692
    %5612 = vmatpush2.bf16.msra.mxu0 %v4691
    %5613 = vmatprep.subr.bf16.mxu0 %v4688
    %5614 = vmatpush2.bf16.msra.mxu0 %v4687
    %5615 = vmatprep.subr.bf16.mxu0 %v4684
    %5616 = vmatpush2.bf16.msra.mxu0 %v4683
    %5617 = vmatprep.subr.bf16.mxu0 %v4680
    %5618 = vmatpush2.bf16.msra.mxu0 %v4679
    %5619 = vmatprep.subr.bf16.mxu0 %v4676
    %5620 = vmatpush2.bf16.msra.mxu0 %v4675
    %5621 = vmatprep.subr.bf16.mxu0 %v4672
    %5622 = vmatpush2.bf16.msra.mxu0 %v4671
    %5623 = vmatprep.mubr.bf16.mxu0 %v3217
    %5624 = vmatmul.mubr.bf16.gmra.mxu0 %v3216
    %v5625 = vpop.f32.mrf.mxu0
    %v5626 = vadd.f32 %v3590, %v5625
    %v5627 = vpop.f32.mrf.mxu0
    %v5628 = vadd.f32 %v3594, %v5627
    %v5629 = vpop.f32.mrf.mxu0
    %v5630 = vpop.f32.mrf.mxu0
    %5631 = vdwg.mxu0
    %5632 = vmatprep.subr.bf16.mxu0 %v4732
    %5633 = vmatpush1.bf16.msra.mxu0 %v4731
    %5634 = vmatprep.subr.bf16.mxu0 %v4728
    %5635 = vmatpush1.bf16.msra.mxu0 %v4727
    %5636 = vmatprep.subr.bf16.mxu0 %v4724
    %5637 = vmatpush1.bf16.msra.mxu0 %v4723
    %5638 = vmatprep.subr.bf16.mxu0 %v4720
    %5639 = vmatpush1.bf16.msra.mxu0 %v4719
    %5640 = vmatprep.subr.bf16.mxu0 %v4716
    %5641 = vmatpush1.bf16.msra.mxu0 %v4715
    %5642 = vmatprep.subr.bf16.mxu0 %v4712
    %5643 = vmatpush1.bf16.msra.mxu0 %v4711
    %5644 = vmatprep.subr.bf16.mxu0 %v4708
    %5645 = vmatpush1.bf16.msra.mxu0 %v4707
    %5646 = vmatprep.subr.bf16.mxu0 %v4704
    %5647 = vmatpush1.bf16.msra.mxu0 %v4703
    %5648 = vmatprep.subr.bf16.mxu0 %v4764
    %5649 = vmatpush2.bf16.msra.mxu0 %v4763
    %5650 = vmatprep.subr.bf16.mxu0 %v4760
    %5651 = vmatpush2.bf16.msra.mxu0 %v4759
    %5652 = vmatprep.subr.bf16.mxu0 %v4756
    %5653 = vmatpush2.bf16.msra.mxu0 %v4755
    %5654 = vmatprep.subr.bf16.mxu0 %v4752
    %5655 = vmatpush2.bf16.msra.mxu0 %v4751
    %5656 = vmatprep.subr.bf16.mxu0 %v4748
    %5657 = vmatpush2.bf16.msra.mxu0 %v4747
    %5658 = vmatprep.subr.bf16.mxu0 %v4744
    %5659 = vmatpush2.bf16.msra.mxu0 %v4743
    %5660 = vmatprep.subr.bf16.mxu0 %v4740
    %5661 = vmatpush2.bf16.msra.mxu0 %v4739
    %5662 = vmatprep.subr.bf16.mxu0 %v4736
    %5663 = vmatpush2.bf16.msra.mxu0 %v4735
    %5664 = vmatprep.mubr.bf16.mxu0 %v3219
    %5665 = vmatmul.mubr.bf16.gmra.mxu0 %v3218
    %v5666 = vpop.f32.mrf.mxu0
    %v5667 = vadd.f32 %v5626, %v5666
    %v5668 = vpop.f32.mrf.mxu0
    %v5669 = vadd.f32 %v5628, %v5668
    %v5670 = vpop.f32.mrf.mxu0
    %v5671 = vpop.f32.mrf.mxu0
    %5672 = vdwg.mxu0
    %5673 = vmatprep.subr.bf16.mxu0 %v4796
    %5674 = vmatpush1.bf16.msra.mxu0 %v4795
    %5675 = vmatprep.subr.bf16.mxu0 %v4792
    %5676 = vmatpush1.bf16.msra.mxu0 %v4791
    %5677 = vmatprep.subr.bf16.mxu0 %v4788
    %5678 = vmatpush1.bf16.msra.mxu0 %v4787
    %5679 = vmatprep.subr.bf16.mxu0 %v4784
    %5680 = vmatpush1.bf16.msra.mxu0 %v4783
    %5681 = vmatprep.subr.bf16.mxu0 %v4780
    %5682 = vmatpush1.bf16.msra.mxu0 %v4779
    %5683 = vmatprep.subr.bf16.mxu0 %v4776
    %5684 = vmatpush1.bf16.msra.mxu0 %v4775
    %5685 = vmatprep.subr.bf16.mxu0 %v4772
    %5686 = vmatpush1.bf16.msra.mxu0 %v4771
    %5687 = vmatprep.subr.bf16.mxu0 %v4768
    %5688 = vmatpush1.bf16.msra.mxu0 %v4767
    %5689 = vmatprep.subr.bf16.mxu0 %v4828
    %5690 = vmatpush2.bf16.msra.mxu0 %v4827
    %5691 = vmatprep.subr.bf16.mxu0 %v4824
    %5692 = vmatpush2.bf16.msra.mxu0 %v4823
    %5693 = vmatprep.subr.bf16.mxu0 %v4820
    %5694 = vmatpush2.bf16.msra.mxu0 %v4819
    %5695 = vmatprep.subr.bf16.mxu0 %v4816
    %5696 = vmatpush2.bf16.msra.mxu0 %v4815
    %5697 = vmatprep.subr.bf16.mxu0 %v4812
    %5698 = vmatpush2.bf16.msra.mxu0 %v4811
    %5699 = vmatprep.subr.bf16.mxu0 %v4808
    %5700 = vmatpush2.bf16.msra.mxu0 %v4807
    %5701 = vmatprep.subr.bf16.mxu0 %v4804
    %5702 = vmatpush2.bf16.msra.mxu0 %v4803
    %5703 = vmatprep.subr.bf16.mxu0 %v4800
    %5704 = vmatpush2.bf16.msra.mxu0 %v4799
    %5705 = vmatprep.mubr.bf16.mxu0 %v3221
    %5706 = vmatmul.mubr.bf16.gmra.mxu0 %v3220
    %v5707 = vpop.f32.mrf.mxu0
    %v5708 = vadd.f32 %v5667, %v5707
    %v5709 = vpop.f32.mrf.mxu0
    %v5710 = vadd.f32 %v5669, %v5709
    %v5711 = vpop.f32.mrf.mxu0
    %v5712 = vpop.f32.mrf.mxu0
    %5713 = vdwg.mxu0
    %5714 = vmatprep.subr.bf16.mxu0 %v4860
    %5715 = vmatpush1.bf16.msra.mxu0 %v4859
    %5716 = vmatprep.subr.bf16.mxu0 %v4856
    %5717 = vmatpush1.bf16.msra.mxu0 %v4855
    %5718 = vmatprep.subr.bf16.mxu0 %v4852
    %5719 = vmatpush1.bf16.msra.mxu0 %v4851
    %5720 = vmatprep.subr.bf16.mxu0 %v4848
    %5721 = vmatpush1.bf16.msra.mxu0 %v4847
    %5722 = vmatprep.subr.bf16.mxu0 %v4844
    %5723 = vmatpush1.bf16.msra.mxu0 %v4843
    %5724 = vmatprep.subr.bf16.mxu0 %v4840
    %5725 = vmatpush1.bf16.msra.mxu0 %v4839
    %5726 = vmatprep.subr.bf16.mxu0 %v4836
    %5727 = vmatpush1.bf16.msra.mxu0 %v4835
    %5728 = vmatprep.subr.bf16.mxu0 %v4832
    %5729 = vmatpush1.bf16.msra.mxu0 %v4831
    %5730 = vmatprep.subr.bf16.mxu0 %v4892
    %5731 = vmatpush2.bf16.msra.mxu0 %v4891
    %5732 = vmatprep.subr.bf16.mxu0 %v4888
    %5733 = vmatpush2.bf16.msra.mxu0 %v4887
    %5734 = vmatprep.subr.bf16.mxu0 %v4884
    %5735 = vmatpush2.bf16.msra.mxu0 %v4883
    %5736 = vmatprep.subr.bf16.mxu0 %v4880
    %5737 = vmatpush2.bf16.msra.mxu0 %v4879
    %5738 = vmatprep.subr.bf16.mxu0 %v4876
    %5739 = vmatpush2.bf16.msra.mxu0 %v4875
    %5740 = vmatprep.subr.bf16.mxu0 %v4872
    %5741 = vmatpush2.bf16.msra.mxu0 %v4871
    %5742 = vmatprep.subr.bf16.mxu0 %v4868
    %5743 = vmatpush2.bf16.msra.mxu0 %v4867
    %5744 = vmatprep.subr.bf16.mxu0 %v4864
    %5745 = vmatpush2.bf16.msra.mxu0 %v4863
    %5746 = vmatprep.mubr.bf16.mxu0 %v3223
    %5747 = vmatmul.mubr.bf16.gmra.mxu0 %v3222
    %v5748 = vpop.f32.mrf.mxu0
    %v5749 = vadd.f32 %v5708, %v5748
    %v5750 = vpop.f32.mrf.mxu0
    %v5751 = vadd.f32 %v5710, %v5750
    %v5752 = vpop.f32.mrf.mxu0
    %v5753 = vpop.f32.mrf.mxu0
    %5754 = vdwg.mxu0
    %5755 = vmatprep.subr.bf16.mxu0 %v4924
    %5756 = vmatpush1.bf16.msra.mxu0 %v4923
    %5757 = vmatprep.subr.bf16.mxu0 %v4920
    %5758 = vmatpush1.bf16.msra.mxu0 %v4919
    %5759 = vmatprep.subr.bf16.mxu0 %v4916
    %5760 = vmatpush1.bf16.msra.mxu0 %v4915
    %5761 = vmatprep.subr.bf16.mxu0 %v4912
    %5762 = vmatpush1.bf16.msra.mxu0 %v4911
    %5763 = vmatprep.subr.bf16.mxu0 %v4908
    %5764 = vmatpush1.bf16.msra.mxu0 %v4907
    %5765 = vmatprep.subr.bf16.mxu0 %v4904
    %5766 = vmatpush1.bf16.msra.mxu0 %v4903
    %5767 = vmatprep.subr.bf16.mxu0 %v4900
    %5768 = vmatpush1.bf16.msra.mxu0 %v4899
    %5769 = vmatprep.subr.bf16.mxu0 %v4896
    %5770 = vmatpush1.bf16.msra.mxu0 %v4895
    %5771 = vmatprep.subr.bf16.mxu0 %v4956
    %5772 = vmatpush2.bf16.msra.mxu0 %v4955
    %5773 = vmatprep.subr.bf16.mxu0 %v4952
    %5774 = vmatpush2.bf16.msra.mxu0 %v4951
    %5775 = vmatprep.subr.bf16.mxu0 %v4948
    %5776 = vmatpush2.bf16.msra.mxu0 %v4947
    %5777 = vmatprep.subr.bf16.mxu0 %v4944
    %5778 = vmatpush2.bf16.msra.mxu0 %v4943
    %5779 = vmatprep.subr.bf16.mxu0 %v4940
    %5780 = vmatpush2.bf16.msra.mxu0 %v4939
    %5781 = vmatprep.subr.bf16.mxu0 %v4936
    %5782 = vmatpush2.bf16.msra.mxu0 %v4935
    %5783 = vmatprep.subr.bf16.mxu0 %v4932
    %5784 = vmatpush2.bf16.msra.mxu0 %v4931
    %5785 = vmatprep.subr.bf16.mxu0 %v4928
    %5786 = vmatpush2.bf16.msra.mxu0 %v4927
    %5787 = vmatprep.mubr.bf16.mxu0 %v3225
    %5788 = vmatmul.mubr.bf16.gmra.mxu0 %v3224
    %v5789 = vpop.f32.mrf.mxu0
    %v5790 = vadd.f32 %v5749, %v5789
    %v5791 = vpop.f32.mrf.mxu0
    %v5792 = vadd.f32 %v5751, %v5791
    %v5793 = vpop.f32.mrf.mxu0
    %v5794 = vpop.f32.mrf.mxu0
    %5795 = vdwg.mxu0
    %5796 = vmatprep.subr.bf16.mxu0 0
    %5797 = vmatpush1.bf16.msra.mxu0 0
    %5798 = vmatprep.subr.bf16.mxu0 %v5343
    %5799 = vmatpush1.bf16.msra.mxu0 %v5340
    %5800 = vmatprep.subr.bf16.mxu0 %v4980
    %5801 = vmatpush1.bf16.msra.mxu0 %v4979
    %5802 = vmatprep.subr.bf16.mxu0 %v4976
    %5803 = vmatpush1.bf16.msra.mxu0 %v4975
    %5804 = vmatprep.subr.bf16.mxu0 %v4972
    %5805 = vmatpush1.bf16.msra.mxu0 %v4971
    %5806 = vmatprep.subr.bf16.mxu0 %v4968
    %5807 = vmatpush1.bf16.msra.mxu0 %v4967
    %5808 = vmatprep.subr.bf16.mxu0 %v4964
    %5809 = vmatpush1.bf16.msra.mxu0 %v4963
    %5810 = vmatprep.subr.bf16.mxu0 %v4960
    %5811 = vmatpush1.bf16.msra.mxu0 %v4959
    %5812 = vmatprep.subr.bf16.mxu0 0
    %5813 = vmatpush2.bf16.msra.mxu0 0
    %5814 = vmatprep.subr.bf16.mxu0 0
    %5815 = vmatpush2.bf16.msra.mxu0 0
    %5816 = vmatprep.subr.bf16.mxu0 0
    %5817 = vmatpush2.bf16.msra.mxu0 0
    %5818 = vmatprep.subr.bf16.mxu0 0
    %5819 = vmatpush2.bf16.msra.mxu0 0
    %5820 = vmatprep.subr.bf16.mxu0 0
    %5821 = vmatpush2.bf16.msra.mxu0 0
    %5822 = vmatprep.subr.bf16.mxu0 0
    %5823 = vmatpush2.bf16.msra.mxu0 0
    %5824 = vmatprep.subr.bf16.mxu0 0
    %5825 = vmatpush2.bf16.msra.mxu0 0
    %5826 = vmatprep.subr.bf16.mxu0 0
    %5827 = vmatpush2.bf16.msra.mxu0 0
    %5828 = vmatprep.mubr.bf16.mxu0 0
    %5829 = vmatmul.mubr.bf16.gmra.mxu0 %v5331
    %v5830 = vpop.f32.mrf.mxu0
    %v5831 = vadd.f32 %v5790, %v5830
    %v5832 = vpop.f32.mrf.mxu0
    %v5833 = vadd.f32 %v5792, %v5832
    %v5834 = vpop.f32.mrf.mxu0
    %v5835 = vpop.f32.mrf.mxu0
    %5836 = vdwg.mxu0
    %s5837 = smul.u32 4, 63
    %s5838 = smul.u32 %s5837, 2
    %s5839 = sshll.u32 %s5838, 4
    %5840 = dma.done %s111, %s5839
    %v5841 = vpack.c.bf16 %v5585, %v5585
    %v5842 = vpack.c.bf16 %v5587, %v5587
    %v5843 = vpack.c.bf16 %v5831, %v5831
    %v5844 = vpack.c.bf16 %v5833, %v5833
    %v5845 = vld [vmem:[#allocation3] sm:$0xff]
    %v5846 = vld [vmem:[#allocation3 + $0x8] sm:$0xff]
    %v5847 = vld [vmem:[#allocation3 + $0x10] sm:$0xff]
    %v5848 = vld [vmem:[#allocation3 + $0x18] sm:$0xff]
    %v5849 = vld [vmem:[#allocation3 + $0x20] sm:$0xff]
    %v5850 = vld [vmem:[#allocation3 + $0x28] sm:$0xff]
    %v5851 = vld [vmem:[#allocation3 + $0x30] sm:$0xff]
    %v5852 = vld [vmem:[#allocation3 + $0x38] sm:$0xff]
    %v5853 = vld [vmem:[#allocation3 + $0x40] sm:$0xff]
    %v5854 = vld [vmem:[#allocation3 + $0x48] sm:$0xff]
    %v5855 = vld [vmem:[#allocation3 + $0x50] sm:$0xff]
    %v5856 = vld [vmem:[#allocation3 + $0x58] sm:$0xff]
    %v5857 = vld [vmem:[#allocation3 + $0x60] sm:$0xff]
    %v5858 = vld [vmem:[#allocation3 + $0x68] sm:$0xff]
    %v5859 = vld [vmem:[#allocation3 + $0x70] sm:$0xff]
    %v5860 = vld [vmem:[#allocation3 + $0x78] sm:$0xff]
    %v5861 = vld [vmem:[#allocation3 + $0x80] sm:$0xff]
    %v5862 = vld [vmem:[#allocation3 + $0x88] sm:$0xff]
    %v5863 = vld [vmem:[#allocation3 + $0x90] sm:$0xff]
    %v5864 = vld [vmem:[#allocation3 + $0x98] sm:$0xff]
    %v5865 = vld [vmem:[#allocation3 + $0xa0] sm:$0xff]
    %v5866 = vld [vmem:[#allocation3 + $0xa8] sm:$0xff]
    %v5867 = vld [vmem:[#allocation3 + $0xb0] sm:$0xff]
    %v5868 = vld [vmem:[#allocation3 + $0xb8] sm:$0xff]
    %v5869 = vld [vmem:[#allocation3 + $0xc0] sm:$0xff]
    %v5870 = vld [vmem:[#allocation3 + $0xc8] sm:$0xff]
    %v5871 = vld [vmem:[#allocation3 + $0xd0] sm:$0xff]
    %v5872 = vld [vmem:[#allocation3 + $0xd8] sm:$0xff]
    %v5873 = vld [vmem:[#allocation3 + $0xe0] sm:$0xff]
    %v5874 = vld [vmem:[#allocation3 + $0xe8] sm:$0xff]
    %v5875 = vld [vmem:[#allocation3 + $0xf0] sm:$0xff]
    %v5876 = vld [vmem:[#allocation3 + $0xf8] sm:$0xff]
    %v5877 = vld [vmem:[#allocation3 + $0x100] sm:$0xff]
    %v5878 = vld [vmem:[#allocation3 + $0x108] sm:$0xff]
    %v5879 = vld [vmem:[#allocation3 + $0x110] sm:$0xff]
    %v5880 = vld [vmem:[#allocation3 + $0x118] sm:$0xff]
    %v5881 = vld [vmem:[#allocation3 + $0x120] sm:$0xff]
    %v5882 = vld [vmem:[#allocation3 + $0x128] sm:$0xff]
    %v5883 = vld [vmem:[#allocation3 + $0x130] sm:$0xff]
    %v5884 = vld [vmem:[#allocation3 + $0x138] sm:$0xff]
    %v5885 = vld [vmem:[#allocation3 + $0x140] sm:$0xff]
    %v5886 = vld [vmem:[#allocation3 + $0x148] sm:$0xff]
    %v5887 = vld [vmem:[#allocation3 + $0x150] sm:$0xff]
    %v5888 = vld [vmem:[#allocation3 + $0x158] sm:$0xff]
    %v5889 = vld [vmem:[#allocation3 + $0x160] sm:$0xff]
    %v5890 = vld [vmem:[#allocation3 + $0x168] sm:$0xff]
    %v5891 = vld [vmem:[#allocation3 + $0x170] sm:$0xff]
    %v5892 = vld [vmem:[#allocation3 + $0x178] sm:$0xff]
    %v5893 = vld [vmem:[#allocation3 + $0x180] sm:$0xff]
    %v5894 = vld [vmem:[#allocation3 + $0x188] sm:$0xff]
    %v5895 = vld [vmem:[#allocation3 + $0x190] sm:$0xff]
    %v5896 = vld [vmem:[#allocation3 + $0x198] sm:$0xff]
    %v5897 = vld [vmem:[#allocation3 + $0x1a0] sm:$0xff]
    %v5898 = vld [vmem:[#allocation3 + $0x1a8] sm:$0xff]
    %v5899 = vld [vmem:[#allocation3 + $0x1b0] sm:$0xff]
    %v5900 = vld [vmem:[#allocation3 + $0x1b8] sm:$0xff]
    %v5901 = vld [vmem:[#allocation3 + $0x1c0] sm:$0xff]
    %v5902 = vld [vmem:[#allocation3 + $0x1c8] sm:$0xff]
    %v5903 = vld [vmem:[#allocation3 + $0x1d0] sm:$0xff]
    %v5904 = vld [vmem:[#allocation3 + $0x1d8] sm:$0xff]
    %v5905 = vld [vmem:[#allocation3 + $0x1e0] sm:$0xff]
    %v5906 = vld [vmem:[#allocation3 + $0x1e8] sm:$0xff]
    %v5907 = vld [vmem:[#allocation3 + $0x1f0] sm:$0x33]
    %v5908 = vld [vmem:[#allocation13] sm:$0x3]
    %v5910 = vlaneseq
    %v5911 = vshrl.u32 %v5910, 7
    %v5912 = vsub.s32 0, %v5911
    %v5913 = vrot.slane %v5908, %v5912
    %v5914 = vlaneseq
    %v5915 = vshrl.u32 %v5914, 7
    %v5916 = vsub.s32 1, %v5915
    %v5917 = vrot.slane %v5908, %v5916
    %v5983 = vunpack.c.l.b16 %v5845
    %v5984 = vunpack.c.h.b16 %v5845
    %v5985 = vunpack.c.l.b16 %v5846
    %v5986 = vunpack.c.h.b16 %v5846
    %v5987 = vunpack.c.l.b16 %v5847
    %v5988 = vunpack.c.h.b16 %v5847
    %v5989 = vunpack.c.l.b16 %v5848
    %v5990 = vunpack.c.h.b16 %v5848
    %v5991 = vunpack.c.l.b16 %v5849
    %v5992 = vunpack.c.h.b16 %v5849
    %v5993 = vunpack.c.l.b16 %v5850
    %v5994 = vunpack.c.h.b16 %v5850
    %v5995 = vunpack.c.l.b16 %v5851
    %v5996 = vunpack.c.h.b16 %v5851
    %v5997 = vunpack.c.l.b16 %v5852
    %v5998 = vunpack.c.h.b16 %v5852
    %v5999 = vunpack.c.l.b16 %v5853
    %v6000 = vunpack.c.h.b16 %v5853
    %v6001 = vunpack.c.l.b16 %v5854
    %v6002 = vunpack.c.h.b16 %v5854
    %v6003 = vunpack.c.l.b16 %v5855
    %v6004 = vunpack.c.h.b16 %v5855
    %v6005 = vunpack.c.l.b16 %v5856
    %v6006 = vunpack.c.h.b16 %v5856
    %v6007 = vunpack.c.l.b16 %v5857
    %v6008 = vunpack.c.h.b16 %v5857
    %v6009 = vunpack.c.l.b16 %v5858
    %v6010 = vunpack.c.h.b16 %v5858
    %v6011 = vunpack.c.l.b16 %v5859
    %v6012 = vunpack.c.h.b16 %v5859
    %v6013 = vunpack.c.l.b16 %v5860
    %v6014 = vunpack.c.h.b16 %v5860
    %v6015 = vunpack.c.l.b16 %v5861
    %v6016 = vunpack.c.h.b16 %v5861
    %v6017 = vunpack.c.l.b16 %v5862
    %v6018 = vunpack.c.h.b16 %v5862
    %v6019 = vunpack.c.l.b16 %v5863
    %v6020 = vunpack.c.h.b16 %v5863
    %v6021 = vunpack.c.l.b16 %v5864
    %v6022 = vunpack.c.h.b16 %v5864
    %v6023 = vunpack.c.l.b16 %v5865
    %v6024 = vunpack.c.h.b16 %v5865
    %v6025 = vunpack.c.l.b16 %v5866
    %v6026 = vunpack.c.h.b16 %v5866
    %v6027 = vunpack.c.l.b16 %v5867
    %v6028 = vunpack.c.h.b16 %v5867
    %v6029 = vunpack.c.l.b16 %v5868
    %v6030 = vunpack.c.h.b16 %v5868
    %v6031 = vunpack.c.l.b16 %v5869
    %v6032 = vunpack.c.h.b16 %v5869
    %v6033 = vunpack.c.l.b16 %v5870
    %v6034 = vunpack.c.h.b16 %v5870
    %v6035 = vunpack.c.l.b16 %v5871
    %v6036 = vunpack.c.h.b16 %v5871
    %v6037 = vunpack.c.l.b16 %v5872
    %v6038 = vunpack.c.h.b16 %v5872
    %v6039 = vunpack.c.l.b16 %v5873
    %v6040 = vunpack.c.h.b16 %v5873
    %v6041 = vunpack.c.l.b16 %v5874
    %v6042 = vunpack.c.h.b16 %v5874
    %v6043 = vunpack.c.l.b16 %v5875
    %v6044 = vunpack.c.h.b16 %v5875
    %v6045 = vunpack.c.l.b16 %v5876
    %v6046 = vunpack.c.h.b16 %v5876
    %v6047 = vunpack.c.l.b16 %v5877
    %v6048 = vunpack.c.h.b16 %v5877
    %v6049 = vunpack.c.l.b16 %v5878
    %v6050 = vunpack.c.h.b16 %v5878
    %v6051 = vunpack.c.l.b16 %v5879
    %v6052 = vunpack.c.h.b16 %v5879
    %v6053 = vunpack.c.l.b16 %v5880
    %v6054 = vunpack.c.h.b16 %v5880
    %v6055 = vunpack.c.l.b16 %v5881
    %v6056 = vunpack.c.h.b16 %v5881
    %v6057 = vunpack.c.l.b16 %v5882
    %v6058 = vunpack.c.h.b16 %v5882
    %v6059 = vunpack.c.l.b16 %v5883
    %v6060 = vunpack.c.h.b16 %v5883
    %v6061 = vunpack.c.l.b16 %v5884
    %v6062 = vunpack.c.h.b16 %v5884
    %v6063 = vunpack.c.l.b16 %v5885
    %v6064 = vunpack.c.h.b16 %v5885
    %v6065 = vunpack.c.l.b16 %v5886
    %v6066 = vunpack.c.h.b16 %v5886
    %v6067 = vunpack.c.l.b16 %v5887
    %v6068 = vunpack.c.h.b16 %v5887
    %v6069 = vunpack.c.l.b16 %v5888
    %v6070 = vunpack.c.h.b16 %v5888
    %v6071 = vunpack.c.l.b16 %v5889
    %v6072 = vunpack.c.h.b16 %v5889
    %v6073 = vunpack.c.l.b16 %v5890
    %v6074 = vunpack.c.h.b16 %v5890
    %v6075 = vunpack.c.l.b16 %v5891
    %v6076 = vunpack.c.h.b16 %v5891
    %v6077 = vunpack.c.l.b16 %v5892
    %v6078 = vunpack.c.h.b16 %v5892
    %v6079 = vunpack.c.l.b16 %v5893
    %v6080 = vunpack.c.h.b16 %v5893
    %v6081 = vunpack.c.l.b16 %v5894
    %v6082 = vunpack.c.h.b16 %v5894
    %v6083 = vunpack.c.l.b16 %v5895
    %v6084 = vunpack.c.h.b16 %v5895
    %v6085 = vunpack.c.l.b16 %v5896
    %v6086 = vunpack.c.h.b16 %v5896
    %v6087 = vunpack.c.l.b16 %v5897
    %v6088 = vunpack.c.h.b16 %v5897
    %v6089 = vunpack.c.l.b16 %v5898
    %v6090 = vunpack.c.h.b16 %v5898
    %v6091 = vunpack.c.l.b16 %v5899
    %v6092 = vunpack.c.h.b16 %v5899
    %v6093 = vunpack.c.l.b16 %v5900
    %v6094 = vunpack.c.h.b16 %v5900
    %v6095 = vunpack.c.l.b16 %v5901
    %v6096 = vunpack.c.h.b16 %v5901
    %v6097 = vunpack.c.l.b16 %v5902
    %v6098 = vunpack.c.h.b16 %v5902
    %v6099 = vunpack.c.l.b16 %v5903
    %v6100 = vunpack.c.h.b16 %v5903
    %v6101 = vunpack.c.l.b16 %v5904
    %v6102 = vunpack.c.h.b16 %v5904
    %v6103 = vunpack.c.l.b16 %v5905
    %v6104 = vunpack.c.h.b16 %v5905
    %v6105 = vunpack.c.l.b16 %v5906
    %v6106 = vunpack.c.h.b16 %v5906
    %v6107 = vunpack.c.l.b16 %v5907
    %v6108 = vunpack.c.h.b16 %v5907
    %v6109 = vpack.c.b16 %v5985, %v5983
    %v6110 = vpack.c.b16 %v5986, %v5984
    %v6111 = vpack.c.b16 %v5989, %v5987
    %v6112 = vpack.c.b16 %v5990, %v5988
    %v6113 = vpack.c.b16 %v5993, %v5991
    %v6114 = vpack.c.b16 %v5994, %v5992
    %v6115 = vpack.c.b16 %v5997, %v5995
    %v6116 = vpack.c.b16 %v5998, %v5996
    %v6117 = vpack.c.b16 %v6001, %v5999
    %v6118 = vpack.c.b16 %v6002, %v6000
    %v6119 = vpack.c.b16 %v6005, %v6003
    %v6120 = vpack.c.b16 %v6006, %v6004
    %v6121 = vpack.c.b16 %v6009, %v6007
    %v6122 = vpack.c.b16 %v6010, %v6008
    %v6123 = vpack.c.b16 %v6013, %v6011
    %v6124 = vpack.c.b16 %v6014, %v6012
    %v6125 = vpack.c.b16 %v6017, %v6015
    %v6126 = vpack.c.b16 %v6018, %v6016
    %v6127 = vpack.c.b16 %v6021, %v6019
    %v6128 = vpack.c.b16 %v6022, %v6020
    %v6129 = vpack.c.b16 %v6025, %v6023
    %v6130 = vpack.c.b16 %v6026, %v6024
    %v6131 = vpack.c.b16 %v6029, %v6027
    %v6132 = vpack.c.b16 %v6030, %v6028
    %v6133 = vpack.c.b16 %v6033, %v6031
    %v6134 = vpack.c.b16 %v6034, %v6032
    %v6135 = vpack.c.b16 %v6037, %v6035
    %v6136 = vpack.c.b16 %v6038, %v6036
    %v6137 = vpack.c.b16 %v6041, %v6039
    %v6138 = vpack.c.b16 %v6042, %v6040
    %v6139 = vpack.c.b16 %v6045, %v6043
    %v6140 = vpack.c.b16 %v6046, %v6044
    %v6141 = vpack.c.b16 %v6049, %v6047
    %v6142 = vpack.c.b16 %v6050, %v6048
    %v6143 = vpack.c.b16 %v6053, %v6051
    %v6144 = vpack.c.b16 %v6054, %v6052
    %v6145 = vpack.c.b16 %v6057, %v6055
    %v6146 = vpack.c.b16 %v6058, %v6056
    %v6147 = vpack.c.b16 %v6061, %v6059
    %v6148 = vpack.c.b16 %v6062, %v6060
    %v6149 = vpack.c.b16 %v6065, %v6063
    %v6150 = vpack.c.b16 %v6066, %v6064
    %v6151 = vpack.c.b16 %v6069, %v6067
    %v6152 = vpack.c.b16 %v6070, %v6068
    %v6153 = vpack.c.b16 %v6073, %v6071
    %v6154 = vpack.c.b16 %v6074, %v6072
    %v6155 = vpack.c.b16 %v6077, %v6075
    %v6156 = vpack.c.b16 %v6078, %v6076
    %v6157 = vpack.c.b16 %v6081, %v6079
    %v6158 = vpack.c.b16 %v6082, %v6080
    %v6159 = vpack.c.b16 %v6085, %v6083
    %v6160 = vpack.c.b16 %v6086, %v6084
    %v6161 = vpack.c.b16 %v6089, %v6087
    %v6162 = vpack.c.b16 %v6090, %v6088
    %v6163 = vpack.c.b16 %v6093, %v6091
    %v6164 = vpack.c.b16 %v6094, %v6092
    %v6165 = vpack.c.b16 %v6097, %v6095
    %v6166 = vpack.c.b16 %v6098, %v6096
    %v6167 = vpack.c.b16 %v6101, %v6099
    %v6168 = vpack.c.b16 %v6102, %v6100
    %v6169 = vpack.c.b16 %v6105, %v6103
    %v6170 = vpack.c.b16 %v6106, %v6104
    %v6171 = vpack.c.b16 %v6107, %v6107
    %v6172 = vpack.c.b16 %v6108, %v6108
    %vm6235 = vcmask 949248
    %v6237 = vsel %vm6235, %v5844, 0
    %v6240 = vsel %vm470, %v6171, 0
    %v6243 = vsel %vm470, %v6172, 0
    %6245 = vmatprep.subr.bf16.mxu0 %v6124
    %6246 = vmatpush1.bf16.msra.mxu0 %v6123
    %6247 = vmatprep.subr.bf16.mxu0 %v6122
    %6248 = vmatpush1.bf16.msra.mxu0 %v6121
    %6249 = vmatprep.subr.bf16.mxu0 %v6120
    %6250 = vmatpush1.bf16.msra.mxu0 %v6119
    %6251 = vmatprep.subr.bf16.mxu0 %v6118
    %6252 = vmatpush1.bf16.msra.mxu0 %v6117
    %6253 = vmatprep.subr.bf16.mxu0 %v6116
    %6254 = vmatpush1.bf16.msra.mxu0 %v6115
    %6255 = vmatprep.subr.bf16.mxu0 %v6114
    %6256 = vmatpush1.bf16.msra.mxu0 %v6113
    %6257 = vmatprep.subr.bf16.mxu0 %v6112
    %6258 = vmatpush1.bf16.msra.mxu0 %v6111
    %6259 = vmatprep.subr.bf16.mxu0 %v6110
    %6260 = vmatpush1.bf16.msra.mxu0 %v6109
    %6261 = vmatprep.subr.bf16.mxu0 %v6140
    %6262 = vmatpush2.bf16.msra.mxu0 %v6139
    %6263 = vmatprep.subr.bf16.mxu0 %v6138
    %6264 = vmatpush2.bf16.msra.mxu0 %v6137
    %6265 = vmatprep.subr.bf16.mxu0 %v6136
    %6266 = vmatpush2.bf16.msra.mxu0 %v6135
    %6267 = vmatprep.subr.bf16.mxu0 %v6134
    %6268 = vmatpush2.bf16.msra.mxu0 %v6133
    %6269 = vmatprep.subr.bf16.mxu0 %v6132
    %6270 = vmatpush2.bf16.msra.mxu0 %v6131
    %6271 = vmatprep.subr.bf16.mxu0 %v6130
    %6272 = vmatpush2.bf16.msra.mxu0 %v6129
    %6273 = vmatprep.subr.bf16.mxu0 %v6128
    %6274 = vmatpush2.bf16.msra.mxu0 %v6127
    %6275 = vmatprep.subr.bf16.mxu0 %v6126
    %6276 = vmatpush2.bf16.msra.mxu0 %v6125
    %6277 = vmatprep.mubr.bf16.mxu0 %v5842
    %6278 = vmatmul.mubr.bf16.gmra.mxu0 %v5841
    %v6279 = vpop.f32.mrf.mxu0
    %v6280 = vadd.f32 %v5913, %v6279
    %v6281 = vpop.f32.mrf.mxu0
    %v6282 = vadd.f32 %v5917, %v6281
    %v6283 = vpop.f32.mrf.mxu0
    %v6284 = vpop.f32.mrf.mxu0
    %6285 = vdwg.mxu0
    %6286 = vmatprep.subr.bf16.mxu0 %v6156
    %6287 = vmatpush1.bf16.msra.mxu0 %v6155
    %6288 = vmatprep.subr.bf16.mxu0 %v6154
    %6289 = vmatpush1.bf16.msra.mxu0 %v6153
    %6290 = vmatprep.subr.bf16.mxu0 %v6152
    %6291 = vmatpush1.bf16.msra.mxu0 %v6151
    %6292 = vmatprep.subr.bf16.mxu0 %v6150
    %6293 = vmatpush1.bf16.msra.mxu0 %v6149
    %6294 = vmatprep.subr.bf16.mxu0 %v6148
    %6295 = vmatpush1.bf16.msra.mxu0 %v6147
    %6296 = vmatprep.subr.bf16.mxu0 %v6146
    %6297 = vmatpush1.bf16.msra.mxu0 %v6145
    %6298 = vmatprep.subr.bf16.mxu0 %v6144
    %6299 = vmatpush1.bf16.msra.mxu0 %v6143
    %6300 = vmatprep.subr.bf16.mxu0 %v6142
    %6301 = vmatpush1.bf16.msra.mxu0 %v6141
    %6302 = vmatprep.subr.bf16.mxu0 %v6243
    %6303 = vmatpush2.bf16.msra.mxu0 %v6240
    %6304 = vmatprep.subr.bf16.mxu0 %v6170
    %6305 = vmatpush2.bf16.msra.mxu0 %v6169
    %6306 = vmatprep.subr.bf16.mxu0 %v6168
    %6307 = vmatpush2.bf16.msra.mxu0 %v6167
    %6308 = vmatprep.subr.bf16.mxu0 %v6166
    %6309 = vmatpush2.bf16.msra.mxu0 %v6165
    %6310 = vmatprep.subr.bf16.mxu0 %v6164
    %6311 = vmatpush2.bf16.msra.mxu0 %v6163
    %6312 = vmatprep.subr.bf16.mxu0 %v6162
    %6313 = vmatpush2.bf16.msra.mxu0 %v6161
    %6314 = vmatprep.subr.bf16.mxu0 %v6160
    %6315 = vmatpush2.bf16.msra.mxu0 %v6159
    %6316 = vmatprep.subr.bf16.mxu0 %v6158
    %6317 = vmatpush2.bf16.msra.mxu0 %v6157
    %6318 = vmatprep.mubr.bf16.mxu0 %v6237
    %6319 = vmatmul.mubr.bf16.gmra.mxu0 %v5843
    %v6320 = vpop.f32.mrf.mxu0
    %v6321 = vadd.f32 %v6280, %v6320
    %v6322 = vpop.f32.mrf.mxu0
    %v6323 = vadd.f32 %v6282, %v6322
    %v6324 = vpop.f32.mrf.mxu0
    %v6325 = vpop.f32.mrf.mxu0
    %6326 = vdwg.mxu0
    %v6327 = vpack.c.bf16 %v6321, %v6321
    %v6328 = vpack.c.bf16 %v6323, %v6323
    %v6329 = vld [vmem:[%s10] sm:$0xf]
    %v6330 = vld [vmem:[%s10 + $0x4] sm:$0xf]
    %v6331 = vld [vmem:[%s10 + $0x8] sm:$0xf]
    %v6332 = vld [vmem:[%s10 + $0xc] sm:$0xf]
    %v6333 = vld [vmem:[%s10 + $0x10] sm:$0xf]
    %v6334 = vld [vmem:[%s10 + $0x14] sm:$0xf]
    %v6335 = vld [vmem:[%s10 + $0x18] sm:$0xf]
    %v6336 = vld [vmem:[%s10 + $0x1c] sm:$0xf]
    %v6337 = vld [vmem:[%s10 + $0x20] sm:$0xf]
    %v6338 = vld [vmem:[%s10 + $0x24] sm:$0xf]
    %v6339 = vld [vmem:[%s10 + $0x28] sm:$0xf]
    %v6340 = vld [vmem:[%s10 + $0x2c] sm:$0xf]
    %v6341 = vld [vmem:[%s10 + $0x30] sm:$0xf]
    %v6342 = vld [vmem:[%s10 + $0x34] sm:$0xf]
    %v6343 = vld [vmem:[%s10 + $0x38] sm:$0xf]
    %v6344 = vld [vmem:[%s10 + $0x3c] sm:$0xf]
    %v6345 = vld [vmem:[%s10 + $0x40] sm:$0xf]
    %v6346 = vld [vmem:[%s10 + $0x44] sm:$0xf]
    %v6347 = vld [vmem:[%s10 + $0x48] sm:$0xf]
    %v6348 = vld [vmem:[%s10 + $0x4c] sm:$0xf]
    %v6349 = vld [vmem:[%s10 + $0x50] sm:$0xf]
    %v6350 = vld [vmem:[%s10 + $0x54] sm:$0xf]
    %v6351 = vld [vmem:[%s10 + $0x58] sm:$0xf]
    %v6352 = vld [vmem:[%s10 + $0x5c] sm:$0xf]
    %v6353 = vld [vmem:[%s10 + $0x60] sm:$0xf]
    %v6354 = vld [vmem:[#allocation5] sm:$0x1]
    %v6356 = vlaneseq
    %v6357 = vshrl.u32 %v6356, 7
    %v6358 = vsub.s32 0, %v6357
    %v6359 = vrot.slane %v6354, %v6358
    %v6386 = vunpack.c.l.b16 %v6329
    %v6387 = vunpack.c.l.b16 %v6330
    %v6388 = vunpack.c.l.b16 %v6331
    %v6389 = vunpack.c.l.b16 %v6332
    %v6390 = vunpack.c.l.b16 %v6333
    %v6391 = vunpack.c.l.b16 %v6334
    %v6392 = vunpack.c.l.b16 %v6335
    %v6393 = vunpack.c.l.b16 %v6336
    %v6394 = vunpack.c.l.b16 %v6337
    %v6395 = vunpack.c.l.b16 %v6338
    %v6396 = vunpack.c.l.b16 %v6339
    %v6397 = vunpack.c.l.b16 %v6340
    %v6398 = vunpack.c.l.b16 %v6341
    %v6399 = vunpack.c.l.b16 %v6342
    %v6400 = vunpack.c.l.b16 %v6343
    %v6401 = vunpack.c.l.b16 %v6344
    %v6402 = vunpack.c.l.b16 %v6345
    %v6403 = vunpack.c.l.b16 %v6346
    %v6404 = vunpack.c.l.b16 %v6347
    %v6405 = vunpack.c.l.b16 %v6348
    %v6406 = vunpack.c.l.b16 %v6349
    %v6407 = vunpack.c.l.b16 %v6350
    %v6408 = vunpack.c.l.b16 %v6351
    %v6409 = vunpack.c.l.b16 %v6352
    %v6410 = vunpack.c.l.b16 %v6353
    %v6411 = vpack.c.b16 %v6387, %v6386
    %v6412 = vpack.c.b16 %v6389, %v6388
    %v6413 = vpack.c.b16 %v6391, %v6390
    %v6414 = vpack.c.b16 %v6393, %v6392
    %v6415 = vpack.c.b16 %v6395, %v6394
    %v6416 = vpack.c.b16 %v6397, %v6396
    %v6417 = vpack.c.b16 %v6399, %v6398
    %v6418 = vpack.c.b16 %v6401, %v6400
    %v6419 = vpack.c.b16 %v6403, %v6402
    %v6420 = vpack.c.b16 %v6405, %v6404
    %v6421 = vpack.c.b16 %v6407, %v6406
    %v6422 = vpack.c.b16 %v6409, %v6408
    %v6423 = vpack.c.b16 %v6410, %v6410
    %vm6436 = vcmask 588800
    %v6438 = vsel %vm6436, %v6328, 0
    %v6441 = vsel %vm1333, %v6423, 0
    %6443 = vmatprep.subr.bf16.mxu0 0
    %6444 = vmatpush1.bf16.msra.mxu0 %v6418
    %6445 = vmatprep.subr.bf16.mxu0 0
    %6446 = vmatpush1.bf16.msra.mxu0 %v6417
    %6447 = vmatprep.subr.bf16.mxu0 0
    %6448 = vmatpush1.bf16.msra.mxu0 %v6416
    %6449 = vmatprep.subr.bf16.mxu0 0
    %6450 = vmatpush1.bf16.msra.mxu0 %v6415
    %6451 = vmatprep.subr.bf16.mxu0 0
    %6452 = vmatpush1.bf16.msra.mxu0 %v6414
    %6453 = vmatprep.subr.bf16.mxu0 0
    %6454 = vmatpush1.bf16.msra.mxu0 %v6413
    %6455 = vmatprep.subr.bf16.mxu0 0
    %6456 = vmatpush1.bf16.msra.mxu0 %v6412
    %6457 = vmatprep.subr.bf16.mxu0 0
    %6458 = vmatpush1.bf16.msra.mxu0 %v6411
    %6459 = vmatprep.subr.bf16.mxu0 0
    %6460 = vmatpush2.bf16.msra.mxu0 0
    %6461 = vmatprep.subr.bf16.mxu0 0
    %6462 = vmatpush2.bf16.msra.mxu0 0
    %6463 = vmatprep.subr.bf16.mxu0 0
    %6464 = vmatpush2.bf16.msra.mxu0 0
    %6465 = vmatprep.subr.bf16.mxu0 0
    %6466 = vmatpush2.bf16.msra.mxu0 %v6441
    %6467 = vmatprep.subr.bf16.mxu0 0
    %6468 = vmatpush2.bf16.msra.mxu0 %v6422
    %6469 = vmatprep.subr.bf16.mxu0 0
    %6470 = vmatpush2.bf16.msra.mxu0 %v6421
    %6471 = vmatprep.subr.bf16.mxu0 0
    %6472 = vmatpush2.bf16.msra.mxu0 %v6420
    %6473 = vmatprep.subr.bf16.mxu0 0
    %6474 = vmatpush2.bf16.msra.mxu0 %v6419
    %6475 = vmatprep.mubr.bf16.mxu0 %v6438
    %6476 = vmatmul.mubr.bf16.gmra.mxu0 %v6327
    %v6477 = vpop.f32.mrf.mxu0
    %v6478 = vadd.f32 %v6359, %v6477
    %v6479 = vpop.f32.mrf.mxu0
    %v6480 = vpop.f32.mrf.mxu0
    %v6481 = vpop.f32.mrf.mxu0
    %6482 = vdwg.mxu0
    %vm6483 = vcmask 1024
    %6484 = vst.msk [vmem:[%s12] sm:$0x3] %vm6483, %v6478
    // Predicated region
    $region100: #{cnn_model_forward.1} parent=1 // pred_check
      _
    $region101: #{cnn_model_forward.1} parent=1 // pred_check_branch
      %6486 = sbr.rel (0) target = $region103
    $region102: #{cnn_model_forward.1} parent=1 // pred_region
      _
    $region103: #{cnn_model_forward.1} parent=1 // pred_fallthru
      _
    // Predicated region
    $region104: #{cnn_model_forward.1} parent=1 // pred_check
      _
    $region105: #{cnn_model_forward.1} parent=1 // pred_check_branch
      %6488 = sbr.rel (0) target = $region107
    $region106: #{cnn_model_forward.1} parent=1 // pred_region
      _
    $region107: #{cnn_model_forward.1} parent=1 // pred_fallthru
      _
    %6489 = vsyncpa [#allocation7], 1
    %6490 = vsyncpa [#allocation9], 1
    %6491 = vsyncpa [#allocation12], 1
  %6492 = vsyncmov [#allocation4]
  %s6493 = vpop.sfrf %6492
  %p6494 = scmp.eq.s32.totalorder %s6493, 0
  %p6495 = pneg %p6494
  %6497 = shalt.err (%p6495)
  %s6498 = scalar_lea.sflag [#allocation4], 1
  %6499 = vsyncmov %s6498
  %s6500 = vpop.sfrf %6499
  %p6501 = scmp.eq.s32.totalorder %s6500, 0
  %p6502 = pneg %p6501
  %6504 = shalt.err (%p6502)

</llo_original>
